<compile_context>
chip_gen: v6e
topology: v6e:2x2x1
jax: 0.10.0
libtpu: 0.0.40
codegen_flags: <defaults>
</compile_context>

<pallas_src>
import math
import functools

import jax
import jax.numpy as jnp
from jax.experimental import pallas as pl
from jax.experimental.pallas import tpu as pltpu


# ---------------------------------------------------------------------------
# Kernel helpers
# ---------------------------------------------------------------------------
def _layer_norm(x, gamma, beta, eps=1e-5):
    # PyTorch nn.LayerNorm: biased variance over the last dim.  gamma/beta: (1, H).
    mean = jnp.mean(x, axis=-1, keepdims=True)
    var = jnp.mean((x - mean) ** 2, axis=-1, keepdims=True)
    inv = jax.lax.rsqrt(var + eps)
    return (x - mean) * inv * gamma + beta


# ---------------------------------------------------------------------------
# Kernel
# ---------------------------------------------------------------------------
def encoder_layer_kernel(
    mask_ref,              # (1, S)     int32  key-padding mask (1 = keep, 0 = pad)
    x_ref,                 # (S, H)     f32
    wq_ref, bq_ref,        # (h, H, d), (h, 1, d)
    wk_ref, bk_ref,        # (h, H, d), (h, 1, d)
    wv_ref, bv_ref,        # (h, H, d), (h, 1, d)
    wo_ref, bo_ref,        # (h, d, H), (1, H)
    ln1_g_ref, ln1_b_ref,  # (1, H), (1, H)
    w1_ref, b1_ref,        # (H, pf), (1, pf)
    w2_ref, b2_ref,        # (pf, H), (1, H)
    ln2_g_ref, ln2_b_ref,  # (1, H), (1, H)
    out_ref,               # (S, H)     f32
    *, n_heads, head_dim, matmul_dtype,
):
    x = x_ref[...]                                    # (S, H)
    S, H = x.shape
    mdt = matmul_dtype

    # Broadcast x across the head axis once (cheap leading-dim broadcast) so the
    # QKV projections become batched dot_generals with the head as batch dim.
    xb = jnp.broadcast_to(x[None, :, :], (n_heads, S, H)).astype(mdt)

    def proj(w_ref, b_ref):
        y = jnp.einsum("hsk,hkd->hsd", xb, w_ref[...].astype(mdt),
                       preferred_element_type=jnp.float32)
        return y + b_ref[...]                         # (h, S, d)

    # Attention scale folded into Q once (one multiply on (h,S,d), not n_heads
    # divides on (S,S)).
    qh = proj(wq_ref, bq_ref) * jnp.float32(1.0 / math.sqrt(head_dim))
    kh = proj(wk_ref, bk_ref)
    vh = proj(wv_ref, bv_ref)

    # Additive padding-mask bias, computed once: (1, S), broadcasts over (heads, query).
    bias = jnp.where(mask_ref[...] == 0, jnp.float32(-1e10), jnp.float32(0.0))

    # ---- batched scaled-dot-product attention (single (h,S,S) energy) ----------
    energy = jnp.einsum("hqd,hkd->hqk", qh.astype(mdt), kh.astype(mdt),
                        preferred_element_type=jnp.float32)            # (h, S, S)
    energy = energy + bias

    m = jnp.max(energy, axis=-1, keepdims=True)
    p = jnp.exp(energy - m)
    l = jnp.sum(p, axis=-1, keepdims=True)
    attn = p * pl.reciprocal(l, approx=True)                           # softmax (EUP recip)

    ctx = jnp.einsum("hqk,hkd->hqd", attn.astype(mdt), vh.astype(mdt),
                     preferred_element_type=jnp.float32)               # (h, S, d)

    # ---- output projection, batched over heads + reduce (no lane concatenate) --
    attn_out = jnp.einsum("hsd,hdk->hsk", ctx.astype(mdt), wo_ref[...].astype(mdt),
                          preferred_element_type=jnp.float32)          # (h, S, H)
    attn_out = jnp.sum(attn_out, axis=0) + bo_ref[...]                 # (S, H)

    # ---- residual + LayerNorm 1 (dropout = identity in eval mode) --------------
    # TODO(synk): nn.Dropout layers are treated as identity (inference mode).
    h1 = _layer_norm(x + attn_out, ln1_g_ref[...], ln1_b_ref[...])

    # ---- position-wise feed-forward ---------------------------------------------
    ff = jnp.dot(h1.astype(mdt), w1_ref[...].astype(mdt),
                 preferred_element_type=jnp.float32) + b1_ref[...]
    ff = jnp.maximum(ff, 0.0)                                          # ReLU
    ff = jnp.dot(ff.astype(mdt), w2_ref[...].astype(mdt),
                 preferred_element_type=jnp.float32) + b2_ref[...]

    # ---- residual + LayerNorm 2 --------------------------------------------------
    out_ref[...] = _layer_norm(h1 + ff, ln2_g_ref[...], ln2_b_ref[...])


# ---------------------------------------------------------------------------
# Wrapper
# ---------------------------------------------------------------------------
def encoder_layer_forward(x, src_mask, params, *, n_heads, matmul_dtype=jnp.float32):
    """x: (B, S, H) f32.  src_mask: (B, 1, S) int32 (1 = keep).  Returns (B, S, H)."""
    B, S, H = x.shape
    assert H % n_heads == 0
    head_dim = H // n_heads

    # One-time host-side weight prep: head-leading per-head views, 2D biases/LN params.
    def split_w(w):      # (H, H) -> (h, H, d)
        return w.reshape(H, n_heads, head_dim).transpose(1, 0, 2)

    def split_b(b):      # (H,) -> (h, 1, d)
        return b.reshape(n_heads, 1, head_dim)

    def row(b):          # (dim,) -> (1, dim)
        return b.reshape(1, -1)

    weight_args = [
        split_w(params["wq"]), split_b(params["bq"]),
        split_w(params["wk"]), split_b(params["bk"]),
        split_w(params["wv"]), split_b(params["bv"]),
        params["wo"].reshape(n_heads, head_dim, H), row(params["bo"]),
        row(params["ln1_g"]), row(params["ln1_b"]),
        params["w1"], row(params["b1"]),
        params["w2"], row(params["b2"]),
        row(params["ln2_g"]), row(params["ln2_b"]),
    ]

    def full_spec(a):
        nd = a.ndim
        return pl.BlockSpec(a.shape, lambda b: (0,) * nd)   # weights stay resident

    weight_specs = [full_spec(a) for a in weight_args]

    kernel = functools.partial(
        encoder_layer_kernel, n_heads=n_heads, head_dim=head_dim,
        matmul_dtype=matmul_dtype)

    return pl.pallas_call(
        kernel,
        out_shape=jax.ShapeDtypeStruct((B, S, H), jnp.float32),
        grid=(B,),
        in_specs=[
            # None squeezes the size-1 batch dim out of the kernel refs.
            pl.BlockSpec((None, 1, S), lambda b: (b, 0, 0)),   # mask -> (1, S)
            pl.BlockSpec((None, S, H), lambda b: (b, 0, 0)),   # x    -> (S, H)
            *weight_specs,
        ],
        out_specs=pl.BlockSpec((None, S, H), lambda b: (b, 0, 0)),
        compiler_params=pltpu.CompilerParams(
            dimension_semantics=("parallel",),   # batch axis -> both TCs on v7x
        ),
    )(src_mask, x, *weight_args)


# ---------------------------------------------------------------------------
# Pure-JAX reference (mirrors the PyTorch forward, eval mode)
# ---------------------------------------------------------------------------
def encoder_layer_reference(x, src_mask, params, *, n_heads):
    B, S, H = x.shape
    hd = H // n_heads

    def lin(a, w, b):
        return a @ w + b

    q = lin(x, params["wq"], params["bq"]).reshape(B, S, n_heads, hd).transpose(0, 2, 1, 3)
    k = lin(x, params["wk"], params["bk"]).reshape(B, S, n_heads, hd).transpose(0, 2, 1, 3)
    v = lin(x, params["wv"], params["bv"]).reshape(B, S, n_heads, hd).transpose(0, 2, 1, 3)
    energy = jnp.einsum("bhqd,bhkd->bhqk", q, k) / math.sqrt(hd)
    mask = src_mask[:, None, :, :]                       # (B,1,1,S)
    energy = jnp.where(mask == 0, -1e10, energy)
    attn = jax.nn.softmax(energy, axis=-1)
    ctx = jnp.einsum("bhqk,bhkd->bhqd", attn, v).transpose(0, 2, 1, 3).reshape(B, S, H)
    ctx = lin(ctx, params["wo"], params["bo"])

    def ln(a, g, b):
        m = jnp.mean(a, axis=-1, keepdims=True)
        var = jnp.mean((a - m) ** 2, axis=-1, keepdims=True)
        return (a - m) / jnp.sqrt(var + 1e-5) * g + b

    h1 = ln(x + ctx, params["ln1_g"], params["ln1_b"])
    ff = jnp.maximum(lin(h1, params["w1"], params["b1"]), 0.0)
    ff = lin(ff, params["w2"], params["b2"])
    return ln(h1 + ff, params["ln2_g"], params["ln2_b"])


# ---------------------------------------------------------------------------
# Main
# ---------------------------------------------------------------------------
if __name__ == "__main__":
    B, S, H = 2, 8, 32
    n_heads, pf_dim = 4, 64

    key = jax.random.PRNGKey(0)
    keys = jax.random.split(key, 16)

    def w(k, shape, scale=0.1):
        return (scale * jax.random.normal(k, shape)).astype(jnp.float32)

    params = {
        "wq": w(keys[0], (H, H)),  "bq": w(keys[1], (H,)),
        "wk": w(keys[2], (H, H)),  "bk": w(keys[3], (H,)),
        "wv": w(keys[4], (H, H)),  "bv": w(keys[5], (H,)),
        "wo": w(keys[6], (H, H)),  "bo": w(keys[7], (H,)),
        "ln1_g": jnp.ones((H,), jnp.float32),  "ln1_b": jnp.zeros((H,), jnp.float32),
        "w1": w(keys[8], (H, pf_dim)),  "b1": w(keys[9], (pf_dim,)),
        "w2": w(keys[10], (pf_dim, H)), "b2": w(keys[11], (H,)),
        "ln2_g": jnp.ones((H,), jnp.float32),  "ln2_b": jnp.zeros((H,), jnp.float32),
    }

    x = jax.random.normal(keys[12], (B, S, H), dtype=jnp.float32)
    # Key-padding mask: last 2 positions of batch element 1 are padding.
    src_mask = jnp.ones((B, 1, S), dtype=jnp.int32)
    src_mask = src_mask.at[1, 0, -2:].set(0)

    out = encoder_layer_forward(x, src_mask, params, n_heads=n_heads)
    out = jax.block_until_ready(out)

    ref = encoder_layer_reference(x, src_mask, params, n_heads=n_heads)
    assert out.shape == (B, S, H)
    # Tolerance loosened slightly vs exact math because the softmax denominator
    # uses the approximate EUP reciprocal (pl.reciprocal(approx=True)).
    assert jnp.max(jnp.abs(out - ref)) < 2e-3, "mismatch vs pure-JAX reference"

    print("KERNEL_OK")
</pallas_src>

<mosaic_0001>
module attributes {stable_mosaic.version = 11 : i64} {
  func.func @encoder_layer_kernel(%arg0: i32, %arg1: memref<1x1x8xi32, #tpu.memory_space<vmem>>, %arg2: memref<1x8x32xf32, #tpu.memory_space<vmem>>, %arg3: memref<4x32x8xf32, #tpu.memory_space<vmem>>, %arg4: memref<4x1x8xf32, #tpu.memory_space<vmem>>, %arg5: memref<4x32x8xf32, #tpu.memory_space<vmem>>, %arg6: memref<4x1x8xf32, #tpu.memory_space<vmem>>, %arg7: memref<4x32x8xf32, #tpu.memory_space<vmem>>, %arg8: memref<4x1x8xf32, #tpu.memory_space<vmem>>, %arg9: memref<4x8x32xf32, #tpu.memory_space<vmem>>, %arg10: memref<1x32xf32, #tpu.memory_space<vmem>>, %arg11: memref<1x32xf32, #tpu.memory_space<vmem>>, %arg12: memref<1x32xf32, #tpu.memory_space<vmem>>, %arg13: memref<32x64xf32, #tpu.memory_space<vmem>>, %arg14: memref<1x64xf32, #tpu.memory_space<vmem>>, %arg15: memref<64x32xf32, #tpu.memory_space<vmem>>, %arg16: memref<1x32xf32, #tpu.memory_space<vmem>>, %arg17: memref<1x32xf32, #tpu.memory_space<vmem>>, %arg18: memref<1x32xf32, #tpu.memory_space<vmem>>, %arg19: memref<1x8x32xf32, #tpu.memory_space<vmem>>) attributes {dimension_semantics = [#tpu.dimension_semantics<parallel>], iteration_bounds = array<i64: 2>, scalar_prefetch = 0 : i64, scratch_operands = 0 : i64, tpu.core_type = #tpu.core_type<tc>, window_params = [{transform_indices = @transform_0, window_bounds = array<i64: 1, 1, 8>}, {transform_indices = @transform_1, window_bounds = array<i64: 1, 8, 32>}, {pipeline_mode = #tpu.pipeline_mode<synchronous>, transform_indices = @transform_2, window_bounds = array<i64: 4, 32, 8>}, {pipeline_mode = #tpu.pipeline_mode<synchronous>, transform_indices = @transform_3, window_bounds = array<i64: 4, 1, 8>}, {pipeline_mode = #tpu.pipeline_mode<synchronous>, transform_indices = @transform_4, window_bounds = array<i64: 4, 32, 8>}, {pipeline_mode = #tpu.pipeline_mode<synchronous>, transform_indices = @transform_5, window_bounds = array<i64: 4, 1, 8>}, {pipeline_mode = #tpu.pipeline_mode<synchronous>, transform_indices = @transform_6, window_bounds = array<i64: 4, 32, 8>}, {pipeline_mode = #tpu.pipeline_mode<synchronous>, transform_indices = @transform_7, window_bounds = array<i64: 4, 1, 8>}, {pipeline_mode = #tpu.pipeline_mode<synchronous>, transform_indices = @transform_8, window_bounds = array<i64: 4, 8, 32>}, {pipeline_mode = #tpu.pipeline_mode<synchronous>, transform_indices = @transform_9, window_bounds = array<i64: 1, 32>}, {pipeline_mode = #tpu.pipeline_mode<synchronous>, transform_indices = @transform_10, window_bounds = array<i64: 1, 32>}, {pipeline_mode = #tpu.pipeline_mode<synchronous>, transform_indices = @transform_11, window_bounds = array<i64: 1, 32>}, {pipeline_mode = #tpu.pipeline_mode<synchronous>, transform_indices = @transform_12, window_bounds = array<i64: 32, 64>}, {pipeline_mode = #tpu.pipeline_mode<synchronous>, transform_indices = @transform_13, window_bounds = array<i64: 1, 64>}, {pipeline_mode = #tpu.pipeline_mode<synchronous>, transform_indices = @transform_14, window_bounds = array<i64: 64, 32>}, {pipeline_mode = #tpu.pipeline_mode<synchronous>, transform_indices = @transform_15, window_bounds = array<i64: 1, 32>}, {pipeline_mode = #tpu.pipeline_mode<synchronous>, transform_indices = @transform_16, window_bounds = array<i64: 1, 32>}, {pipeline_mode = #tpu.pipeline_mode<synchronous>, transform_indices = @transform_17, window_bounds = array<i64: 1, 32>}, {transform_indices = @transform_18, window_bounds = array<i64: 1, 8, 32>}]} {
    %c0 = arith.constant 0 : index
    %c0_0 = arith.constant 0 : index
    %c0_1 = arith.constant 0 : index
    %0 = vector.load %arg2[%c0, %c0_0, %c0_1] : memref<1x8x32xf32, #tpu.memory_space<vmem>>, vector<1x8x32xf32>
    %1 = vector.shape_cast %0 : vector<1x8x32xf32> to vector<8x32xf32>
    %2 = vector.shape_cast %1 : vector<8x32xf32> to vector<1x8x32xf32>
    %3 = vector.shape_cast %2 : vector<1x8x32xf32> to vector<1x8x32xf32>
    %4 = vector.broadcast %3 : vector<1x8x32xf32> to vector<4x8x32xf32>
    %c0_2 = arith.constant 0 : index
    %c0_3 = arith.constant 0 : index
    %c0_4 = arith.constant 0 : index
    %5 = vector.load %arg3[%c0_2, %c0_3, %c0_4] : memref<4x32x8xf32, #tpu.memory_space<vmem>>, vector<4x32x8xf32>
    "tpu.trace_start"() <{level = 10 : i32, message = "hsk,hkd->hsd"}> : () -> ()
    %cst = arith.constant dense<0.000000e+00> : vector<4x8x8xf32>
    %6 = tpu.matmul %4, %5, %cst {dimension_numbers = #tpu.dot_dimension_numbers<[2], [1], [1], [2], [0, 0, 0, 1, 1, 2], [0], [0]>} : vector<4x8x32xf32>, vector<4x32x8xf32>, vector<4x8x8xf32> -> vector<4x8x8xf32>
    "tpu.trace_stop"() : () -> ()
    %c0_5 = arith.constant 0 : index
    %c0_6 = arith.constant 0 : index
    %c0_7 = arith.constant 0 : index
    %7 = vector.load %arg4[%c0_5, %c0_6, %c0_7] : memref<4x1x8xf32, #tpu.memory_space<vmem>>, vector<4x1x8xf32>
    %8 = vector.broadcast %7 : vector<4x1x8xf32> to vector<4x8x8xf32>
    %9 = arith.addf %6, %8 : vector<4x8x8xf32>
    %cst_8 = arith.constant 0.353553385 : f32
    %10 = vector.broadcast %cst_8 : f32 to vector<4x8x8xf32>
    %11 = arith.mulf %9, %10 : vector<4x8x8xf32>
    %c0_9 = arith.constant 0 : index
    %c0_10 = arith.constant 0 : index
    %c0_11 = arith.constant 0 : index
    %12 = vector.load %arg5[%c0_9, %c0_10, %c0_11] : memref<4x32x8xf32, #tpu.memory_space<vmem>>, vector<4x32x8xf32>
    "tpu.trace_start"() <{level = 10 : i32, message = "hsk,hkd->hsd"}> : () -> ()
    %cst_12 = arith.constant dense<0.000000e+00> : vector<4x8x8xf32>
    %13 = tpu.matmul %4, %12, %cst_12 {dimension_numbers = #tpu.dot_dimension_numbers<[2], [1], [1], [2], [0, 0, 0, 1, 1, 2], [0], [0]>} : vector<4x8x32xf32>, vector<4x32x8xf32>, vector<4x8x8xf32> -> vector<4x8x8xf32>
    "tpu.trace_stop"() : () -> ()
    %c0_13 = arith.constant 0 : index
    %c0_14 = arith.constant 0 : index
    %c0_15 = arith.constant 0 : index
    %14 = vector.load %arg6[%c0_13, %c0_14, %c0_15] : memref<4x1x8xf32, #tpu.memory_space<vmem>>, vector<4x1x8xf32>
    %15 = vector.broadcast %14 : vector<4x1x8xf32> to vector<4x8x8xf32>
    %16 = arith.addf %13, %15 : vector<4x8x8xf32>
    %c0_16 = arith.constant 0 : index
    %c0_17 = arith.constant 0 : index
    %c0_18 = arith.constant 0 : index
    %17 = vector.load %arg7[%c0_16, %c0_17, %c0_18] : memref<4x32x8xf32, #tpu.memory_space<vmem>>, vector<4x32x8xf32>
    "tpu.trace_start"() <{level = 10 : i32, message = "hsk,hkd->hsd"}> : () -> ()
    %cst_19 = arith.constant dense<0.000000e+00> : vector<4x8x8xf32>
    %18 = tpu.matmul %4, %17, %cst_19 {dimension_numbers = #tpu.dot_dimension_numbers<[2], [1], [1], [2], [0, 0, 0, 1, 1, 2], [0], [0]>} : vector<4x8x32xf32>, vector<4x32x8xf32>, vector<4x8x8xf32> -> vector<4x8x8xf32>
    "tpu.trace_stop"() : () -> ()
    %c0_20 = arith.constant 0 : index
    %c0_21 = arith.constant 0 : index
    %c0_22 = arith.constant 0 : index
    %19 = vector.load %arg8[%c0_20, %c0_21, %c0_22] : memref<4x1x8xf32, #tpu.memory_space<vmem>>, vector<4x1x8xf32>
    %20 = vector.broadcast %19 : vector<4x1x8xf32> to vector<4x8x8xf32>
    %21 = arith.addf %18, %20 : vector<4x8x8xf32>
    %c0_23 = arith.constant 0 : index
    %c0_24 = arith.constant 0 : index
    %c0_25 = arith.constant 0 : index
    %22 = vector.load %arg1[%c0_23, %c0_24, %c0_25] : memref<1x1x8xi32, #tpu.memory_space<vmem>>, vector<1x1x8xi32>
    %23 = vector.shape_cast %22 : vector<1x1x8xi32> to vector<1x8xi32>
    %c0_i32 = arith.constant 0 : i32
    %24 = vector.broadcast %c0_i32 : i32 to vector<1x8xi32>
    %25 = arith.cmpi eq, %23, %24 : vector<1x8xi32>
    %cst_26 = arith.constant -1.000000e+10 : f32
    %cst_27 = arith.constant 0.000000e+00 : f32
    %26 = vector.broadcast %cst_26 : f32 to vector<1x8xf32>
    %27 = vector.broadcast %cst_27 : f32 to vector<1x8xf32>
    %28 = arith.select %25, %26, %27 : vector<1x8xi1>, vector<1x8xf32>
    "tpu.trace_start"() <{level = 10 : i32, message = "hqd,hkd->hqk"}> : () -> ()
    %cst_28 = arith.constant dense<0.000000e+00> : vector<4x8x8xf32>
    %29 = tpu.matmul %11, %16, %cst_28 {dimension_numbers = #tpu.dot_dimension_numbers<[2], [2], [1], [1], [0, 0, 0, 1, 1, 1], [0], [0]>} : vector<4x8x8xf32>, vector<4x8x8xf32>, vector<4x8x8xf32> -> vector<4x8x8xf32>
    "tpu.trace_stop"() : () -> ()
    %30 = vector.shape_cast %28 : vector<1x8xf32> to vector<1x1x8xf32>
    %31 = vector.broadcast %30 : vector<1x1x8xf32> to vector<4x8x8xf32>
    %32 = arith.addf %29, %31 : vector<4x8x8xf32>
    %cst_29 = arith.constant dense<0xFF800000> : vector<4x8xf32>
    %33 = vector.multi_reduction <maximumf>, %32, %cst_29 [2] : vector<4x8x8xf32> to vector<4x8xf32>
    %34 = vector.shape_cast %33 : vector<4x8xf32> to vector<4x8x1xf32>
    %35 = vector.broadcast %34 : vector<4x8x1xf32> to vector<4x8x8xf32>
    %36 = arith.subf %32, %35 : vector<4x8x8xf32>
    %37 = math.exp %36 : vector<4x8x8xf32>
    %cst_30 = arith.constant dense<0.000000e+00> : vector<4x8xf32>
    %38 = vector.multi_reduction <add>, %37, %cst_30 [2] : vector<4x8x8xf32> to vector<4x8xf32>
    %39 = vector.shape_cast %38 : vector<4x8xf32> to vector<4x8x1xf32>
    %40 = tpu.reciprocal %39 {approx = true} : vector<4x8x1xf32> -> vector<4x8x1xf32>
    %41 = vector.broadcast %40 : vector<4x8x1xf32> to vector<4x8x8xf32>
    %42 = arith.mulf %37, %41 : vector<4x8x8xf32>
    "tpu.trace_start"() <{level = 10 : i32, message = "hqk,hkd->hqd"}> : () -> ()
    %cst_31 = arith.constant dense<0.000000e+00> : vector<4x8x8xf32>
    %43 = tpu.matmul %42, %21, %cst_31 {dimension_numbers = #tpu.dot_dimension_numbers<[2], [1], [1], [2], [0, 0, 0, 1, 1, 2], [0], [0]>} : vector<4x8x8xf32>, vector<4x8x8xf32>, vector<4x8x8xf32> -> vector<4x8x8xf32>
    "tpu.trace_stop"() : () -> ()
    %c0_32 = arith.constant 0 : index
    %c0_33 = arith.constant 0 : index
    %c0_34 = arith.constant 0 : index
    %44 = vector.load %arg9[%c0_32, %c0_33, %c0_34] : memref<4x8x32xf32, #tpu.memory_space<vmem>>, vector<4x8x32xf32>
    "tpu.trace_start"() <{level = 10 : i32, message = "hsd,hdk->hsk"}> : () -> ()
    %cst_35 = arith.constant dense<0.000000e+00> : vector<4x8x32xf32>
    %45 = tpu.matmul %43, %44, %cst_35 {dimension_numbers = #tpu.dot_dimension_numbers<[2], [1], [1], [2], [0, 0, 0, 1, 1, 2], [0], [0]>} : vector<4x8x8xf32>, vector<4x8x32xf32>, vector<4x8x32xf32> -> vector<4x8x32xf32>
    "tpu.trace_stop"() : () -> ()
    %cst_36 = arith.constant dense<0.000000e+00> : vector<8x32xf32>
    %46 = vector.multi_reduction <add>, %45, %cst_36 [0] : vector<4x8x32xf32> to vector<8x32xf32>
    %c0_37 = arith.constant 0 : index
    %c0_38 = arith.constant 0 : index
    %47 = vector.load %arg10[%c0_37, %c0_38] : memref<1x32xf32, #tpu.memory_space<vmem>>, vector<1x32xf32>
    %48 = vector.broadcast %47 : vector<1x32xf32> to vector<8x32xf32>
    %49 = arith.addf %46, %48 : vector<8x32xf32>
    %50 = arith.addf %1, %49 : vector<8x32xf32>
    %c0_39 = arith.constant 0 : index
    %c0_40 = arith.constant 0 : index
    %51 = vector.load %arg11[%c0_39, %c0_40] : memref<1x32xf32, #tpu.memory_space<vmem>>, vector<1x32xf32>
    %c0_41 = arith.constant 0 : index
    %c0_42 = arith.constant 0 : index
    %52 = vector.load %arg12[%c0_41, %c0_42] : memref<1x32xf32, #tpu.memory_space<vmem>>, vector<1x32xf32>
    %cst_43 = arith.constant dense<0.000000e+00> : vector<8xf32>
    %53 = vector.multi_reduction <add>, %50, %cst_43 [1] : vector<8x32xf32> to vector<8xf32>
    %54 = vector.shape_cast %53 : vector<8xf32> to vector<8x1xf32>
    %cst_44 = arith.constant 3.200000e+01 : f32
    %55 = vector.broadcast %cst_44 : f32 to vector<8x1xf32>
    %56 = arith.divf %54, %55 : vector<8x1xf32>
    %57 = vector.broadcast %56 : vector<8x1xf32> to vector<8x32xf32>
    %58 = arith.subf %50, %57 : vector<8x32xf32>
    %59 = arith.mulf %58, %58 : vector<8x32xf32>
    %cst_45 = arith.constant dense<0.000000e+00> : vector<8xf32>
    %60 = vector.multi_reduction <add>, %59, %cst_45 [1] : vector<8x32xf32> to vector<8xf32>
    %61 = vector.shape_cast %60 : vector<8xf32> to vector<8x1xf32>
    %cst_46 = arith.constant 3.200000e+01 : f32
    %62 = vector.broadcast %cst_46 : f32 to vector<8x1xf32>
    %63 = arith.divf %61, %62 : vector<8x1xf32>
    %cst_47 = arith.constant 9.99999974E-6 : f32
    %64 = vector.broadcast %cst_47 : f32 to vector<8x1xf32>
    %65 = arith.addf %63, %64 : vector<8x1xf32>
    %66 = math.rsqrt %65 : vector<8x1xf32>
    %67 = vector.broadcast %56 : vector<8x1xf32> to vector<8x32xf32>
    %68 = arith.subf %50, %67 : vector<8x32xf32>
    %69 = vector.broadcast %66 : vector<8x1xf32> to vector<8x32xf32>
    %70 = arith.mulf %68, %69 : vector<8x32xf32>
    %71 = vector.broadcast %51 : vector<1x32xf32> to vector<8x32xf32>
    %72 = arith.mulf %70, %71 : vector<8x32xf32>
    %73 = vector.broadcast %52 : vector<1x32xf32> to vector<8x32xf32>
    %74 = arith.addf %72, %73 : vector<8x32xf32>
    %c0_48 = arith.constant 0 : index
    %c0_49 = arith.constant 0 : index
    %75 = vector.load %arg13[%c0_48, %c0_49] : memref<32x64xf32, #tpu.memory_space<vmem>>, vector<32x64xf32>
    %cst_50 = arith.constant dense<0.000000e+00> : vector<8x64xf32>
    %76 = tpu.matmul %74, %75, %cst_50 {dimension_numbers = #tpu.dot_dimension_numbers<[1], [0], [0], [1], [0, 0, 1, 1], [], []>} : vector<8x32xf32>, vector<32x64xf32>, vector<8x64xf32> -> vector<8x64xf32>
    %c0_51 = arith.constant 0 : index
    %c0_52 = arith.constant 0 : index
    %77 = vector.load %arg14[%c0_51, %c0_52] : memref<1x64xf32, #tpu.memory_space<vmem>>, vector<1x64xf32>
    %78 = vector.broadcast %77 : vector<1x64xf32> to vector<8x64xf32>
    %79 = arith.addf %76, %78 : vector<8x64xf32>
    %cst_53 = arith.constant 0.000000e+00 : f32
    %80 = vector.broadcast %cst_53 : f32 to vector<8x64xf32>
    %81 = arith.maximumf %79, %80 : vector<8x64xf32>
    %c0_54 = arith.constant 0 : index
    %c0_55 = arith.constant 0 : index
    %82 = vector.load %arg15[%c0_54, %c0_55] : memref<64x32xf32, #tpu.memory_space<vmem>>, vector<64x32xf32>
    %cst_56 = arith.constant dense<0.000000e+00> : vector<8x32xf32>
    %83 = tpu.matmul %81, %82, %cst_56 {dimension_numbers = #tpu.dot_dimension_numbers<[1], [0], [0], [1], [0, 0, 1, 1], [], []>} : vector<8x64xf32>, vector<64x32xf32>, vector<8x32xf32> -> vector<8x32xf32>
    %c0_57 = arith.constant 0 : index
    %c0_58 = arith.constant 0 : index
    %84 = vector.load %arg16[%c0_57, %c0_58] : memref<1x32xf32, #tpu.memory_space<vmem>>, vector<1x32xf32>
    %85 = vector.broadcast %84 : vector<1x32xf32> to vector<8x32xf32>
    %86 = arith.addf %83, %85 : vector<8x32xf32>
    %87 = arith.addf %74, %86 : vector<8x32xf32>
    %c0_59 = arith.constant 0 : index
    %c0_60 = arith.constant 0 : index
    %88 = vector.load %arg17[%c0_59, %c0_60] : memref<1x32xf32, #tpu.memory_space<vmem>>, vector<1x32xf32>
    %c0_61 = arith.constant 0 : index
    %c0_62 = arith.constant 0 : index
    %89 = vector.load %arg18[%c0_61, %c0_62] : memref<1x32xf32, #tpu.memory_space<vmem>>, vector<1x32xf32>
    %cst_63 = arith.constant dense<0.000000e+00> : vector<8xf32>
    %90 = vector.multi_reduction <add>, %87, %cst_63 [1] : vector<8x32xf32> to vector<8xf32>
    %91 = vector.shape_cast %90 : vector<8xf32> to vector<8x1xf32>
    %cst_64 = arith.constant 3.200000e+01 : f32
    %92 = vector.broadcast %cst_64 : f32 to vector<8x1xf32>
    %93 = arith.divf %91, %92 : vector<8x1xf32>
    %94 = vector.broadcast %93 : vector<8x1xf32> to vector<8x32xf32>
    %95 = arith.subf %87, %94 : vector<8x32xf32>
    %96 = arith.mulf %95, %95 : vector<8x32xf32>
    %cst_65 = arith.constant dense<0.000000e+00> : vector<8xf32>
    %97 = vector.multi_reduction <add>, %96, %cst_65 [1] : vector<8x32xf32> to vector<8xf32>
    %98 = vector.shape_cast %97 : vector<8xf32> to vector<8x1xf32>
    %cst_66 = arith.constant 3.200000e+01 : f32
    %99 = vector.broadcast %cst_66 : f32 to vector<8x1xf32>
    %100 = arith.divf %98, %99 : vector<8x1xf32>
    %cst_67 = arith.constant 9.99999974E-6 : f32
    %101 = vector.broadcast %cst_67 : f32 to vector<8x1xf32>
    %102 = arith.addf %100, %101 : vector<8x1xf32>
    %103 = math.rsqrt %102 : vector<8x1xf32>
    %104 = vector.broadcast %93 : vector<8x1xf32> to vector<8x32xf32>
    %105 = arith.subf %87, %104 : vector<8x32xf32>
    %106 = vector.broadcast %103 : vector<8x1xf32> to vector<8x32xf32>
    %107 = arith.mulf %105, %106 : vector<8x32xf32>
    %108 = vector.broadcast %88 : vector<1x32xf32> to vector<8x32xf32>
    %109 = arith.mulf %107, %108 : vector<8x32xf32>
    %110 = vector.broadcast %89 : vector<1x32xf32> to vector<8x32xf32>
    %111 = arith.addf %109, %110 : vector<8x32xf32>
    %c0_68 = arith.constant 0 : index
    %c0_69 = arith.constant 0 : index
    %c0_70 = arith.constant 0 : index
    %112 = vector.load %arg19[%c0_68, %c0_69, %c0_70] : memref<1x8x32xf32, #tpu.memory_space<vmem>>, vector<1x8x32xf32>
    %113 = vector.shape_cast %112 : vector<1x8x32xf32> to vector<8x32xf32>
    %114 = vector.shape_cast %111 : vector<8x32xf32> to vector<1x8x32xf32>
    tpu.vector_store %arg19[%c0_68, %c0_69, %c0_70], %114 {strides = array<i32>} : memref<1x8x32xf32, #tpu.memory_space<vmem>>, vector<1x8x32xf32>,
    return
  }
  func.func @transform_0(%arg0: i32) -> (i32, i32, i32) {
    %c0_i32 = arith.constant 0 : i32
    %c0_i32_0 = arith.constant 0 : i32
    %c0_i32_1 = arith.constant 0 : i32
    return %arg0, %c0_i32, %c0_i32_0 : i32, i32, i32
  }
  func.func @transform_1(%arg0: i32) -> (i32, i32, i32) {
    %c0_i32 = arith.constant 0 : i32
    %c0_i32_0 = arith.constant 0 : i32
    %c0_i32_1 = arith.constant 0 : i32
    return %arg0, %c0_i32, %c0_i32_0 : i32, i32, i32
  }
  func.func @transform_2(%arg0: i32) -> (i32, i32, i32) {
    %c0_i32 = arith.constant 0 : i32
    %c0_i32_0 = arith.constant 0 : i32
    %c0_i32_1 = arith.constant 0 : i32
    %c0_i32_2 = arith.constant 0 : i32
    return %c0_i32, %c0_i32_0, %c0_i32_1 : i32, i32, i32
  }
  func.func @transform_3(%arg0: i32) -> (i32, i32, i32) {
    %c0_i32 = arith.constant 0 : i32
    %c0_i32_0 = arith.constant 0 : i32
    %c0_i32_1 = arith.constant 0 : i32
    %c0_i32_2 = arith.constant 0 : i32
    return %c0_i32, %c0_i32_0, %c0_i32_1 : i32, i32, i32
  }
  func.func @transform_4(%arg0: i32) -> (i32, i32, i32) {
    %c0_i32 = arith.constant 0 : i32
    %c0_i32_0 = arith.constant 0 : i32
    %c0_i32_1 = arith.constant 0 : i32
    %c0_i32_2 = arith.constant 0 : i32
    return %c0_i32, %c0_i32_0, %c0_i32_1 : i32, i32, i32
  }
  func.func @transform_5(%arg0: i32) -> (i32, i32, i32) {
    %c0_i32 = arith.constant 0 : i32
    %c0_i32_0 = arith.constant 0 : i32
    %c0_i32_1 = arith.constant 0 : i32
    %c0_i32_2 = arith.constant 0 : i32
    return %c0_i32, %c0_i32_0, %c0_i32_1 : i32, i32, i32
  }
  func.func @transform_6(%arg0: i32) -> (i32, i32, i32) {
    %c0_i32 = arith.constant 0 : i32
    %c0_i32_0 = arith.constant 0 : i32
    %c0_i32_1 = arith.constant 0 : i32
    %c0_i32_2 = arith.constant 0 : i32
    return %c0_i32, %c0_i32_0, %c0_i32_1 : i32, i32, i32
  }
  func.func @transform_7(%arg0: i32) -> (i32, i32, i32) {
    %c0_i32 = arith.constant 0 : i32
    %c0_i32_0 = arith.constant 0 : i32
    %c0_i32_1 = arith.constant 0 : i32
    %c0_i32_2 = arith.constant 0 : i32
    return %c0_i32, %c0_i32_0, %c0_i32_1 : i32, i32, i32
  }
  func.func @transform_8(%arg0: i32) -> (i32, i32, i32) {
    %c0_i32 = arith.constant 0 : i32
    %c0_i32_0 = arith.constant 0 : i32
    %c0_i32_1 = arith.constant 0 : i32
    %c0_i32_2 = arith.constant 0 : i32
    return %c0_i32, %c0_i32_0, %c0_i32_1 : i32, i32, i32
  }
  func.func @transform_9(%arg0: i32) -> (i32, i32) {
    %c0_i32 = arith.constant 0 : i32
    %c0_i32_0 = arith.constant 0 : i32
    %c0_i32_1 = arith.constant 0 : i32
    return %c0_i32, %c0_i32_0 : i32, i32
  }
  func.func @transform_10(%arg0: i32) -> (i32, i32) {
    %c0_i32 = arith.constant 0 : i32
    %c0_i32_0 = arith.constant 0 : i32
    %c0_i32_1 = arith.constant 0 : i32
    return %c0_i32, %c0_i32_0 : i32, i32
  }
  func.func @transform_11(%arg0: i32) -> (i32, i32) {
    %c0_i32 = arith.constant 0 : i32
    %c0_i32_0 = arith.constant 0 : i32
    %c0_i32_1 = arith.constant 0 : i32
    return %c0_i32, %c0_i32_0 : i32, i32
  }
  func.func @transform_12(%arg0: i32) -> (i32, i32) {
    %c0_i32 = arith.constant 0 : i32
    %c0_i32_0 = arith.constant 0 : i32
    %c0_i32_1 = arith.constant 0 : i32
    return %c0_i32, %c0_i32_0 : i32, i32
  }
  func.func @transform_13(%arg0: i32) -> (i32, i32) {
    %c0_i32 = arith.constant 0 : i32
    %c0_i32_0 = arith.constant 0 : i32
    %c0_i32_1 = arith.constant 0 : i32
    return %c0_i32, %c0_i32_0 : i32, i32
  }
  func.func @transform_14(%arg0: i32) -> (i32, i32) {
    %c0_i32 = arith.constant 0 : i32
    %c0_i32_0 = arith.constant 0 : i32
    %c0_i32_1 = arith.constant 0 : i32
    return %c0_i32, %c0_i32_0 : i32, i32
  }
  func.func @transform_15(%arg0: i32) -> (i32, i32) {
    %c0_i32 = arith.constant 0 : i32
    %c0_i32_0 = arith.constant 0 : i32
    %c0_i32_1 = arith.constant 0 : i32
    return %c0_i32, %c0_i32_0 : i32, i32
  }
  func.func @transform_16(%arg0: i32) -> (i32, i32) {
    %c0_i32 = arith.constant 0 : i32
    %c0_i32_0 = arith.constant 0 : i32
    %c0_i32_1 = arith.constant 0 : i32
    return %c0_i32, %c0_i32_0 : i32, i32
  }
  func.func @transform_17(%arg0: i32) -> (i32, i32) {
    %c0_i32 = arith.constant 0 : i32
    %c0_i32_0 = arith.constant 0 : i32
    %c0_i32_1 = arith.constant 0 : i32
    return %c0_i32, %c0_i32_0 : i32, i32
  }
  func.func @transform_18(%arg0: i32) -> (i32, i32, i32) {
    %c0_i32 = arith.constant 0 : i32
    %c0_i32_0 = arith.constant 0 : i32
    %c0_i32_1 = arith.constant 0 : i32
    return %arg0, %c0_i32, %c0_i32_0 : i32, i32, i32
  }
}

</mosaic_0001>

<llo_original>
// kernel: tpu_custom_call.1
$region0: #{tpu_custom_call.1}
  #allocation0 [shape = 'u32[]', space=smem, size = 0x4, offset = 0x4, fixed_abs, tag = 'smem constant byte address 0x4 - core index']
  #allocation1 [shape = 'u32[144,128]{1,0:T(1,128)}', space=vmem, size = 0x12000, scoped, tag = 'internal scratch']
  %s0 = inlined_call_operand.vmem [shape: s32[2,1,8], index: 0, kind: input, shape index: {}]
  %s1 = inlined_call_operand.vmem [shape: f32[2,8,32], index: 1, kind: input, shape index: {}]
  %s2 = inlined_call_operand.vmem [shape: f32[4,32,8], index: 2, kind: input, shape index: {}]
  %s3 = inlined_call_operand.vmem [shape: f32[4,1,8], index: 3, kind: input, shape index: {}]
  %s4 = inlined_call_operand.vmem [shape: f32[4,32,8], index: 4, kind: input, shape index: {}]
  %s5 = inlined_call_operand.vmem [shape: f32[4,1,8], index: 5, kind: input, shape index: {}]
  %s6 = inlined_call_operand.vmem [shape: f32[4,32,8], index: 6, kind: input, shape index: {}]
  %s7 = inlined_call_operand.vmem [shape: f32[4,1,8], index: 7, kind: input, shape index: {}]
  %s8 = inlined_call_operand.vmem [shape: f32[4,8,32], index: 8, kind: input, shape index: {}]
  %s9 = inlined_call_operand.vmem [shape: f32[1,32], index: 9, kind: input, shape index: {}]
  %s10 = inlined_call_operand.vmem [shape: f32[1,32], index: 10, kind: input, shape index: {}]
  %s11 = inlined_call_operand.vmem [shape: f32[1,32], index: 11, kind: input, shape index: {}]
  %s12 = inlined_call_operand.vmem [shape: f32[32,64], index: 12, kind: input, shape index: {}]
  %s13 = inlined_call_operand.vmem [shape: f32[1,64], index: 13, kind: input, shape index: {}]
  %s14 = inlined_call_operand.vmem [shape: f32[64,32], index: 14, kind: input, shape index: {}]
  %s15 = inlined_call_operand.vmem [shape: f32[1,32], index: 15, kind: input, shape index: {}]
  %s16 = inlined_call_operand.vmem [shape: f32[1,32], index: 16, kind: input, shape index: {}]
  %s17 = inlined_call_operand.vmem [shape: f32[1,32], index: 17, kind: input, shape index: {}]
  %s18 = inlined_call_operand.hbm [shape: f32[2,8,32], index: 18, kind: output, shape index: {}]
  %s19 = sld [smem:[#allocation0]]
  $region105: #{tpu_custom_call.1} parent=0
    _
  %s21 = ssub.s32 1, %s19
  %s22 = scalar_select 0, %s21, %s19
  $region1: #{tpu_custom_call.1} parent=0
    #allocation2 [shape = 'u8[8192]{0}', space=vmem, size = 0x2000, scoped, tag = 'output window, operand 0']
    #allocation3 [shape = 's32[2]{0}', space=sflag, size = 0x8, scoped, tag = 'scoped memory for tpu_custom_call.1']
    %23 = vsyncpa [#allocation3], 0
    %s24 = scalar_lea.sflag [#allocation3], 1
    %25 = vsyncpa %s24, 0
    loop: start=0, step=1, limit=4
    $region2: #{tpu_custom_call.1} parent=1 // loop_pre_header
      _
    $region3: #{tpu_custom_call.1} parent=1 // loop_header
      %s27 = sphi 0, %s31
      %p28 = scmp.ge.s32.totalorder %s27, 4
      %s37 = sphi 0, %s39
      %s40 = sphi 0, %s37
      %s41 = sphi 0, %s40
      %s57 = sphi 0, %s41
      %s63 = sphi 0, %s65
      %s66 = sphi 0, %s63
      %s67 = sphi 0, %s66
      %s83 = sphi 0, %s67
      %s87 = sphi 0, %s87
      %s89 = sphi 0, %s87
      %s90 = sphi 0, %s89
      %s104 = sphi 0, %s90
      %s108 = sphi 0, %s108
      %s110 = sphi 0, %s108
      %s111 = sphi 0, %s110
      %s125 = sphi 0, %s111
      %s129 = sphi 0, %s129
      %s131 = sphi 0, %s129
      %s132 = sphi 0, %s131
      %s146 = sphi 0, %s132
      %s150 = sphi 0, %s150
      %s152 = sphi 0, %s150
      %s153 = sphi 0, %s152
      %s167 = sphi 0, %s153
      %s171 = sphi 0, %s171
      %s173 = sphi 0, %s171
      %s174 = sphi 0, %s173
      %s188 = sphi 0, %s174
      %s192 = sphi 0, %s192
      %s194 = sphi 0, %s192
      %s195 = sphi 0, %s194
      %s209 = sphi 0, %s195
      %s213 = sphi 0, %s213
      %s215 = sphi 0, %s213
      %s216 = sphi 0, %s215
      %s230 = sphi 0, %s216
      %s234 = sphi 0, %s234
      %s236 = sphi 0, %s234
      %s237 = sphi 0, %s236
      %s251 = sphi 0, %s237
      %s255 = sphi 0, %s255
      %s257 = sphi 0, %s255
      %s258 = sphi 0, %s257
      %s272 = sphi 0, %s258
      %s276 = sphi 0, %s276
      %s278 = sphi 0, %s276
      %s279 = sphi 0, %s278
      %s293 = sphi 0, %s279
      %s297 = sphi 0, %s297
      %s299 = sphi 0, %s297
      %s300 = sphi 0, %s299
      %s314 = sphi 0, %s300
      %s318 = sphi 0, %s318
      %s320 = sphi 0, %s318
      %s321 = sphi 0, %s320
      %s335 = sphi 0, %s321
      %s339 = sphi 0, %s339
      %s341 = sphi 0, %s339
      %s342 = sphi 0, %s341
      %s356 = sphi 0, %s342
      %s360 = sphi 0, %s360
      %s362 = sphi 0, %s360
      %s363 = sphi 0, %s362
      %s377 = sphi 0, %s363
      %s381 = sphi 0, %s381
      %s383 = sphi 0, %s381
      %s384 = sphi 0, %s383
      %s398 = sphi 0, %s384
      %s402 = sphi 0, %s402
      %s404 = sphi 0, %s402
      %s405 = sphi 0, %s404
      %s419 = sphi 0, %s405
      %s425 = sphi 0, %s427
      %s428 = sphi 0, %s425
      %s429 = sphi 0, %s428
      %s445 = sphi 0, %s429
    $region4: #{tpu_custom_call.1} parent=1 // loop_header_branch
      %30 = sbr.rel (%p28) target = $region8
    $region5: #{tpu_custom_call.1} parent=1 // loop_body
      %s32 = ssub.s32 %s27, 1
      %s33 = ssub.s32 %s27, 2
      %s34 = sadd.s32 %s27, 1
      %s35 = ssub.s32 %s27, %s34
      %p36 = scmp.eq.s32.totalorder %s35, 0
      %s38 = sadd.s32 %s37, 1
      %s39 = scalar_select %p36, %s37, %s38
      %p42 = pneg %p36
      %p43 = scmp.eq.s32.totalorder %s27, 1
      %p44 = por %p42, %p43
      %p45 = scmp.ne.s32.totalorder %s37, %s40
      %p46 = scmp.eq.s32.totalorder %s27, 0
      %p47 = por %p45, %p46
      %p48 = scmp.ne.s32.totalorder %s37, %s40
      %p49 = scmp.eq.s32.totalorder %s32, 1
      %p50 = por %p48, %p49
      %p51 = scmp.ne.s32.totalorder %s40, %s41
      %p52 = scmp.eq.s32.totalorder %s32, 0
      %p53 = por %p51, %p52
      %p54 = scmp.ne.s32.totalorder %s40, %s41
      %p55 = scmp.eq.s32.totalorder %s33, 1
      %p56 = por %p54, %p55
      %p58 = scmp.ne.s32.totalorder %s41, %s57
      %p59 = scmp.eq.s32.totalorder %s33, 0
      %p60 = por %p58, %p59
      %s61 = ssub.s32 %s27, %s34
      %p62 = scmp.eq.s32.totalorder %s61, 0
      %s64 = sadd.s32 %s63, 1
      %s65 = scalar_select %p62, %s63, %s64
      %p68 = pneg %p62
      %p69 = scmp.eq.s32.totalorder %s27, 1
      %p70 = por %p68, %p69
      %p71 = scmp.ne.s32.totalorder %s63, %s66
      %p72 = scmp.eq.s32.totalorder %s27, 0
      %p73 = por %p71, %p72
      %p74 = scmp.ne.s32.totalorder %s63, %s66
      %p75 = scmp.eq.s32.totalorder %s32, 1
      %p76 = por %p74, %p75
      %p77 = scmp.ne.s32.totalorder %s66, %s67
      %p78 = scmp.eq.s32.totalorder %s32, 0
      %p79 = por %p77, %p78
      %p80 = scmp.ne.s32.totalorder %s66, %s67
      %p81 = scmp.eq.s32.totalorder %s33, 1
      %p82 = por %p80, %p81
      %p84 = scmp.ne.s32.totalorder %s67, %s83
      %p85 = scmp.eq.s32.totalorder %s33, 0
      %p86 = por %p84, %p85
      %s88 = sadd.s32 %s87, 1
      %p91 = scmp.eq.s32.totalorder %s27, 1
      %p92 = scmp.ne.s32.totalorder %s87, %s89
      %p93 = scmp.eq.s32.totalorder %s27, 0
      %p94 = por %p92, %p93
      %p95 = scmp.ne.s32.totalorder %s87, %s89
      %p96 = scmp.eq.s32.totalorder %s32, 1
      %p97 = por %p95, %p96
      %p98 = scmp.ne.s32.totalorder %s89, %s90
      %p99 = scmp.eq.s32.totalorder %s32, 0
      %p100 = por %p98, %p99
      %p101 = scmp.ne.s32.totalorder %s89, %s90
      %p102 = scmp.eq.s32.totalorder %s33, 1
      %p103 = por %p101, %p102
      %p105 = scmp.ne.s32.totalorder %s90, %s104
      %p106 = scmp.eq.s32.totalorder %s33, 0
      %p107 = por %p105, %p106
      %s109 = sadd.s32 %s108, 1
      %p112 = scmp.eq.s32.totalorder %s27, 1
      %p113 = scmp.ne.s32.totalorder %s108, %s110
      %p114 = scmp.eq.s32.totalorder %s27, 0
      %p115 = por %p113, %p114
      %p116 = scmp.ne.s32.totalorder %s108, %s110
      %p117 = scmp.eq.s32.totalorder %s32, 1
      %p118 = por %p116, %p117
      %p119 = scmp.ne.s32.totalorder %s110, %s111
      %p120 = scmp.eq.s32.totalorder %s32, 0
      %p121 = por %p119, %p120
      %p122 = scmp.ne.s32.totalorder %s110, %s111
      %p123 = scmp.eq.s32.totalorder %s33, 1
      %p124 = por %p122, %p123
      %p126 = scmp.ne.s32.totalorder %s111, %s125
      %p127 = scmp.eq.s32.totalorder %s33, 0
      %p128 = por %p126, %p127
      %s130 = sadd.s32 %s129, 1
      %p133 = scmp.eq.s32.totalorder %s27, 1
      %p134 = scmp.ne.s32.totalorder %s129, %s131
      %p135 = scmp.eq.s32.totalorder %s27, 0
      %p136 = por %p134, %p135
      %p137 = scmp.ne.s32.totalorder %s129, %s131
      %p138 = scmp.eq.s32.totalorder %s32, 1
      %p139 = por %p137, %p138
      %p140 = scmp.ne.s32.totalorder %s131, %s132
      %p141 = scmp.eq.s32.totalorder %s32, 0
      %p142 = por %p140, %p141
      %p143 = scmp.ne.s32.totalorder %s131, %s132
      %p144 = scmp.eq.s32.totalorder %s33, 1
      %p145 = por %p143, %p144
      %p147 = scmp.ne.s32.totalorder %s132, %s146
      %p148 = scmp.eq.s32.totalorder %s33, 0
      %p149 = por %p147, %p148
      %s151 = sadd.s32 %s150, 1
      %p154 = scmp.eq.s32.totalorder %s27, 1
      %p155 = scmp.ne.s32.totalorder %s150, %s152
      %p156 = scmp.eq.s32.totalorder %s27, 0
      %p157 = por %p155, %p156
      %p158 = scmp.ne.s32.totalorder %s150, %s152
      %p159 = scmp.eq.s32.totalorder %s32, 1
      %p160 = por %p158, %p159
      %p161 = scmp.ne.s32.totalorder %s152, %s153
      %p162 = scmp.eq.s32.totalorder %s32, 0
      %p163 = por %p161, %p162
      %p164 = scmp.ne.s32.totalorder %s152, %s153
      %p165 = scmp.eq.s32.totalorder %s33, 1
      %p166 = por %p164, %p165
      %p168 = scmp.ne.s32.totalorder %s153, %s167
      %p169 = scmp.eq.s32.totalorder %s33, 0
      %p170 = por %p168, %p169
      %s172 = sadd.s32 %s171, 1
      %p175 = scmp.eq.s32.totalorder %s27, 1
      %p176 = scmp.ne.s32.totalorder %s171, %s173
      %p177 = scmp.eq.s32.totalorder %s27, 0
      %p178 = por %p176, %p177
      %p179 = scmp.ne.s32.totalorder %s171, %s173
      %p180 = scmp.eq.s32.totalorder %s32, 1
      %p181 = por %p179, %p180
      %p182 = scmp.ne.s32.totalorder %s173, %s174
      %p183 = scmp.eq.s32.totalorder %s32, 0
      %p184 = por %p182, %p183
      %p185 = scmp.ne.s32.totalorder %s173, %s174
      %p186 = scmp.eq.s32.totalorder %s33, 1
      %p187 = por %p185, %p186
      %p189 = scmp.ne.s32.totalorder %s174, %s188
      %p190 = scmp.eq.s32.totalorder %s33, 0
      %p191 = por %p189, %p190
      %s193 = sadd.s32 %s192, 1
      %p196 = scmp.eq.s32.totalorder %s27, 1
      %p197 = scmp.ne.s32.totalorder %s192, %s194
      %p198 = scmp.eq.s32.totalorder %s27, 0
      %p199 = por %p197, %p198
      %p200 = scmp.ne.s32.totalorder %s192, %s194
      %p201 = scmp.eq.s32.totalorder %s32, 1
      %p202 = por %p200, %p201
      %p203 = scmp.ne.s32.totalorder %s194, %s195
      %p204 = scmp.eq.s32.totalorder %s32, 0
      %p205 = por %p203, %p204
      %p206 = scmp.ne.s32.totalorder %s194, %s195
      %p207 = scmp.eq.s32.totalorder %s33, 1
      %p208 = por %p206, %p207
      %p210 = scmp.ne.s32.totalorder %s195, %s209
      %p211 = scmp.eq.s32.totalorder %s33, 0
      %p212 = por %p210, %p211
      %s214 = sadd.s32 %s213, 1
      %p217 = scmp.eq.s32.totalorder %s27, 1
      %p218 = scmp.ne.s32.totalorder %s213, %s215
      %p219 = scmp.eq.s32.totalorder %s27, 0
      %p220 = por %p218, %p219
      %p221 = scmp.ne.s32.totalorder %s213, %s215
      %p222 = scmp.eq.s32.totalorder %s32, 1
      %p223 = por %p221, %p222
      %p224 = scmp.ne.s32.totalorder %s215, %s216
      %p225 = scmp.eq.s32.totalorder %s32, 0
      %p226 = por %p224, %p225
      %p227 = scmp.ne.s32.totalorder %s215, %s216
      %p228 = scmp.eq.s32.totalorder %s33, 1
      %p229 = por %p227, %p228
      %p231 = scmp.ne.s32.totalorder %s216, %s230
      %p232 = scmp.eq.s32.totalorder %s33, 0
      %p233 = por %p231, %p232
      %s235 = sadd.s32 %s234, 1
      %p238 = scmp.eq.s32.totalorder %s27, 1
      %p239 = scmp.ne.s32.totalorder %s234, %s236
      %p240 = scmp.eq.s32.totalorder %s27, 0
      %p241 = por %p239, %p240
      %p242 = scmp.ne.s32.totalorder %s234, %s236
      %p243 = scmp.eq.s32.totalorder %s32, 1
      %p244 = por %p242, %p243
      %p245 = scmp.ne.s32.totalorder %s236, %s237
      %p246 = scmp.eq.s32.totalorder %s32, 0
      %p247 = por %p245, %p246
      %p248 = scmp.ne.s32.totalorder %s236, %s237
      %p249 = scmp.eq.s32.totalorder %s33, 1
      %p250 = por %p248, %p249
      %p252 = scmp.ne.s32.totalorder %s237, %s251
      %p253 = scmp.eq.s32.totalorder %s33, 0
      %p254 = por %p252, %p253
      %s256 = sadd.s32 %s255, 1
      %p259 = scmp.eq.s32.totalorder %s27, 1
      %p260 = scmp.ne.s32.totalorder %s255, %s257
      %p261 = scmp.eq.s32.totalorder %s27, 0
      %p262 = por %p260, %p261
      %p263 = scmp.ne.s32.totalorder %s255, %s257
      %p264 = scmp.eq.s32.totalorder %s32, 1
      %p265 = por %p263, %p264
      %p266 = scmp.ne.s32.totalorder %s257, %s258
      %p267 = scmp.eq.s32.totalorder %s32, 0
      %p268 = por %p266, %p267
      %p269 = scmp.ne.s32.totalorder %s257, %s258
      %p270 = scmp.eq.s32.totalorder %s33, 1
      %p271 = por %p269, %p270
      %p273 = scmp.ne.s32.totalorder %s258, %s272
      %p274 = scmp.eq.s32.totalorder %s33, 0
      %p275 = por %p273, %p274
      %s277 = sadd.s32 %s276, 1
      %p280 = scmp.eq.s32.totalorder %s27, 1
      %p281 = scmp.ne.s32.totalorder %s276, %s278
      %p282 = scmp.eq.s32.totalorder %s27, 0
      %p283 = por %p281, %p282
      %p284 = scmp.ne.s32.totalorder %s276, %s278
      %p285 = scmp.eq.s32.totalorder %s32, 1
      %p286 = por %p284, %p285
      %p287 = scmp.ne.s32.totalorder %s278, %s279
      %p288 = scmp.eq.s32.totalorder %s32, 0
      %p289 = por %p287, %p288
      %p290 = scmp.ne.s32.totalorder %s278, %s279
      %p291 = scmp.eq.s32.totalorder %s33, 1
      %p292 = por %p290, %p291
      %p294 = scmp.ne.s32.totalorder %s279, %s293
      %p295 = scmp.eq.s32.totalorder %s33, 0
      %p296 = por %p294, %p295
      %s298 = sadd.s32 %s297, 1
      %p301 = scmp.eq.s32.totalorder %s27, 1
      %p302 = scmp.ne.s32.totalorder %s297, %s299
      %p303 = scmp.eq.s32.totalorder %s27, 0
      %p304 = por %p302, %p303
      %p305 = scmp.ne.s32.totalorder %s297, %s299
      %p306 = scmp.eq.s32.totalorder %s32, 1
      %p307 = por %p305, %p306
      %p308 = scmp.ne.s32.totalorder %s299, %s300
      %p309 = scmp.eq.s32.totalorder %s32, 0
      %p310 = por %p308, %p309
      %p311 = scmp.ne.s32.totalorder %s299, %s300
      %p312 = scmp.eq.s32.totalorder %s33, 1
      %p313 = por %p311, %p312
      %p315 = scmp.ne.s32.totalorder %s300, %s314
      %p316 = scmp.eq.s32.totalorder %s33, 0
      %p317 = por %p315, %p316
      %s319 = sadd.s32 %s318, 1
      %p322 = scmp.eq.s32.totalorder %s27, 1
      %p323 = scmp.ne.s32.totalorder %s318, %s320
      %p324 = scmp.eq.s32.totalorder %s27, 0
      %p325 = por %p323, %p324
      %p326 = scmp.ne.s32.totalorder %s318, %s320
      %p327 = scmp.eq.s32.totalorder %s32, 1
      %p328 = por %p326, %p327
      %p329 = scmp.ne.s32.totalorder %s320, %s321
      %p330 = scmp.eq.s32.totalorder %s32, 0
      %p331 = por %p329, %p330
      %p332 = scmp.ne.s32.totalorder %s320, %s321
      %p333 = scmp.eq.s32.totalorder %s33, 1
      %p334 = por %p332, %p333
      %p336 = scmp.ne.s32.totalorder %s321, %s335
      %p337 = scmp.eq.s32.totalorder %s33, 0
      %p338 = por %p336, %p337
      %s340 = sadd.s32 %s339, 1
      %p343 = scmp.eq.s32.totalorder %s27, 1
      %p344 = scmp.ne.s32.totalorder %s339, %s341
      %p345 = scmp.eq.s32.totalorder %s27, 0
      %p346 = por %p344, %p345
      %p347 = scmp.ne.s32.totalorder %s339, %s341
      %p348 = scmp.eq.s32.totalorder %s32, 1
      %p349 = por %p347, %p348
      %p350 = scmp.ne.s32.totalorder %s341, %s342
      %p351 = scmp.eq.s32.totalorder %s32, 0
      %p352 = por %p350, %p351
      %p353 = scmp.ne.s32.totalorder %s341, %s342
      %p354 = scmp.eq.s32.totalorder %s33, 1
      %p355 = por %p353, %p354
      %p357 = scmp.ne.s32.totalorder %s342, %s356
      %p358 = scmp.eq.s32.totalorder %s33, 0
      %p359 = por %p357, %p358
      %s361 = sadd.s32 %s360, 1
      %p364 = scmp.eq.s32.totalorder %s27, 1
      %p365 = scmp.ne.s32.totalorder %s360, %s362
      %p366 = scmp.eq.s32.totalorder %s27, 0
      %p367 = por %p365, %p366
      %p368 = scmp.ne.s32.totalorder %s360, %s362
      %p369 = scmp.eq.s32.totalorder %s32, 1
      %p370 = por %p368, %p369
      %p371 = scmp.ne.s32.totalorder %s362, %s363
      %p372 = scmp.eq.s32.totalorder %s32, 0
      %p373 = por %p371, %p372
      %p374 = scmp.ne.s32.totalorder %s362, %s363
      %p375 = scmp.eq.s32.totalorder %s33, 1
      %p376 = por %p374, %p375
      %p378 = scmp.ne.s32.totalorder %s363, %s377
      %p379 = scmp.eq.s32.totalorder %s33, 0
      %p380 = por %p378, %p379
      %s382 = sadd.s32 %s381, 1
      %p385 = scmp.eq.s32.totalorder %s27, 1
      %p386 = scmp.ne.s32.totalorder %s381, %s383
      %p387 = scmp.eq.s32.totalorder %s27, 0
      %p388 = por %p386, %p387
      %p389 = scmp.ne.s32.totalorder %s381, %s383
      %p390 = scmp.eq.s32.totalorder %s32, 1
      %p391 = por %p389, %p390
      %p392 = scmp.ne.s32.totalorder %s383, %s384
      %p393 = scmp.eq.s32.totalorder %s32, 0
      %p394 = por %p392, %p393
      %p395 = scmp.ne.s32.totalorder %s383, %s384
      %p396 = scmp.eq.s32.totalorder %s33, 1
      %p397 = por %p395, %p396
      %p399 = scmp.ne.s32.totalorder %s384, %s398
      %p400 = scmp.eq.s32.totalorder %s33, 0
      %p401 = por %p399, %p400
      %s403 = sadd.s32 %s402, 1
      %p406 = scmp.eq.s32.totalorder %s27, 1
      %p407 = scmp.ne.s32.totalorder %s402, %s404
      %p408 = scmp.eq.s32.totalorder %s27, 0
      %p409 = por %p407, %p408
      %p410 = scmp.ne.s32.totalorder %s402, %s404
      %p411 = scmp.eq.s32.totalorder %s32, 1
      %p412 = por %p410, %p411
      %p413 = scmp.ne.s32.totalorder %s404, %s405
      %p414 = scmp.eq.s32.totalorder %s32, 0
      %p415 = por %p413, %p414
      %p416 = scmp.ne.s32.totalorder %s404, %s405
      %p417 = scmp.eq.s32.totalorder %s33, 1
      %p418 = por %p416, %p417
      %p420 = scmp.ne.s32.totalorder %s405, %s419
      %p421 = scmp.eq.s32.totalorder %s33, 0
      %p422 = por %p420, %p421
      %s423 = ssub.s32 %s27, %s34
      %p424 = scmp.eq.s32.totalorder %s423, 0
      %s426 = sadd.s32 %s425, 1
      %s427 = scalar_select %p424, %s425, %s426
      %p430 = pneg %p424
      %p431 = scmp.eq.s32.totalorder %s27, 1
      %p432 = por %p430, %p431
      %p433 = scmp.ne.s32.totalorder %s425, %s428
      %p434 = scmp.eq.s32.totalorder %s27, 0
      %p435 = por %p433, %p434
      %p436 = scmp.ne.s32.totalorder %s425, %s428
      %p437 = scmp.eq.s32.totalorder %s32, 1
      %p438 = por %p436, %p437
      %p439 = scmp.ne.s32.totalorder %s428, %s429
      %p440 = scmp.eq.s32.totalorder %s32, 0
      %p441 = por %p439, %p440
      %p442 = scmp.ne.s32.totalorder %s428, %s429
      %p443 = scmp.eq.s32.totalorder %s33, 1
      %p444 = por %p442, %p443
      %p446 = scmp.ne.s32.totalorder %s429, %s445
      %p447 = scmp.eq.s32.totalorder %s33, 0
      %p448 = por %p446, %p447
      %p449 = scmp.le.s32.totalorder 1, %s27
      %p450 = scmp.lt.s32.totalorder %s27, 3
      %p451 = pnand %p449, %p450
      %p452 = pneg %p451
      // Predicated region
      $region9: #{tpu_custom_call.1} parent=5 // pred_check
        _
      $region10: #{tpu_custom_call.1} parent=5 // pred_check_branch
        %454 = sbr.rel (%p451) target = $region12
      $region11: #{tpu_custom_call.1} parent=5 // pred_region
        %s455 = ssub.s32 %s27, 1
        // Predicated region
        $region13: #{tpu_custom_call.1} parent=11 // pred_check
          %p456 = pneg %p100
        $region14: #{tpu_custom_call.1} parent=11 // pred_check_branch
          %458 = sbr.rel (%p456) target = $region16
        $region15: #{tpu_custom_call.1} parent=11 // pred_region
          _
        $region16: #{tpu_custom_call.1} parent=11 // pred_fallthru
          _
        // Predicated region
        $region17: #{tpu_custom_call.1} parent=11 // pred_check
          %p459 = pneg %p121
        $region18: #{tpu_custom_call.1} parent=11 // pred_check_branch
          %461 = sbr.rel (%p459) target = $region20
        $region19: #{tpu_custom_call.1} parent=11 // pred_region
          _
        $region20: #{tpu_custom_call.1} parent=11 // pred_fallthru
          _
        // Predicated region
        $region21: #{tpu_custom_call.1} parent=11 // pred_check
          %p462 = pneg %p142
        $region22: #{tpu_custom_call.1} parent=11 // pred_check_branch
          %464 = sbr.rel (%p462) target = $region24
        $region23: #{tpu_custom_call.1} parent=11 // pred_region
          _
        $region24: #{tpu_custom_call.1} parent=11 // pred_fallthru
          _
        // Predicated region
        $region25: #{tpu_custom_call.1} parent=11 // pred_check
          %p465 = pneg %p163
        $region26: #{tpu_custom_call.1} parent=11 // pred_check_branch
          %467 = sbr.rel (%p465) target = $region28
        $region27: #{tpu_custom_call.1} parent=11 // pred_region
          _
        $region28: #{tpu_custom_call.1} parent=11 // pred_fallthru
          _
        // Predicated region
        $region29: #{tpu_custom_call.1} parent=11 // pred_check
          %p468 = pneg %p184
        $region30: #{tpu_custom_call.1} parent=11 // pred_check_branch
          %470 = sbr.rel (%p468) target = $region32
        $region31: #{tpu_custom_call.1} parent=11 // pred_region
          _
        $region32: #{tpu_custom_call.1} parent=11 // pred_fallthru
          _
        // Predicated region
        $region33: #{tpu_custom_call.1} parent=11 // pred_check
          %p471 = pneg %p205
        $region34: #{tpu_custom_call.1} parent=11 // pred_check_branch
          %473 = sbr.rel (%p471) target = $region36
        $region35: #{tpu_custom_call.1} parent=11 // pred_region
          _
        $region36: #{tpu_custom_call.1} parent=11 // pred_fallthru
          _
        // Predicated region
        $region37: #{tpu_custom_call.1} parent=11 // pred_check
          %p474 = pneg %p226
        $region38: #{tpu_custom_call.1} parent=11 // pred_check_branch
          %476 = sbr.rel (%p474) target = $region40
        $region39: #{tpu_custom_call.1} parent=11 // pred_region
          _
        $region40: #{tpu_custom_call.1} parent=11 // pred_fallthru
          _
        // Predicated region
        $region41: #{tpu_custom_call.1} parent=11 // pred_check
          %p477 = pneg %p247
        $region42: #{tpu_custom_call.1} parent=11 // pred_check_branch
          %479 = sbr.rel (%p477) target = $region44
        $region43: #{tpu_custom_call.1} parent=11 // pred_region
          _
        $region44: #{tpu_custom_call.1} parent=11 // pred_fallthru
          _
        // Predicated region
        $region45: #{tpu_custom_call.1} parent=11 // pred_check
          %p480 = pneg %p268
        $region46: #{tpu_custom_call.1} parent=11 // pred_check_branch
          %482 = sbr.rel (%p480) target = $region48
        $region47: #{tpu_custom_call.1} parent=11 // pred_region
          _
        $region48: #{tpu_custom_call.1} parent=11 // pred_fallthru
          _
        // Predicated region
        $region49: #{tpu_custom_call.1} parent=11 // pred_check
          %p483 = pneg %p289
        $region50: #{tpu_custom_call.1} parent=11 // pred_check_branch
          %485 = sbr.rel (%p483) target = $region52
        $region51: #{tpu_custom_call.1} parent=11 // pred_region
          _
        $region52: #{tpu_custom_call.1} parent=11 // pred_fallthru
          _
        // Predicated region
        $region53: #{tpu_custom_call.1} parent=11 // pred_check
          %p486 = pneg %p310
        $region54: #{tpu_custom_call.1} parent=11 // pred_check_branch
          %488 = sbr.rel (%p486) target = $region56
        $region55: #{tpu_custom_call.1} parent=11 // pred_region
          _
        $region56: #{tpu_custom_call.1} parent=11 // pred_fallthru
          _
        // Predicated region
        $region57: #{tpu_custom_call.1} parent=11 // pred_check
          %p489 = pneg %p331
        $region58: #{tpu_custom_call.1} parent=11 // pred_check_branch
          %491 = sbr.rel (%p489) target = $region60
        $region59: #{tpu_custom_call.1} parent=11 // pred_region
          _
        $region60: #{tpu_custom_call.1} parent=11 // pred_fallthru
          _
        // Predicated region
        $region61: #{tpu_custom_call.1} parent=11 // pred_check
          %p492 = pneg %p352
        $region62: #{tpu_custom_call.1} parent=11 // pred_check_branch
          %494 = sbr.rel (%p492) target = $region64
        $region63: #{tpu_custom_call.1} parent=11 // pred_region
          _
        $region64: #{tpu_custom_call.1} parent=11 // pred_fallthru
          _
        // Predicated region
        $region65: #{tpu_custom_call.1} parent=11 // pred_check
          %p495 = pneg %p373
        $region66: #{tpu_custom_call.1} parent=11 // pred_check_branch
          %497 = sbr.rel (%p495) target = $region68
        $region67: #{tpu_custom_call.1} parent=11 // pred_region
          _
        $region68: #{tpu_custom_call.1} parent=11 // pred_fallthru
          _
        // Predicated region
        $region69: #{tpu_custom_call.1} parent=11 // pred_check
          %p498 = pneg %p394
        $region70: #{tpu_custom_call.1} parent=11 // pred_check_branch
          %500 = sbr.rel (%p498) target = $region72
        $region71: #{tpu_custom_call.1} parent=11 // pred_region
          _
        $region72: #{tpu_custom_call.1} parent=11 // pred_fallthru
          _
        // Predicated region
        $region73: #{tpu_custom_call.1} parent=11 // pred_check
          %p501 = pneg %p415
        $region74: #{tpu_custom_call.1} parent=11 // pred_check_branch
          %503 = sbr.rel (%p501) target = $region76
        $region75: #{tpu_custom_call.1} parent=11 // pred_region
          _
        $region76: #{tpu_custom_call.1} parent=11 // pred_fallthru
          _
      $region12: #{tpu_custom_call.1} parent=5 // pred_fallthru
        _
      %p504 = scmp.lt.s32.totalorder %s27, 2
      // Predicated region
      $region77: #{tpu_custom_call.1} parent=5 // pred_check
        %p505 = pneg %p504
      $region78: #{tpu_custom_call.1} parent=5 // pred_check_branch
        %507 = sbr.rel (%p505) target = $region80
      $region79: #{tpu_custom_call.1} parent=5 // pred_region
        // Predicated region
        $region81: #{tpu_custom_call.1} parent=79 // pred_check
          %p508 = pneg %p47
        $region82: #{tpu_custom_call.1} parent=79 // pred_check_branch
          %510 = sbr.rel (%p508) target = $region84
        $region83: #{tpu_custom_call.1} parent=79 // pred_region
          %p511 = scmp.lt.s32.totalorder %s27, 1
          %s512 = scalar_select %p511, %s27, 1
          %s513 = scalar_lea.vmem %s0, %s512
        $region84: #{tpu_custom_call.1} parent=79 // pred_fallthru
          _
        // Predicated region
        $region85: #{tpu_custom_call.1} parent=79 // pred_check
          %p514 = pneg %p73
        $region86: #{tpu_custom_call.1} parent=79 // pred_check_branch
          %516 = sbr.rel (%p514) target = $region88
        $region87: #{tpu_custom_call.1} parent=79 // pred_region
          %p517 = scmp.lt.s32.totalorder %s27, 1
          %s518 = scalar_select %p517, %s27, 1
          %s519 = smul.addr %s518, 8
          %s520 = scalar_lea.vmem %s1, %s519
        $region88: #{tpu_custom_call.1} parent=79 // pred_fallthru
          _
      $region80: #{tpu_custom_call.1} parent=5 // pred_fallthru
        _
      %p521 = scmp.le.s32.totalorder 1, %s27
      %p522 = scmp.lt.s32.totalorder %s27, 3
      %p523 = pnand %p521, %p522
      %p524 = pneg %p523
      // Predicated region
      $region89: #{tpu_custom_call.1} parent=5 // pred_check
        _
      $region90: #{tpu_custom_call.1} parent=5 // pred_check_branch
        %526 = sbr.rel (%p523) target = $region92
      $region91: #{tpu_custom_call.1} parent=5 // pred_region
        %s527 = ssub.s32 %s27, 1
        %p528 = scmp.lt.s32.totalorder %s32, 1
        %s529 = scalar_select %p528, %s32, 1
        %s530 = scalar_lea.vmem %s0, %s529
        %p531 = pneg %p53
        %p532 = pneg %p50
        %p533 = scmp.lt.s32.totalorder %s32, 1
        %s534 = scalar_select %p533, %s32, 1
        %s535 = smul.addr %s534, 8
        %s536 = scalar_lea.vmem %s1, %s535
        %p537 = pneg %p79
        %p538 = pneg %p76
        %p539 = pneg %p100
        %p540 = pneg %p97
        %p541 = pneg %p121
        %p542 = pneg %p118
        %p543 = pneg %p142
        %p544 = pneg %p139
        %p545 = pneg %p163
        %p546 = pneg %p160
        %p547 = pneg %p184
        %p548 = pneg %p181
        %p549 = pneg %p205
        %p550 = pneg %p202
        %p551 = pneg %p226
        %p552 = pneg %p223
        %p553 = pneg %p247
        %p554 = pneg %p244
        %p555 = pneg %p268
        %p556 = pneg %p265
        %p557 = pneg %p289
        %p558 = pneg %p286
        %p559 = pneg %p310
        %p560 = pneg %p307
        %p561 = pneg %p331
        %p562 = pneg %p328
        %p563 = pneg %p352
        %p564 = pneg %p349
        %p565 = pneg %p373
        %p566 = pneg %p370
        %p567 = pneg %p394
        %p568 = pneg %p391
        %p569 = pneg %p415
        %p570 = pneg %p412
        %p571 = pneg %p441
        %p572 = pneg %p438
        %s573 = sand.u32 %s428, 1
        %s574 = scalar_lea.sflag [#allocation3], %s573
        %s575 = sand.u32 %s428, 1
        %s576 = smul.addr %s575, 8
        %s577 = scalar_lea.vmem [#allocation2], %s576
        %p578 = scmp.lt.s32.totalorder %s32, 1
        %s579 = scalar_select %p578, %s32, 1
        %s580 = scalar_lea.vmem %s0, %s579
        %p581 = scmp.lt.s32.totalorder %s32, 1
        %s582 = scalar_select %p581, %s32, 1
        %s583 = smul.addr %s582, 8
        %s584 = scalar_lea.vmem %s1, %s583
        %v585 = vld [vmem:[%s584] sm:$0xff]
        %v586 = vld [vmem:[%s2] sm:$0xff]
        %v587 = vld [vmem:[%s2 + $0x8] sm:$0xff]
        %v588 = vld [vmem:[%s2 + $0x10] sm:$0xff]
        %v589 = vld [vmem:[%s2 + $0x18] sm:$0xff]
        %v590 = vld [vmem:[%s2 + $0x20] sm:$0xff]
        %v591 = vld [vmem:[%s2 + $0x28] sm:$0xff]
        %v592 = vld [vmem:[%s2 + $0x30] sm:$0xff]
        %v593 = vld [vmem:[%s2 + $0x38] sm:$0xff]
        %v594 = vld [vmem:[%s2 + $0x40] sm:$0xff]
        %v595 = vld [vmem:[%s2 + $0x48] sm:$0xff]
        %v596 = vld [vmem:[%s2 + $0x50] sm:$0xff]
        %v597 = vld [vmem:[%s2 + $0x58] sm:$0xff]
        %v598 = vld [vmem:[%s2 + $0x60] sm:$0xff]
        %v599 = vld [vmem:[%s2 + $0x68] sm:$0xff]
        %v600 = vld [vmem:[%s2 + $0x70] sm:$0xff]
        %v601 = vld [vmem:[%s2 + $0x78] sm:$0xff]
        %v602 = vld [vmem:[%s3] sm:$0x1]
        %v603 = vld [vmem:[%s3 + $0x1] sm:$0x1]
        %v604 = vld [vmem:[%s3 + $0x2] sm:$0x1]
        %v605 = vld [vmem:[%s3 + $0x3] sm:$0x1]
        %v610 = vlaneseq
        %v611 = vshrl.u32 %v610, 7
        %v612 = vsub.s32 0, %v611
        %v613 = vrot.slane %v602, %v612
        %v614 = vlaneseq
        %v615 = vshrl.u32 %v614, 7
        %v616 = vsub.s32 0, %v615
        %v617 = vrot.slane %v603, %v616
        %v618 = vlaneseq
        %v619 = vshrl.u32 %v618, 7
        %v620 = vsub.s32 0, %v619
        %v621 = vrot.slane %v604, %v620
        %v622 = vlaneseq
        %v623 = vshrl.u32 %v622, 7
        %v624 = vsub.s32 0, %v623
        %v625 = vrot.slane %v605, %v624
        %vm630 = vcmask 261120
        %v632 = vsel %vm630, %v585, 0
        %634 = vmatprep.subr.mxu0 0.0
        %635 = vmatpush1.msra.mxu0 0.0
        %636 = vmatprep.subr.mxu0 0.0
        %637 = vmatpush1.msra.mxu0 0.0
        %638 = vmatprep.subr.mxu0 0.0
        %639 = vmatpush1.msra.mxu0 0.0
        %640 = vmatprep.subr.mxu0 0.0
        %641 = vmatpush1.msra.mxu0 0.0
        %642 = vmatprep.subr.mxu0 0.0
        %643 = vmatpush1.msra.mxu0 0.0
        %644 = vmatprep.subr.mxu0 0.0
        %645 = vmatpush1.msra.mxu0 0.0
        %646 = vmatprep.subr.mxu0 0.0
        %647 = vmatpush1.msra.mxu0 0.0
        %648 = vmatprep.subr.mxu0 0.0
        %649 = vmatpush1.msra.mxu0 0.0
        %650 = vmatprep.subr.mxu0 0.0
        %651 = vmatpush1.msra.mxu0 0.0
        %652 = vmatprep.subr.mxu0 0.0
        %653 = vmatpush1.msra.mxu0 0.0
        %654 = vmatprep.subr.mxu0 0.0
        %655 = vmatpush1.msra.mxu0 0.0
        %656 = vmatprep.subr.mxu0 0.0
        %657 = vmatpush1.msra.mxu0 0.0
        %658 = vmatprep.subr.mxu0 0.0
        %659 = vmatpush1.msra.mxu0 %v589
        %660 = vmatprep.subr.mxu0 0.0
        %661 = vmatpush1.msra.mxu0 %v588
        %662 = vmatprep.subr.mxu0 0.0
        %663 = vmatpush1.msra.mxu0 %v587
        %664 = vmatprep.subr.mxu0 0.0
        %665 = vmatpush1.msra.mxu0 %v586
        %666 = vmatprep.subr.mxu0 0.0
        %667 = vmatpush2.msra.mxu0 0.0
        %668 = vmatprep.subr.mxu0 0.0
        %669 = vmatpush2.msra.mxu0 0.0
        %670 = vmatprep.subr.mxu0 0.0
        %671 = vmatpush2.msra.mxu0 0.0
        %672 = vmatprep.subr.mxu0 0.0
        %673 = vmatpush2.msra.mxu0 0.0
        %674 = vmatprep.subr.mxu0 0.0
        %675 = vmatpush2.msra.mxu0 0.0
        %676 = vmatprep.subr.mxu0 0.0
        %677 = vmatpush2.msra.mxu0 0.0
        %678 = vmatprep.subr.mxu0 0.0
        %679 = vmatpush2.msra.mxu0 0.0
        %680 = vmatprep.subr.mxu0 0.0
        %681 = vmatpush2.msra.mxu0 0.0
        %682 = vmatprep.subr.mxu0 0.0
        %683 = vmatpush2.msra.mxu0 0.0
        %684 = vmatprep.subr.mxu0 0.0
        %685 = vmatpush2.msra.mxu0 0.0
        %686 = vmatprep.subr.mxu0 0.0
        %687 = vmatpush2.msra.mxu0 0.0
        %688 = vmatprep.subr.mxu0 0.0
        %689 = vmatpush2.msra.mxu0 0.0
        %690 = vmatprep.subr.mxu0 0.0
        %691 = vmatpush2.msra.mxu0 0.0
        %692 = vmatprep.subr.mxu0 0.0
        %693 = vmatpush2.msra.mxu0 0.0
        %694 = vmatprep.subr.mxu0 0.0
        %695 = vmatpush2.msra.mxu0 0.0
        %696 = vmatprep.subr.mxu0 0.0
        %697 = vmatpush2.msra.mxu0 0.0
        %698 = vmatprep.mubr.f32.mxu0 0.0
        %699 = vmatmul.mubr.f32.gmra.mxu0 %v632
        %v700 = vpop.f32.mrf.mxu0
        %v701 = vadd.f32 %v613, %v700
        %v702 = vpop.f32.mrf.mxu0
        %703 = vdwg.mxu0
        %704 = vmatprep.subr.mxu0 0.0
        %705 = vmatpush1.msra.mxu0 0.0
        %706 = vmatprep.subr.mxu0 0.0
        %707 = vmatpush1.msra.mxu0 0.0
        %708 = vmatprep.subr.mxu0 0.0
        %709 = vmatpush1.msra.mxu0 0.0
        %710 = vmatprep.subr.mxu0 0.0
        %711 = vmatpush1.msra.mxu0 0.0
        %712 = vmatprep.subr.mxu0 0.0
        %713 = vmatpush1.msra.mxu0 0.0
        %714 = vmatprep.subr.mxu0 0.0
        %715 = vmatpush1.msra.mxu0 0.0
        %716 = vmatprep.subr.mxu0 0.0
        %717 = vmatpush1.msra.mxu0 0.0
        %718 = vmatprep.subr.mxu0 0.0
        %719 = vmatpush1.msra.mxu0 0.0
        %720 = vmatprep.subr.mxu0 0.0
        %721 = vmatpush1.msra.mxu0 0.0
        %722 = vmatprep.subr.mxu0 0.0
        %723 = vmatpush1.msra.mxu0 0.0
        %724 = vmatprep.subr.mxu0 0.0
        %725 = vmatpush1.msra.mxu0 0.0
        %726 = vmatprep.subr.mxu0 0.0
        %727 = vmatpush1.msra.mxu0 0.0
        %728 = vmatprep.subr.mxu0 0.0
        %729 = vmatpush1.msra.mxu0 %v593
        %730 = vmatprep.subr.mxu0 0.0
        %731 = vmatpush1.msra.mxu0 %v592
        %732 = vmatprep.subr.mxu0 0.0
        %733 = vmatpush1.msra.mxu0 %v591
        %734 = vmatprep.subr.mxu0 0.0
        %735 = vmatpush1.msra.mxu0 %v590
        %736 = vmatprep.subr.mxu0 0.0
        %737 = vmatpush2.msra.mxu0 0.0
        %738 = vmatprep.subr.mxu0 0.0
        %739 = vmatpush2.msra.mxu0 0.0
        %740 = vmatprep.subr.mxu0 0.0
        %741 = vmatpush2.msra.mxu0 0.0
        %742 = vmatprep.subr.mxu0 0.0
        %743 = vmatpush2.msra.mxu0 0.0
        %744 = vmatprep.subr.mxu0 0.0
        %745 = vmatpush2.msra.mxu0 0.0
        %746 = vmatprep.subr.mxu0 0.0
        %747 = vmatpush2.msra.mxu0 0.0
        %748 = vmatprep.subr.mxu0 0.0
        %749 = vmatpush2.msra.mxu0 0.0
        %750 = vmatprep.subr.mxu0 0.0
        %751 = vmatpush2.msra.mxu0 0.0
        %752 = vmatprep.subr.mxu0 0.0
        %753 = vmatpush2.msra.mxu0 0.0
        %754 = vmatprep.subr.mxu0 0.0
        %755 = vmatpush2.msra.mxu0 0.0
        %756 = vmatprep.subr.mxu0 0.0
        %757 = vmatpush2.msra.mxu0 0.0
        %758 = vmatprep.subr.mxu0 0.0
        %759 = vmatpush2.msra.mxu0 0.0
        %760 = vmatprep.subr.mxu0 0.0
        %761 = vmatpush2.msra.mxu0 0.0
        %762 = vmatprep.subr.mxu0 0.0
        %763 = vmatpush2.msra.mxu0 0.0
        %764 = vmatprep.subr.mxu0 0.0
        %765 = vmatpush2.msra.mxu0 0.0
        %766 = vmatprep.subr.mxu0 0.0
        %767 = vmatpush2.msra.mxu0 0.0
        %768 = vmatprep.mubr.f32.mxu0 0.0
        %769 = vmatmul.mubr.f32.gmra.mxu0 %v632
        %v770 = vpop.f32.mrf.mxu0
        %v771 = vadd.f32 %v617, %v770
        %v772 = vpop.f32.mrf.mxu0
        %773 = vdwg.mxu0
        %774 = vmatprep.subr.mxu0 0.0
        %775 = vmatpush1.msra.mxu0 0.0
        %776 = vmatprep.subr.mxu0 0.0
        %777 = vmatpush1.msra.mxu0 0.0
        %778 = vmatprep.subr.mxu0 0.0
        %779 = vmatpush1.msra.mxu0 0.0
        %780 = vmatprep.subr.mxu0 0.0
        %781 = vmatpush1.msra.mxu0 0.0
        %782 = vmatprep.subr.mxu0 0.0
        %783 = vmatpush1.msra.mxu0 0.0
        %784 = vmatprep.subr.mxu0 0.0
        %785 = vmatpush1.msra.mxu0 0.0
        %786 = vmatprep.subr.mxu0 0.0
        %787 = vmatpush1.msra.mxu0 0.0
        %788 = vmatprep.subr.mxu0 0.0
        %789 = vmatpush1.msra.mxu0 0.0
        %790 = vmatprep.subr.mxu0 0.0
        %791 = vmatpush1.msra.mxu0 0.0
        %792 = vmatprep.subr.mxu0 0.0
        %793 = vmatpush1.msra.mxu0 0.0
        %794 = vmatprep.subr.mxu0 0.0
        %795 = vmatpush1.msra.mxu0 0.0
        %796 = vmatprep.subr.mxu0 0.0
        %797 = vmatpush1.msra.mxu0 0.0
        %798 = vmatprep.subr.mxu0 0.0
        %799 = vmatpush1.msra.mxu0 %v597
        %800 = vmatprep.subr.mxu0 0.0
        %801 = vmatpush1.msra.mxu0 %v596
        %802 = vmatprep.subr.mxu0 0.0
        %803 = vmatpush1.msra.mxu0 %v595
        %804 = vmatprep.subr.mxu0 0.0
        %805 = vmatpush1.msra.mxu0 %v594
        %806 = vmatprep.subr.mxu0 0.0
        %807 = vmatpush2.msra.mxu0 0.0
        %808 = vmatprep.subr.mxu0 0.0
        %809 = vmatpush2.msra.mxu0 0.0
        %810 = vmatprep.subr.mxu0 0.0
        %811 = vmatpush2.msra.mxu0 0.0
        %812 = vmatprep.subr.mxu0 0.0
        %813 = vmatpush2.msra.mxu0 0.0
        %814 = vmatprep.subr.mxu0 0.0
        %815 = vmatpush2.msra.mxu0 0.0
        %816 = vmatprep.subr.mxu0 0.0
        %817 = vmatpush2.msra.mxu0 0.0
        %818 = vmatprep.subr.mxu0 0.0
        %819 = vmatpush2.msra.mxu0 0.0
        %820 = vmatprep.subr.mxu0 0.0
        %821 = vmatpush2.msra.mxu0 0.0
        %822 = vmatprep.subr.mxu0 0.0
        %823 = vmatpush2.msra.mxu0 0.0
        %824 = vmatprep.subr.mxu0 0.0
        %825 = vmatpush2.msra.mxu0 0.0
        %826 = vmatprep.subr.mxu0 0.0
        %827 = vmatpush2.msra.mxu0 0.0
        %828 = vmatprep.subr.mxu0 0.0
        %829 = vmatpush2.msra.mxu0 0.0
        %830 = vmatprep.subr.mxu0 0.0
        %831 = vmatpush2.msra.mxu0 0.0
        %832 = vmatprep.subr.mxu0 0.0
        %833 = vmatpush2.msra.mxu0 0.0
        %834 = vmatprep.subr.mxu0 0.0
        %835 = vmatpush2.msra.mxu0 0.0
        %836 = vmatprep.subr.mxu0 0.0
        %837 = vmatpush2.msra.mxu0 0.0
        %838 = vmatprep.mubr.f32.mxu0 0.0
        %839 = vmatmul.mubr.f32.gmra.mxu0 %v632
        %v840 = vpop.f32.mrf.mxu0
        %v841 = vadd.f32 %v621, %v840
        %v842 = vpop.f32.mrf.mxu0
        %843 = vdwg.mxu0
        %844 = vmatprep.subr.mxu0 0.0
        %845 = vmatpush1.msra.mxu0 0.0
        %846 = vmatprep.subr.mxu0 0.0
        %847 = vmatpush1.msra.mxu0 0.0
        %848 = vmatprep.subr.mxu0 0.0
        %849 = vmatpush1.msra.mxu0 0.0
        %850 = vmatprep.subr.mxu0 0.0
        %851 = vmatpush1.msra.mxu0 0.0
        %852 = vmatprep.subr.mxu0 0.0
        %853 = vmatpush1.msra.mxu0 0.0
        %854 = vmatprep.subr.mxu0 0.0
        %855 = vmatpush1.msra.mxu0 0.0
        %856 = vmatprep.subr.mxu0 0.0
        %857 = vmatpush1.msra.mxu0 0.0
        %858 = vmatprep.subr.mxu0 0.0
        %859 = vmatpush1.msra.mxu0 0.0
        %860 = vmatprep.subr.mxu0 0.0
        %861 = vmatpush1.msra.mxu0 0.0
        %862 = vmatprep.subr.mxu0 0.0
        %863 = vmatpush1.msra.mxu0 0.0
        %864 = vmatprep.subr.mxu0 0.0
        %865 = vmatpush1.msra.mxu0 0.0
        %866 = vmatprep.subr.mxu0 0.0
        %867 = vmatpush1.msra.mxu0 0.0
        %868 = vmatprep.subr.mxu0 0.0
        %869 = vmatpush1.msra.mxu0 %v601
        %870 = vmatprep.subr.mxu0 0.0
        %871 = vmatpush1.msra.mxu0 %v600
        %872 = vmatprep.subr.mxu0 0.0
        %873 = vmatpush1.msra.mxu0 %v599
        %874 = vmatprep.subr.mxu0 0.0
        %875 = vmatpush1.msra.mxu0 %v598
        %876 = vmatprep.subr.mxu0 0.0
        %877 = vmatpush2.msra.mxu0 0.0
        %878 = vmatprep.subr.mxu0 0.0
        %879 = vmatpush2.msra.mxu0 0.0
        %880 = vmatprep.subr.mxu0 0.0
        %881 = vmatpush2.msra.mxu0 0.0
        %882 = vmatprep.subr.mxu0 0.0
        %883 = vmatpush2.msra.mxu0 0.0
        %884 = vmatprep.subr.mxu0 0.0
        %885 = vmatpush2.msra.mxu0 0.0
        %886 = vmatprep.subr.mxu0 0.0
        %887 = vmatpush2.msra.mxu0 0.0
        %888 = vmatprep.subr.mxu0 0.0
        %889 = vmatpush2.msra.mxu0 0.0
        %890 = vmatprep.subr.mxu0 0.0
        %891 = vmatpush2.msra.mxu0 0.0
        %892 = vmatprep.subr.mxu0 0.0
        %893 = vmatpush2.msra.mxu0 0.0
        %894 = vmatprep.subr.mxu0 0.0
        %895 = vmatpush2.msra.mxu0 0.0
        %896 = vmatprep.subr.mxu0 0.0
        %897 = vmatpush2.msra.mxu0 0.0
        %898 = vmatprep.subr.mxu0 0.0
        %899 = vmatpush2.msra.mxu0 0.0
        %900 = vmatprep.subr.mxu0 0.0
        %901 = vmatpush2.msra.mxu0 0.0
        %902 = vmatprep.subr.mxu0 0.0
        %903 = vmatpush2.msra.mxu0 0.0
        %904 = vmatprep.subr.mxu0 0.0
        %905 = vmatpush2.msra.mxu0 0.0
        %906 = vmatprep.subr.mxu0 0.0
        %907 = vmatpush2.msra.mxu0 0.0
        %908 = vmatprep.mubr.f32.mxu0 0.0
        %909 = vmatmul.mubr.f32.gmra.mxu0 %v632
        %v910 = vpop.f32.mrf.mxu0
        %v911 = vadd.f32 %v625, %v910
        %v912 = vpop.f32.mrf.mxu0
        %913 = vdwg.mxu0
        %v914 = vmul.f32 %v701, 0.35355338
        %v915 = vmul.f32 %v771, 0.35355338
        %v916 = vmul.f32 %v841, 0.35355338
        %v917 = vmul.f32 %v911, 0.35355338
        %v918 = vld [vmem:[%s4] sm:$0xff]
        %v919 = vld [vmem:[%s4 + $0x8] sm:$0xff]
        %v920 = vld [vmem:[%s4 + $0x10] sm:$0xff]
        %v921 = vld [vmem:[%s4 + $0x18] sm:$0xff]
        %v922 = vld [vmem:[%s4 + $0x20] sm:$0xff]
        %v923 = vld [vmem:[%s4 + $0x28] sm:$0xff]
        %v924 = vld [vmem:[%s4 + $0x30] sm:$0xff]
        %v925 = vld [vmem:[%s4 + $0x38] sm:$0xff]
        %v926 = vld [vmem:[%s4 + $0x40] sm:$0xff]
        %v927 = vld [vmem:[%s4 + $0x48] sm:$0xff]
        %v928 = vld [vmem:[%s4 + $0x50] sm:$0xff]
        %v929 = vld [vmem:[%s4 + $0x58] sm:$0xff]
        %v930 = vld [vmem:[%s4 + $0x60] sm:$0xff]
        %v931 = vld [vmem:[%s4 + $0x68] sm:$0xff]
        %v932 = vld [vmem:[%s4 + $0x70] sm:$0xff]
        %v933 = vld [vmem:[%s4 + $0x78] sm:$0xff]
        %v934 = vld [vmem:[%s5] sm:$0x1]
        %v935 = vld [vmem:[%s5 + $0x1] sm:$0x1]
        %v936 = vld [vmem:[%s5 + $0x2] sm:$0x1]
        %v937 = vld [vmem:[%s5 + $0x3] sm:$0x1]
        %v942 = vlaneseq
        %v943 = vshrl.u32 %v942, 7
        %v944 = vsub.s32 0, %v943
        %v945 = vrot.slane %v934, %v944
        %v946 = vlaneseq
        %v947 = vshrl.u32 %v946, 7
        %v948 = vsub.s32 0, %v947
        %v949 = vrot.slane %v935, %v948
        %v950 = vlaneseq
        %v951 = vshrl.u32 %v950, 7
        %v952 = vsub.s32 0, %v951
        %v953 = vrot.slane %v936, %v952
        %v954 = vlaneseq
        %v955 = vshrl.u32 %v954, 7
        %v956 = vsub.s32 0, %v955
        %v957 = vrot.slane %v937, %v956
        %962 = vmatprep.subr.mxu0 0.0
        %963 = vmatpush1.msra.mxu0 0.0
        %964 = vmatprep.subr.mxu0 0.0
        %965 = vmatpush1.msra.mxu0 0.0
        %966 = vmatprep.subr.mxu0 0.0
        %967 = vmatpush1.msra.mxu0 0.0
        %968 = vmatprep.subr.mxu0 0.0
        %969 = vmatpush1.msra.mxu0 0.0
        %970 = vmatprep.subr.mxu0 0.0
        %971 = vmatpush1.msra.mxu0 0.0
        %972 = vmatprep.subr.mxu0 0.0
        %973 = vmatpush1.msra.mxu0 0.0
        %974 = vmatprep.subr.mxu0 0.0
        %975 = vmatpush1.msra.mxu0 0.0
        %976 = vmatprep.subr.mxu0 0.0
        %977 = vmatpush1.msra.mxu0 0.0
        %978 = vmatprep.subr.mxu0 0.0
        %979 = vmatpush1.msra.mxu0 0.0
        %980 = vmatprep.subr.mxu0 0.0
        %981 = vmatpush1.msra.mxu0 0.0
        %982 = vmatprep.subr.mxu0 0.0
        %983 = vmatpush1.msra.mxu0 0.0
        %984 = vmatprep.subr.mxu0 0.0
        %985 = vmatpush1.msra.mxu0 0.0
        %986 = vmatprep.subr.mxu0 0.0
        %987 = vmatpush1.msra.mxu0 %v921
        %988 = vmatprep.subr.mxu0 0.0
        %989 = vmatpush1.msra.mxu0 %v920
        %990 = vmatprep.subr.mxu0 0.0
        %991 = vmatpush1.msra.mxu0 %v919
        %992 = vmatprep.subr.mxu0 0.0
        %993 = vmatpush1.msra.mxu0 %v918
        %994 = vmatprep.subr.mxu0 0.0
        %995 = vmatpush2.msra.mxu0 0.0
        %996 = vmatprep.subr.mxu0 0.0
        %997 = vmatpush2.msra.mxu0 0.0
        %998 = vmatprep.subr.mxu0 0.0
        %999 = vmatpush2.msra.mxu0 0.0
        %1000 = vmatprep.subr.mxu0 0.0
        %1001 = vmatpush2.msra.mxu0 0.0
        %1002 = vmatprep.subr.mxu0 0.0
        %1003 = vmatpush2.msra.mxu0 0.0
        %1004 = vmatprep.subr.mxu0 0.0
        %1005 = vmatpush2.msra.mxu0 0.0
        %1006 = vmatprep.subr.mxu0 0.0
        %1007 = vmatpush2.msra.mxu0 0.0
        %1008 = vmatprep.subr.mxu0 0.0
        %1009 = vmatpush2.msra.mxu0 0.0
        %1010 = vmatprep.subr.mxu0 0.0
        %1011 = vmatpush2.msra.mxu0 0.0
        %1012 = vmatprep.subr.mxu0 0.0
        %1013 = vmatpush2.msra.mxu0 0.0
        %1014 = vmatprep.subr.mxu0 0.0
        %1015 = vmatpush2.msra.mxu0 0.0
        %1016 = vmatprep.subr.mxu0 0.0
        %1017 = vmatpush2.msra.mxu0 0.0
        %1018 = vmatprep.subr.mxu0 0.0
        %1019 = vmatpush2.msra.mxu0 0.0
        %1020 = vmatprep.subr.mxu0 0.0
        %1021 = vmatpush2.msra.mxu0 0.0
        %1022 = vmatprep.subr.mxu0 0.0
        %1023 = vmatpush2.msra.mxu0 0.0
        %1024 = vmatprep.subr.mxu0 0.0
        %1025 = vmatpush2.msra.mxu0 0.0
        %1026 = vmatprep.mubr.f32.mxu0 0.0
        %1027 = vmatmul.mubr.f32.gmra.mxu0 %v632
        %v1028 = vpop.f32.mrf.mxu0
        %v1029 = vadd.f32 %v945, %v1028
        %v1030 = vpop.f32.mrf.mxu0
        %1031 = vdwg.mxu0
        %1032 = vmatprep.subr.mxu0 0.0
        %1033 = vmatpush1.msra.mxu0 0.0
        %1034 = vmatprep.subr.mxu0 0.0
        %1035 = vmatpush1.msra.mxu0 0.0
        %1036 = vmatprep.subr.mxu0 0.0
        %1037 = vmatpush1.msra.mxu0 0.0
        %1038 = vmatprep.subr.mxu0 0.0
        %1039 = vmatpush1.msra.mxu0 0.0
        %1040 = vmatprep.subr.mxu0 0.0
        %1041 = vmatpush1.msra.mxu0 0.0
        %1042 = vmatprep.subr.mxu0 0.0
        %1043 = vmatpush1.msra.mxu0 0.0
        %1044 = vmatprep.subr.mxu0 0.0
        %1045 = vmatpush1.msra.mxu0 0.0
        %1046 = vmatprep.subr.mxu0 0.0
        %1047 = vmatpush1.msra.mxu0 0.0
        %1048 = vmatprep.subr.mxu0 0.0
        %1049 = vmatpush1.msra.mxu0 0.0
        %1050 = vmatprep.subr.mxu0 0.0
        %1051 = vmatpush1.msra.mxu0 0.0
        %1052 = vmatprep.subr.mxu0 0.0
        %1053 = vmatpush1.msra.mxu0 0.0
        %1054 = vmatprep.subr.mxu0 0.0
        %1055 = vmatpush1.msra.mxu0 0.0
        %1056 = vmatprep.subr.mxu0 0.0
        %1057 = vmatpush1.msra.mxu0 %v925
        %1058 = vmatprep.subr.mxu0 0.0
        %1059 = vmatpush1.msra.mxu0 %v924
        %1060 = vmatprep.subr.mxu0 0.0
        %1061 = vmatpush1.msra.mxu0 %v923
        %1062 = vmatprep.subr.mxu0 0.0
        %1063 = vmatpush1.msra.mxu0 %v922
        %1064 = vmatprep.subr.mxu0 0.0
        %1065 = vmatpush2.msra.mxu0 0.0
        %1066 = vmatprep.subr.mxu0 0.0
        %1067 = vmatpush2.msra.mxu0 0.0
        %1068 = vmatprep.subr.mxu0 0.0
        %1069 = vmatpush2.msra.mxu0 0.0
        %1070 = vmatprep.subr.mxu0 0.0
        %1071 = vmatpush2.msra.mxu0 0.0
        %1072 = vmatprep.subr.mxu0 0.0
        %1073 = vmatpush2.msra.mxu0 0.0
        %1074 = vmatprep.subr.mxu0 0.0
        %1075 = vmatpush2.msra.mxu0 0.0
        %1076 = vmatprep.subr.mxu0 0.0
        %1077 = vmatpush2.msra.mxu0 0.0
        %1078 = vmatprep.subr.mxu0 0.0
        %1079 = vmatpush2.msra.mxu0 0.0
        %1080 = vmatprep.subr.mxu0 0.0
        %1081 = vmatpush2.msra.mxu0 0.0
        %1082 = vmatprep.subr.mxu0 0.0
        %1083 = vmatpush2.msra.mxu0 0.0
        %1084 = vmatprep.subr.mxu0 0.0
        %1085 = vmatpush2.msra.mxu0 0.0
        %1086 = vmatprep.subr.mxu0 0.0
        %1087 = vmatpush2.msra.mxu0 0.0
        %1088 = vmatprep.subr.mxu0 0.0
        %1089 = vmatpush2.msra.mxu0 0.0
        %1090 = vmatprep.subr.mxu0 0.0
        %1091 = vmatpush2.msra.mxu0 0.0
        %1092 = vmatprep.subr.mxu0 0.0
        %1093 = vmatpush2.msra.mxu0 0.0
        %1094 = vmatprep.subr.mxu0 0.0
        %1095 = vmatpush2.msra.mxu0 0.0
        %1096 = vmatprep.mubr.f32.mxu0 0.0
        %1097 = vmatmul.mubr.f32.gmra.mxu0 %v632
        %v1098 = vpop.f32.mrf.mxu0
        %v1099 = vadd.f32 %v949, %v1098
        %v1100 = vpop.f32.mrf.mxu0
        %1101 = vdwg.mxu0
        %1102 = vmatprep.subr.mxu0 0.0
        %1103 = vmatpush1.msra.mxu0 0.0
        %1104 = vmatprep.subr.mxu0 0.0
        %1105 = vmatpush1.msra.mxu0 0.0
        %1106 = vmatprep.subr.mxu0 0.0
        %1107 = vmatpush1.msra.mxu0 0.0
        %1108 = vmatprep.subr.mxu0 0.0
        %1109 = vmatpush1.msra.mxu0 0.0
        %1110 = vmatprep.subr.mxu0 0.0
        %1111 = vmatpush1.msra.mxu0 0.0
        %1112 = vmatprep.subr.mxu0 0.0
        %1113 = vmatpush1.msra.mxu0 0.0
        %1114 = vmatprep.subr.mxu0 0.0
        %1115 = vmatpush1.msra.mxu0 0.0
        %1116 = vmatprep.subr.mxu0 0.0
        %1117 = vmatpush1.msra.mxu0 0.0
        %1118 = vmatprep.subr.mxu0 0.0
        %1119 = vmatpush1.msra.mxu0 0.0
        %1120 = vmatprep.subr.mxu0 0.0
        %1121 = vmatpush1.msra.mxu0 0.0
        %1122 = vmatprep.subr.mxu0 0.0
        %1123 = vmatpush1.msra.mxu0 0.0
        %1124 = vmatprep.subr.mxu0 0.0
        %1125 = vmatpush1.msra.mxu0 0.0
        %1126 = vmatprep.subr.mxu0 0.0
        %1127 = vmatpush1.msra.mxu0 %v929
        %1128 = vmatprep.subr.mxu0 0.0
        %1129 = vmatpush1.msra.mxu0 %v928
        %1130 = vmatprep.subr.mxu0 0.0
        %1131 = vmatpush1.msra.mxu0 %v927
        %1132 = vmatprep.subr.mxu0 0.0
        %1133 = vmatpush1.msra.mxu0 %v926
        %1134 = vmatprep.subr.mxu0 0.0
        %1135 = vmatpush2.msra.mxu0 0.0
        %1136 = vmatprep.subr.mxu0 0.0
        %1137 = vmatpush2.msra.mxu0 0.0
        %1138 = vmatprep.subr.mxu0 0.0
        %1139 = vmatpush2.msra.mxu0 0.0
        %1140 = vmatprep.subr.mxu0 0.0
        %1141 = vmatpush2.msra.mxu0 0.0
        %1142 = vmatprep.subr.mxu0 0.0
        %1143 = vmatpush2.msra.mxu0 0.0
        %1144 = vmatprep.subr.mxu0 0.0
        %1145 = vmatpush2.msra.mxu0 0.0
        %1146 = vmatprep.subr.mxu0 0.0
        %1147 = vmatpush2.msra.mxu0 0.0
        %1148 = vmatprep.subr.mxu0 0.0
        %1149 = vmatpush2.msra.mxu0 0.0
        %1150 = vmatprep.subr.mxu0 0.0
        %1151 = vmatpush2.msra.mxu0 0.0
        %1152 = vmatprep.subr.mxu0 0.0
        %1153 = vmatpush2.msra.mxu0 0.0
        %1154 = vmatprep.subr.mxu0 0.0
        %1155 = vmatpush2.msra.mxu0 0.0
        %1156 = vmatprep.subr.mxu0 0.0
        %1157 = vmatpush2.msra.mxu0 0.0
        %1158 = vmatprep.subr.mxu0 0.0
        %1159 = vmatpush2.msra.mxu0 0.0
        %1160 = vmatprep.subr.mxu0 0.0
        %1161 = vmatpush2.msra.mxu0 0.0
        %1162 = vmatprep.subr.mxu0 0.0
        %1163 = vmatpush2.msra.mxu0 0.0
        %1164 = vmatprep.subr.mxu0 0.0
        %1165 = vmatpush2.msra.mxu0 0.0
        %1166 = vmatprep.mubr.f32.mxu0 0.0
        %1167 = vmatmul.mubr.f32.gmra.mxu0 %v632
        %v1168 = vpop.f32.mrf.mxu0
        %v1169 = vadd.f32 %v953, %v1168
        %v1170 = vpop.f32.mrf.mxu0
        %1171 = vdwg.mxu0
        %1172 = vmatprep.subr.mxu0 0.0
        %1173 = vmatpush1.msra.mxu0 0.0
        %1174 = vmatprep.subr.mxu0 0.0
        %1175 = vmatpush1.msra.mxu0 0.0
        %1176 = vmatprep.subr.mxu0 0.0
        %1177 = vmatpush1.msra.mxu0 0.0
        %1178 = vmatprep.subr.mxu0 0.0
        %1179 = vmatpush1.msra.mxu0 0.0
        %1180 = vmatprep.subr.mxu0 0.0
        %1181 = vmatpush1.msra.mxu0 0.0
        %1182 = vmatprep.subr.mxu0 0.0
        %1183 = vmatpush1.msra.mxu0 0.0
        %1184 = vmatprep.subr.mxu0 0.0
        %1185 = vmatpush1.msra.mxu0 0.0
        %1186 = vmatprep.subr.mxu0 0.0
        %1187 = vmatpush1.msra.mxu0 0.0
        %1188 = vmatprep.subr.mxu0 0.0
        %1189 = vmatpush1.msra.mxu0 0.0
        %1190 = vmatprep.subr.mxu0 0.0
        %1191 = vmatpush1.msra.mxu0 0.0
        %1192 = vmatprep.subr.mxu0 0.0
        %1193 = vmatpush1.msra.mxu0 0.0
        %1194 = vmatprep.subr.mxu0 0.0
        %1195 = vmatpush1.msra.mxu0 0.0
        %1196 = vmatprep.subr.mxu0 0.0
        %1197 = vmatpush1.msra.mxu0 %v933
        %1198 = vmatprep.subr.mxu0 0.0
        %1199 = vmatpush1.msra.mxu0 %v932
        %1200 = vmatprep.subr.mxu0 0.0
        %1201 = vmatpush1.msra.mxu0 %v931
        %1202 = vmatprep.subr.mxu0 0.0
        %1203 = vmatpush1.msra.mxu0 %v930
        %1204 = vmatprep.subr.mxu0 0.0
        %1205 = vmatpush2.msra.mxu0 0.0
        %1206 = vmatprep.subr.mxu0 0.0
        %1207 = vmatpush2.msra.mxu0 0.0
        %1208 = vmatprep.subr.mxu0 0.0
        %1209 = vmatpush2.msra.mxu0 0.0
        %1210 = vmatprep.subr.mxu0 0.0
        %1211 = vmatpush2.msra.mxu0 0.0
        %1212 = vmatprep.subr.mxu0 0.0
        %1213 = vmatpush2.msra.mxu0 0.0
        %1214 = vmatprep.subr.mxu0 0.0
        %1215 = vmatpush2.msra.mxu0 0.0
        %1216 = vmatprep.subr.mxu0 0.0
        %1217 = vmatpush2.msra.mxu0 0.0
        %1218 = vmatprep.subr.mxu0 0.0
        %1219 = vmatpush2.msra.mxu0 0.0
        %1220 = vmatprep.subr.mxu0 0.0
        %1221 = vmatpush2.msra.mxu0 0.0
        %1222 = vmatprep.subr.mxu0 0.0
        %1223 = vmatpush2.msra.mxu0 0.0
        %1224 = vmatprep.subr.mxu0 0.0
        %1225 = vmatpush2.msra.mxu0 0.0
        %1226 = vmatprep.subr.mxu0 0.0
        %1227 = vmatpush2.msra.mxu0 0.0
        %1228 = vmatprep.subr.mxu0 0.0
        %1229 = vmatpush2.msra.mxu0 0.0
        %1230 = vmatprep.subr.mxu0 0.0
        %1231 = vmatpush2.msra.mxu0 0.0
        %1232 = vmatprep.subr.mxu0 0.0
        %1233 = vmatpush2.msra.mxu0 0.0
        %1234 = vmatprep.subr.mxu0 0.0
        %1235 = vmatpush2.msra.mxu0 0.0
        %1236 = vmatprep.mubr.f32.mxu0 0.0
        %1237 = vmatmul.mubr.f32.gmra.mxu0 %v632
        %v1238 = vpop.f32.mrf.mxu0
        %v1239 = vadd.f32 %v957, %v1238
        %v1240 = vpop.f32.mrf.mxu0
        %1241 = vdwg.mxu0
        %v1242 = vld [vmem:[%s6] sm:$0xff]
        %v1243 = vld [vmem:[%s6 + $0x8] sm:$0xff]
        %v1244 = vld [vmem:[%s6 + $0x10] sm:$0xff]
        %v1245 = vld [vmem:[%s6 + $0x18] sm:$0xff]
        %v1246 = vld [vmem:[%s6 + $0x20] sm:$0xff]
        %v1247 = vld [vmem:[%s6 + $0x28] sm:$0xff]
        %v1248 = vld [vmem:[%s6 + $0x30] sm:$0xff]
        %v1249 = vld [vmem:[%s6 + $0x38] sm:$0xff]
        %v1250 = vld [vmem:[%s6 + $0x40] sm:$0xff]
        %v1251 = vld [vmem:[%s6 + $0x48] sm:$0xff]
        %v1252 = vld [vmem:[%s6 + $0x50] sm:$0xff]
        %v1253 = vld [vmem:[%s6 + $0x58] sm:$0xff]
        %v1254 = vld [vmem:[%s6 + $0x60] sm:$0xff]
        %v1255 = vld [vmem:[%s6 + $0x68] sm:$0xff]
        %v1256 = vld [vmem:[%s6 + $0x70] sm:$0xff]
        %v1257 = vld [vmem:[%s6 + $0x78] sm:$0xff]
        %v1258 = vld [vmem:[%s7] sm:$0x1]
        %v1259 = vld [vmem:[%s7 + $0x1] sm:$0x1]
        %v1260 = vld [vmem:[%s7 + $0x2] sm:$0x1]
        %v1261 = vld [vmem:[%s7 + $0x3] sm:$0x1]
        %v1266 = vlaneseq
        %v1267 = vshrl.u32 %v1266, 7
        %v1268 = vsub.s32 0, %v1267
        %v1269 = vrot.slane %v1258, %v1268
        %v1270 = vlaneseq
        %v1271 = vshrl.u32 %v1270, 7
        %v1272 = vsub.s32 0, %v1271
        %v1273 = vrot.slane %v1259, %v1272
        %v1274 = vlaneseq
        %v1275 = vshrl.u32 %v1274, 7
        %v1276 = vsub.s32 0, %v1275
        %v1277 = vrot.slane %v1260, %v1276
        %v1278 = vlaneseq
        %v1279 = vshrl.u32 %v1278, 7
        %v1280 = vsub.s32 0, %v1279
        %v1281 = vrot.slane %v1261, %v1280
        %1286 = vmatprep.subr.mxu0 0.0
        %1287 = vmatpush1.msra.mxu0 0.0
        %1288 = vmatprep.subr.mxu0 0.0
        %1289 = vmatpush1.msra.mxu0 0.0
        %1290 = vmatprep.subr.mxu0 0.0
        %1291 = vmatpush1.msra.mxu0 0.0
        %1292 = vmatprep.subr.mxu0 0.0
        %1293 = vmatpush1.msra.mxu0 0.0
        %1294 = vmatprep.subr.mxu0 0.0
        %1295 = vmatpush1.msra.mxu0 0.0
        %1296 = vmatprep.subr.mxu0 0.0
        %1297 = vmatpush1.msra.mxu0 0.0
        %1298 = vmatprep.subr.mxu0 0.0
        %1299 = vmatpush1.msra.mxu0 0.0
        %1300 = vmatprep.subr.mxu0 0.0
        %1301 = vmatpush1.msra.mxu0 0.0
        %1302 = vmatprep.subr.mxu0 0.0
        %1303 = vmatpush1.msra.mxu0 0.0
        %1304 = vmatprep.subr.mxu0 0.0
        %1305 = vmatpush1.msra.mxu0 0.0
        %1306 = vmatprep.subr.mxu0 0.0
        %1307 = vmatpush1.msra.mxu0 0.0
        %1308 = vmatprep.subr.mxu0 0.0
        %1309 = vmatpush1.msra.mxu0 0.0
        %1310 = vmatprep.subr.mxu0 0.0
        %1311 = vmatpush1.msra.mxu0 %v1245
        %1312 = vmatprep.subr.mxu0 0.0
        %1313 = vmatpush1.msra.mxu0 %v1244
        %1314 = vmatprep.subr.mxu0 0.0
        %1315 = vmatpush1.msra.mxu0 %v1243
        %1316 = vmatprep.subr.mxu0 0.0
        %1317 = vmatpush1.msra.mxu0 %v1242
        %1318 = vmatprep.subr.mxu0 0.0
        %1319 = vmatpush2.msra.mxu0 0.0
        %1320 = vmatprep.subr.mxu0 0.0
        %1321 = vmatpush2.msra.mxu0 0.0
        %1322 = vmatprep.subr.mxu0 0.0
        %1323 = vmatpush2.msra.mxu0 0.0
        %1324 = vmatprep.subr.mxu0 0.0
        %1325 = vmatpush2.msra.mxu0 0.0
        %1326 = vmatprep.subr.mxu0 0.0
        %1327 = vmatpush2.msra.mxu0 0.0
        %1328 = vmatprep.subr.mxu0 0.0
        %1329 = vmatpush2.msra.mxu0 0.0
        %1330 = vmatprep.subr.mxu0 0.0
        %1331 = vmatpush2.msra.mxu0 0.0
        %1332 = vmatprep.subr.mxu0 0.0
        %1333 = vmatpush2.msra.mxu0 0.0
        %1334 = vmatprep.subr.mxu0 0.0
        %1335 = vmatpush2.msra.mxu0 0.0
        %1336 = vmatprep.subr.mxu0 0.0
        %1337 = vmatpush2.msra.mxu0 0.0
        %1338 = vmatprep.subr.mxu0 0.0
        %1339 = vmatpush2.msra.mxu0 0.0
        %1340 = vmatprep.subr.mxu0 0.0
        %1341 = vmatpush2.msra.mxu0 0.0
        %1342 = vmatprep.subr.mxu0 0.0
        %1343 = vmatpush2.msra.mxu0 0.0
        %1344 = vmatprep.subr.mxu0 0.0
        %1345 = vmatpush2.msra.mxu0 0.0
        %1346 = vmatprep.subr.mxu0 0.0
        %1347 = vmatpush2.msra.mxu0 0.0
        %1348 = vmatprep.subr.mxu0 0.0
        %1349 = vmatpush2.msra.mxu0 0.0
        %1350 = vmatprep.mubr.f32.mxu0 0.0
        %1351 = vmatmul.mubr.f32.gmra.mxu0 %v632
        %v1352 = vpop.f32.mrf.mxu0
        %v1353 = vadd.f32 %v1269, %v1352
        %v1354 = vpop.f32.mrf.mxu0
        %1355 = vdwg.mxu0
        %1356 = vmatprep.subr.mxu0 0.0
        %1357 = vmatpush1.msra.mxu0 0.0
        %1358 = vmatprep.subr.mxu0 0.0
        %1359 = vmatpush1.msra.mxu0 0.0
        %1360 = vmatprep.subr.mxu0 0.0
        %1361 = vmatpush1.msra.mxu0 0.0
        %1362 = vmatprep.subr.mxu0 0.0
        %1363 = vmatpush1.msra.mxu0 0.0
        %1364 = vmatprep.subr.mxu0 0.0
        %1365 = vmatpush1.msra.mxu0 0.0
        %1366 = vmatprep.subr.mxu0 0.0
        %1367 = vmatpush1.msra.mxu0 0.0
        %1368 = vmatprep.subr.mxu0 0.0
        %1369 = vmatpush1.msra.mxu0 0.0
        %1370 = vmatprep.subr.mxu0 0.0
        %1371 = vmatpush1.msra.mxu0 0.0
        %1372 = vmatprep.subr.mxu0 0.0
        %1373 = vmatpush1.msra.mxu0 0.0
        %1374 = vmatprep.subr.mxu0 0.0
        %1375 = vmatpush1.msra.mxu0 0.0
        %1376 = vmatprep.subr.mxu0 0.0
        %1377 = vmatpush1.msra.mxu0 0.0
        %1378 = vmatprep.subr.mxu0 0.0
        %1379 = vmatpush1.msra.mxu0 0.0
        %1380 = vmatprep.subr.mxu0 0.0
        %1381 = vmatpush1.msra.mxu0 %v1249
        %1382 = vmatprep.subr.mxu0 0.0
        %1383 = vmatpush1.msra.mxu0 %v1248
        %1384 = vmatprep.subr.mxu0 0.0
        %1385 = vmatpush1.msra.mxu0 %v1247
        %1386 = vmatprep.subr.mxu0 0.0
        %1387 = vmatpush1.msra.mxu0 %v1246
        %1388 = vmatprep.subr.mxu0 0.0
        %1389 = vmatpush2.msra.mxu0 0.0
        %1390 = vmatprep.subr.mxu0 0.0
        %1391 = vmatpush2.msra.mxu0 0.0
        %1392 = vmatprep.subr.mxu0 0.0
        %1393 = vmatpush2.msra.mxu0 0.0
        %1394 = vmatprep.subr.mxu0 0.0
        %1395 = vmatpush2.msra.mxu0 0.0
        %1396 = vmatprep.subr.mxu0 0.0
        %1397 = vmatpush2.msra.mxu0 0.0
        %1398 = vmatprep.subr.mxu0 0.0
        %1399 = vmatpush2.msra.mxu0 0.0
        %1400 = vmatprep.subr.mxu0 0.0
        %1401 = vmatpush2.msra.mxu0 0.0
        %1402 = vmatprep.subr.mxu0 0.0
        %1403 = vmatpush2.msra.mxu0 0.0
        %1404 = vmatprep.subr.mxu0 0.0
        %1405 = vmatpush2.msra.mxu0 0.0
        %1406 = vmatprep.subr.mxu0 0.0
        %1407 = vmatpush2.msra.mxu0 0.0
        %1408 = vmatprep.subr.mxu0 0.0
        %1409 = vmatpush2.msra.mxu0 0.0
        %1410 = vmatprep.subr.mxu0 0.0
        %1411 = vmatpush2.msra.mxu0 0.0
        %1412 = vmatprep.subr.mxu0 0.0
        %1413 = vmatpush2.msra.mxu0 0.0
        %1414 = vmatprep.subr.mxu0 0.0
        %1415 = vmatpush2.msra.mxu0 0.0
        %1416 = vmatprep.subr.mxu0 0.0
        %1417 = vmatpush2.msra.mxu0 0.0
        %1418 = vmatprep.subr.mxu0 0.0
        %1419 = vmatpush2.msra.mxu0 0.0
        %1420 = vmatprep.mubr.f32.mxu0 0.0
        %1421 = vmatmul.mubr.f32.gmra.mxu0 %v632
        %v1422 = vpop.f32.mrf.mxu0
        %v1423 = vadd.f32 %v1273, %v1422
        %v1424 = vpop.f32.mrf.mxu0
        %1425 = vdwg.mxu0
        %1426 = vmatprep.subr.mxu0 0.0
        %1427 = vmatpush1.msra.mxu0 0.0
        %1428 = vmatprep.subr.mxu0 0.0
        %1429 = vmatpush1.msra.mxu0 0.0
        %1430 = vmatprep.subr.mxu0 0.0
        %1431 = vmatpush1.msra.mxu0 0.0
        %1432 = vmatprep.subr.mxu0 0.0
        %1433 = vmatpush1.msra.mxu0 0.0
        %1434 = vmatprep.subr.mxu0 0.0
        %1435 = vmatpush1.msra.mxu0 0.0
        %1436 = vmatprep.subr.mxu0 0.0
        %1437 = vmatpush1.msra.mxu0 0.0
        %1438 = vmatprep.subr.mxu0 0.0
        %1439 = vmatpush1.msra.mxu0 0.0
        %1440 = vmatprep.subr.mxu0 0.0
        %1441 = vmatpush1.msra.mxu0 0.0
        %1442 = vmatprep.subr.mxu0 0.0
        %1443 = vmatpush1.msra.mxu0 0.0
        %1444 = vmatprep.subr.mxu0 0.0
        %1445 = vmatpush1.msra.mxu0 0.0
        %1446 = vmatprep.subr.mxu0 0.0
        %1447 = vmatpush1.msra.mxu0 0.0
        %1448 = vmatprep.subr.mxu0 0.0
        %1449 = vmatpush1.msra.mxu0 0.0
        %1450 = vmatprep.subr.mxu0 0.0
        %1451 = vmatpush1.msra.mxu0 %v1253
        %1452 = vmatprep.subr.mxu0 0.0
        %1453 = vmatpush1.msra.mxu0 %v1252
        %1454 = vmatprep.subr.mxu0 0.0
        %1455 = vmatpush1.msra.mxu0 %v1251
        %1456 = vmatprep.subr.mxu0 0.0
        %1457 = vmatpush1.msra.mxu0 %v1250
        %1458 = vmatprep.subr.mxu0 0.0
        %1459 = vmatpush2.msra.mxu0 0.0
        %1460 = vmatprep.subr.mxu0 0.0
        %1461 = vmatpush2.msra.mxu0 0.0
        %1462 = vmatprep.subr.mxu0 0.0
        %1463 = vmatpush2.msra.mxu0 0.0
        %1464 = vmatprep.subr.mxu0 0.0
        %1465 = vmatpush2.msra.mxu0 0.0
        %1466 = vmatprep.subr.mxu0 0.0
        %1467 = vmatpush2.msra.mxu0 0.0
        %1468 = vmatprep.subr.mxu0 0.0
        %1469 = vmatpush2.msra.mxu0 0.0
        %1470 = vmatprep.subr.mxu0 0.0
        %1471 = vmatpush2.msra.mxu0 0.0
        %1472 = vmatprep.subr.mxu0 0.0
        %1473 = vmatpush2.msra.mxu0 0.0
        %1474 = vmatprep.subr.mxu0 0.0
        %1475 = vmatpush2.msra.mxu0 0.0
        %1476 = vmatprep.subr.mxu0 0.0
        %1477 = vmatpush2.msra.mxu0 0.0
        %1478 = vmatprep.subr.mxu0 0.0
        %1479 = vmatpush2.msra.mxu0 0.0
        %1480 = vmatprep.subr.mxu0 0.0
        %1481 = vmatpush2.msra.mxu0 0.0
        %1482 = vmatprep.subr.mxu0 0.0
        %1483 = vmatpush2.msra.mxu0 0.0
        %1484 = vmatprep.subr.mxu0 0.0
        %1485 = vmatpush2.msra.mxu0 0.0
        %1486 = vmatprep.subr.mxu0 0.0
        %1487 = vmatpush2.msra.mxu0 0.0
        %1488 = vmatprep.subr.mxu0 0.0
        %1489 = vmatpush2.msra.mxu0 0.0
        %1490 = vmatprep.mubr.f32.mxu0 0.0
        %1491 = vmatmul.mubr.f32.gmra.mxu0 %v632
        %v1492 = vpop.f32.mrf.mxu0
        %v1493 = vadd.f32 %v1277, %v1492
        %v1494 = vpop.f32.mrf.mxu0
        %1495 = vdwg.mxu0
        %1496 = vmatprep.subr.mxu0 0.0
        %1497 = vmatpush1.msra.mxu0 0.0
        %1498 = vmatprep.subr.mxu0 0.0
        %1499 = vmatpush1.msra.mxu0 0.0
        %1500 = vmatprep.subr.mxu0 0.0
        %1501 = vmatpush1.msra.mxu0 0.0
        %1502 = vmatprep.subr.mxu0 0.0
        %1503 = vmatpush1.msra.mxu0 0.0
        %1504 = vmatprep.subr.mxu0 0.0
        %1505 = vmatpush1.msra.mxu0 0.0
        %1506 = vmatprep.subr.mxu0 0.0
        %1507 = vmatpush1.msra.mxu0 0.0
        %1508 = vmatprep.subr.mxu0 0.0
        %1509 = vmatpush1.msra.mxu0 0.0
        %1510 = vmatprep.subr.mxu0 0.0
        %1511 = vmatpush1.msra.mxu0 0.0
        %1512 = vmatprep.subr.mxu0 0.0
        %1513 = vmatpush1.msra.mxu0 0.0
        %1514 = vmatprep.subr.mxu0 0.0
        %1515 = vmatpush1.msra.mxu0 0.0
        %1516 = vmatprep.subr.mxu0 0.0
        %1517 = vmatpush1.msra.mxu0 0.0
        %1518 = vmatprep.subr.mxu0 0.0
        %1519 = vmatpush1.msra.mxu0 0.0
        %1520 = vmatprep.subr.mxu0 0.0
        %1521 = vmatpush1.msra.mxu0 %v1257
        %1522 = vmatprep.subr.mxu0 0.0
        %1523 = vmatpush1.msra.mxu0 %v1256
        %1524 = vmatprep.subr.mxu0 0.0
        %1525 = vmatpush1.msra.mxu0 %v1255
        %1526 = vmatprep.subr.mxu0 0.0
        %1527 = vmatpush1.msra.mxu0 %v1254
        %1528 = vmatprep.subr.mxu0 0.0
        %1529 = vmatpush2.msra.mxu0 0.0
        %1530 = vmatprep.subr.mxu0 0.0
        %1531 = vmatpush2.msra.mxu0 0.0
        %1532 = vmatprep.subr.mxu0 0.0
        %1533 = vmatpush2.msra.mxu0 0.0
        %1534 = vmatprep.subr.mxu0 0.0
        %1535 = vmatpush2.msra.mxu0 0.0
        %1536 = vmatprep.subr.mxu0 0.0
        %1537 = vmatpush2.msra.mxu0 0.0
        %1538 = vmatprep.subr.mxu0 0.0
        %1539 = vmatpush2.msra.mxu0 0.0
        %1540 = vmatprep.subr.mxu0 0.0
        %1541 = vmatpush2.msra.mxu0 0.0
        %1542 = vmatprep.subr.mxu0 0.0
        %1543 = vmatpush2.msra.mxu0 0.0
        %1544 = vmatprep.subr.mxu0 0.0
        %1545 = vmatpush2.msra.mxu0 0.0
        %1546 = vmatprep.subr.mxu0 0.0
        %1547 = vmatpush2.msra.mxu0 0.0
        %1548 = vmatprep.subr.mxu0 0.0
        %1549 = vmatpush2.msra.mxu0 0.0
        %1550 = vmatprep.subr.mxu0 0.0
        %1551 = vmatpush2.msra.mxu0 0.0
        %1552 = vmatprep.subr.mxu0 0.0
        %1553 = vmatpush2.msra.mxu0 0.0
        %1554 = vmatprep.subr.mxu0 0.0
        %1555 = vmatpush2.msra.mxu0 0.0
        %1556 = vmatprep.subr.mxu0 0.0
        %1557 = vmatpush2.msra.mxu0 0.0
        %1558 = vmatprep.subr.mxu0 0.0
        %1559 = vmatpush2.msra.mxu0 0.0
        %1560 = vmatprep.mubr.f32.mxu0 0.0
        %1561 = vmatmul.mubr.f32.gmra.mxu0 %v632
        %v1562 = vpop.f32.mrf.mxu0
        %v1563 = vadd.f32 %v1281, %v1562
        %v1564 = vpop.f32.mrf.mxu0
        %1565 = vdwg.mxu0
        %v1566 = vld [vmem:[%s580] sm:$0x1]
        %vm1567 = vcmp.eq.s32.totalorder %v1566, 0
        %v1568 = vsel %vm1567, -1e+10, 0.0
        %v1570 = vlaneseq
        %v1571 = vshrl.u32 %v1570, 7
        %v1572 = vsub.s32 0, %v1571
        %v1573 = vrot.slane %v1568, %v1572
        %vm1575 = vcmask 64512
        %v1577 = vsel %vm1575, %v914, 0
        %v1580 = vsel %vm1575, %v1029, 0
        %1582 = vmatprep.subr.mxu0 0.0
        %1583 = vmatpush1.xpose.msra.mxu0 0.0
        %1584 = vmatprep.subr.mxu0 0.0
        %1585 = vmatpush1.xpose.msra.mxu0 0.0
        %1586 = vmatprep.subr.mxu0 0.0
        %1587 = vmatpush1.xpose.msra.mxu0 0.0
        %1588 = vmatprep.subr.mxu0 0.0
        %1589 = vmatpush1.xpose.msra.mxu0 0.0
        %1590 = vmatprep.subr.mxu0 0.0
        %1591 = vmatpush1.xpose.msra.mxu0 0.0
        %1592 = vmatprep.subr.mxu0 0.0
        %1593 = vmatpush1.xpose.msra.mxu0 0.0
        %1594 = vmatprep.subr.mxu0 0.0
        %1595 = vmatpush1.xpose.msra.mxu0 0.0
        %1596 = vmatprep.subr.mxu0 0.0
        %1597 = vmatpush1.xpose.msra.mxu0 0.0
        %1598 = vmatprep.subr.mxu0 0.0
        %1599 = vmatpush1.xpose.msra.mxu0 0.0
        %1600 = vmatprep.subr.mxu0 0.0
        %1601 = vmatpush1.xpose.msra.mxu0 0.0
        %1602 = vmatprep.subr.mxu0 0.0
        %1603 = vmatpush1.xpose.msra.mxu0 0.0
        %1604 = vmatprep.subr.mxu0 0.0
        %1605 = vmatpush1.xpose.msra.mxu0 0.0
        %1606 = vmatprep.subr.mxu0 0.0
        %1607 = vmatpush1.xpose.msra.mxu0 0.0
        %1608 = vmatprep.subr.mxu0 0.0
        %1609 = vmatpush1.xpose.msra.mxu0 0.0
        %1610 = vmatprep.subr.mxu0 0.0
        %1611 = vmatpush1.xpose.msra.mxu0 0.0
        %1612 = vmatprep.subr.mxu0 0.0
        %1613 = vmatpush1.xpose.msra.mxu0 %v1580
        %1614 = vmatprep.subr.mxu0 0.0
        %1615 = vmatpush2.xpose.msra.mxu0 0.0
        %1616 = vmatprep.subr.mxu0 0.0
        %1617 = vmatpush2.xpose.msra.mxu0 0.0
        %1618 = vmatprep.subr.mxu0 0.0
        %1619 = vmatpush2.xpose.msra.mxu0 0.0
        %1620 = vmatprep.subr.mxu0 0.0
        %1621 = vmatpush2.xpose.msra.mxu0 0.0
        %1622 = vmatprep.subr.mxu0 0.0
        %1623 = vmatpush2.xpose.msra.mxu0 0.0
        %1624 = vmatprep.subr.mxu0 0.0
        %1625 = vmatpush2.xpose.msra.mxu0 0.0
        %1626 = vmatprep.subr.mxu0 0.0
        %1627 = vmatpush2.xpose.msra.mxu0 0.0
        %1628 = vmatprep.subr.mxu0 0.0
        %1629 = vmatpush2.xpose.msra.mxu0 0.0
        %1630 = vmatprep.subr.mxu0 0.0
        %1631 = vmatpush2.xpose.msra.mxu0 0.0
        %1632 = vmatprep.subr.mxu0 0.0
        %1633 = vmatpush2.xpose.msra.mxu0 0.0
        %1634 = vmatprep.subr.mxu0 0.0
        %1635 = vmatpush2.xpose.msra.mxu0 0.0
        %1636 = vmatprep.subr.mxu0 0.0
        %1637 = vmatpush2.xpose.msra.mxu0 0.0
        %1638 = vmatprep.subr.mxu0 0.0
        %1639 = vmatpush2.xpose.msra.mxu0 0.0
        %1640 = vmatprep.subr.mxu0 0.0
        %1641 = vmatpush2.xpose.msra.mxu0 0.0
        %1642 = vmatprep.subr.mxu0 0.0
        %1643 = vmatpush2.xpose.msra.mxu0 0.0
        %1644 = vmatprep.subr.mxu0 0.0
        %1645 = vmatpush2.xpose.msra.mxu0 0.0
        %1646 = vmatprep.mubr.f32.mxu0 0.0
        %1647 = vmatmul.mubr.f32.gmra.mxu0 %v1577
        %v1648 = vpop.f32.mrf.mxu0
        %v1649 = vadd.f32 %v1573, %v1648
        %v1650 = vpop.f32.mrf.mxu0
        %1651 = vdwg.mxu0
        %v1653 = vsel %vm1575, %v915, 0
        %v1656 = vsel %vm1575, %v1099, 0
        %1658 = vmatprep.subr.mxu0 0.0
        %1659 = vmatpush1.xpose.msra.mxu0 0.0
        %1660 = vmatprep.subr.mxu0 0.0
        %1661 = vmatpush1.xpose.msra.mxu0 0.0
        %1662 = vmatprep.subr.mxu0 0.0
        %1663 = vmatpush1.xpose.msra.mxu0 0.0
        %1664 = vmatprep.subr.mxu0 0.0
        %1665 = vmatpush1.xpose.msra.mxu0 0.0
        %1666 = vmatprep.subr.mxu0 0.0
        %1667 = vmatpush1.xpose.msra.mxu0 0.0
        %1668 = vmatprep.subr.mxu0 0.0
        %1669 = vmatpush1.xpose.msra.mxu0 0.0
        %1670 = vmatprep.subr.mxu0 0.0
        %1671 = vmatpush1.xpose.msra.mxu0 0.0
        %1672 = vmatprep.subr.mxu0 0.0
        %1673 = vmatpush1.xpose.msra.mxu0 0.0
        %1674 = vmatprep.subr.mxu0 0.0
        %1675 = vmatpush1.xpose.msra.mxu0 0.0
        %1676 = vmatprep.subr.mxu0 0.0
        %1677 = vmatpush1.xpose.msra.mxu0 0.0
        %1678 = vmatprep.subr.mxu0 0.0
        %1679 = vmatpush1.xpose.msra.mxu0 0.0
        %1680 = vmatprep.subr.mxu0 0.0
        %1681 = vmatpush1.xpose.msra.mxu0 0.0
        %1682 = vmatprep.subr.mxu0 0.0
        %1683 = vmatpush1.xpose.msra.mxu0 0.0
        %1684 = vmatprep.subr.mxu0 0.0
        %1685 = vmatpush1.xpose.msra.mxu0 0.0
        %1686 = vmatprep.subr.mxu0 0.0
        %1687 = vmatpush1.xpose.msra.mxu0 0.0
        %1688 = vmatprep.subr.mxu0 0.0
        %1689 = vmatpush1.xpose.msra.mxu0 %v1656
        %1690 = vmatprep.subr.mxu0 0.0
        %1691 = vmatpush2.xpose.msra.mxu0 0.0
        %1692 = vmatprep.subr.mxu0 0.0
        %1693 = vmatpush2.xpose.msra.mxu0 0.0
        %1694 = vmatprep.subr.mxu0 0.0
        %1695 = vmatpush2.xpose.msra.mxu0 0.0
        %1696 = vmatprep.subr.mxu0 0.0
        %1697 = vmatpush2.xpose.msra.mxu0 0.0
        %1698 = vmatprep.subr.mxu0 0.0
        %1699 = vmatpush2.xpose.msra.mxu0 0.0
        %1700 = vmatprep.subr.mxu0 0.0
        %1701 = vmatpush2.xpose.msra.mxu0 0.0
        %1702 = vmatprep.subr.mxu0 0.0
        %1703 = vmatpush2.xpose.msra.mxu0 0.0
        %1704 = vmatprep.subr.mxu0 0.0
        %1705 = vmatpush2.xpose.msra.mxu0 0.0
        %1706 = vmatprep.subr.mxu0 0.0
        %1707 = vmatpush2.xpose.msra.mxu0 0.0
        %1708 = vmatprep.subr.mxu0 0.0
        %1709 = vmatpush2.xpose.msra.mxu0 0.0
        %1710 = vmatprep.subr.mxu0 0.0
        %1711 = vmatpush2.xpose.msra.mxu0 0.0
        %1712 = vmatprep.subr.mxu0 0.0
        %1713 = vmatpush2.xpose.msra.mxu0 0.0
        %1714 = vmatprep.subr.mxu0 0.0
        %1715 = vmatpush2.xpose.msra.mxu0 0.0
        %1716 = vmatprep.subr.mxu0 0.0
        %1717 = vmatpush2.xpose.msra.mxu0 0.0
        %1718 = vmatprep.subr.mxu0 0.0
        %1719 = vmatpush2.xpose.msra.mxu0 0.0
        %1720 = vmatprep.subr.mxu0 0.0
        %1721 = vmatpush2.xpose.msra.mxu0 0.0
        %1722 = vmatprep.mubr.f32.mxu0 0.0
        %1723 = vmatmul.mubr.f32.gmra.mxu0 %v1653
        %v1724 = vpop.f32.mrf.mxu0
        %v1725 = vadd.f32 %v1573, %v1724
        %v1726 = vpop.f32.mrf.mxu0
        %1727 = vdwg.mxu0
        %v1729 = vsel %vm1575, %v916, 0
        %v1732 = vsel %vm1575, %v1169, 0
        %1734 = vmatprep.subr.mxu0 0.0
        %1735 = vmatpush1.xpose.msra.mxu0 0.0
        %1736 = vmatprep.subr.mxu0 0.0
        %1737 = vmatpush1.xpose.msra.mxu0 0.0
        %1738 = vmatprep.subr.mxu0 0.0
        %1739 = vmatpush1.xpose.msra.mxu0 0.0
        %1740 = vmatprep.subr.mxu0 0.0
        %1741 = vmatpush1.xpose.msra.mxu0 0.0
        %1742 = vmatprep.subr.mxu0 0.0
        %1743 = vmatpush1.xpose.msra.mxu0 0.0
        %1744 = vmatprep.subr.mxu0 0.0
        %1745 = vmatpush1.xpose.msra.mxu0 0.0
        %1746 = vmatprep.subr.mxu0 0.0
        %1747 = vmatpush1.xpose.msra.mxu0 0.0
        %1748 = vmatprep.subr.mxu0 0.0
        %1749 = vmatpush1.xpose.msra.mxu0 0.0
        %1750 = vmatprep.subr.mxu0 0.0
        %1751 = vmatpush1.xpose.msra.mxu0 0.0
        %1752 = vmatprep.subr.mxu0 0.0
        %1753 = vmatpush1.xpose.msra.mxu0 0.0
        %1754 = vmatprep.subr.mxu0 0.0
        %1755 = vmatpush1.xpose.msra.mxu0 0.0
        %1756 = vmatprep.subr.mxu0 0.0
        %1757 = vmatpush1.xpose.msra.mxu0 0.0
        %1758 = vmatprep.subr.mxu0 0.0
        %1759 = vmatpush1.xpose.msra.mxu0 0.0
        %1760 = vmatprep.subr.mxu0 0.0
        %1761 = vmatpush1.xpose.msra.mxu0 0.0
        %1762 = vmatprep.subr.mxu0 0.0
        %1763 = vmatpush1.xpose.msra.mxu0 0.0
        %1764 = vmatprep.subr.mxu0 0.0
        %1765 = vmatpush1.xpose.msra.mxu0 %v1732
        %1766 = vmatprep.subr.mxu0 0.0
        %1767 = vmatpush2.xpose.msra.mxu0 0.0
        %1768 = vmatprep.subr.mxu0 0.0
        %1769 = vmatpush2.xpose.msra.mxu0 0.0
        %1770 = vmatprep.subr.mxu0 0.0
        %1771 = vmatpush2.xpose.msra.mxu0 0.0
        %1772 = vmatprep.subr.mxu0 0.0
        %1773 = vmatpush2.xpose.msra.mxu0 0.0
        %1774 = vmatprep.subr.mxu0 0.0
        %1775 = vmatpush2.xpose.msra.mxu0 0.0
        %1776 = vmatprep.subr.mxu0 0.0
        %1777 = vmatpush2.xpose.msra.mxu0 0.0
        %1778 = vmatprep.subr.mxu0 0.0
        %1779 = vmatpush2.xpose.msra.mxu0 0.0
        %1780 = vmatprep.subr.mxu0 0.0
        %1781 = vmatpush2.xpose.msra.mxu0 0.0
        %1782 = vmatprep.subr.mxu0 0.0
        %1783 = vmatpush2.xpose.msra.mxu0 0.0
        %1784 = vmatprep.subr.mxu0 0.0
        %1785 = vmatpush2.xpose.msra.mxu0 0.0
        %1786 = vmatprep.subr.mxu0 0.0
        %1787 = vmatpush2.xpose.msra.mxu0 0.0
        %1788 = vmatprep.subr.mxu0 0.0
        %1789 = vmatpush2.xpose.msra.mxu0 0.0
        %1790 = vmatprep.subr.mxu0 0.0
        %1791 = vmatpush2.xpose.msra.mxu0 0.0
        %1792 = vmatprep.subr.mxu0 0.0
        %1793 = vmatpush2.xpose.msra.mxu0 0.0
        %1794 = vmatprep.subr.mxu0 0.0
        %1795 = vmatpush2.xpose.msra.mxu0 0.0
        %1796 = vmatprep.subr.mxu0 0.0
        %1797 = vmatpush2.xpose.msra.mxu0 0.0
        %1798 = vmatprep.mubr.f32.mxu0 0.0
        %1799 = vmatmul.mubr.f32.gmra.mxu0 %v1729
        %v1800 = vpop.f32.mrf.mxu0
        %v1801 = vadd.f32 %v1573, %v1800
        %v1802 = vpop.f32.mrf.mxu0
        %1803 = vdwg.mxu0
        %v1805 = vsel %vm1575, %v917, 0
        %v1808 = vsel %vm1575, %v1239, 0
        %1810 = vmatprep.subr.mxu0 0.0
        %1811 = vmatpush1.xpose.msra.mxu0 0.0
        %1812 = vmatprep.subr.mxu0 0.0
        %1813 = vmatpush1.xpose.msra.mxu0 0.0
        %1814 = vmatprep.subr.mxu0 0.0
        %1815 = vmatpush1.xpose.msra.mxu0 0.0
        %1816 = vmatprep.subr.mxu0 0.0
        %1817 = vmatpush1.xpose.msra.mxu0 0.0
        %1818 = vmatprep.subr.mxu0 0.0
        %1819 = vmatpush1.xpose.msra.mxu0 0.0
        %1820 = vmatprep.subr.mxu0 0.0
        %1821 = vmatpush1.xpose.msra.mxu0 0.0
        %1822 = vmatprep.subr.mxu0 0.0
        %1823 = vmatpush1.xpose.msra.mxu0 0.0
        %1824 = vmatprep.subr.mxu0 0.0
        %1825 = vmatpush1.xpose.msra.mxu0 0.0
        %1826 = vmatprep.subr.mxu0 0.0
        %1827 = vmatpush1.xpose.msra.mxu0 0.0
        %1828 = vmatprep.subr.mxu0 0.0
        %1829 = vmatpush1.xpose.msra.mxu0 0.0
        %1830 = vmatprep.subr.mxu0 0.0
        %1831 = vmatpush1.xpose.msra.mxu0 0.0
        %1832 = vmatprep.subr.mxu0 0.0
        %1833 = vmatpush1.xpose.msra.mxu0 0.0
        %1834 = vmatprep.subr.mxu0 0.0
        %1835 = vmatpush1.xpose.msra.mxu0 0.0
        %1836 = vmatprep.subr.mxu0 0.0
        %1837 = vmatpush1.xpose.msra.mxu0 0.0
        %1838 = vmatprep.subr.mxu0 0.0
        %1839 = vmatpush1.xpose.msra.mxu0 0.0
        %1840 = vmatprep.subr.mxu0 0.0
        %1841 = vmatpush1.xpose.msra.mxu0 %v1808
        %1842 = vmatprep.subr.mxu0 0.0
        %1843 = vmatpush2.xpose.msra.mxu0 0.0
        %1844 = vmatprep.subr.mxu0 0.0
        %1845 = vmatpush2.xpose.msra.mxu0 0.0
        %1846 = vmatprep.subr.mxu0 0.0
        %1847 = vmatpush2.xpose.msra.mxu0 0.0
        %1848 = vmatprep.subr.mxu0 0.0
        %1849 = vmatpush2.xpose.msra.mxu0 0.0
        %1850 = vmatprep.subr.mxu0 0.0
        %1851 = vmatpush2.xpose.msra.mxu0 0.0
        %1852 = vmatprep.subr.mxu0 0.0
        %1853 = vmatpush2.xpose.msra.mxu0 0.0
        %1854 = vmatprep.subr.mxu0 0.0
        %1855 = vmatpush2.xpose.msra.mxu0 0.0
        %1856 = vmatprep.subr.mxu0 0.0
        %1857 = vmatpush2.xpose.msra.mxu0 0.0
        %1858 = vmatprep.subr.mxu0 0.0
        %1859 = vmatpush2.xpose.msra.mxu0 0.0
        %1860 = vmatprep.subr.mxu0 0.0
        %1861 = vmatpush2.xpose.msra.mxu0 0.0
        %1862 = vmatprep.subr.mxu0 0.0
        %1863 = vmatpush2.xpose.msra.mxu0 0.0
        %1864 = vmatprep.subr.mxu0 0.0
        %1865 = vmatpush2.xpose.msra.mxu0 0.0
        %1866 = vmatprep.subr.mxu0 0.0
        %1867 = vmatpush2.xpose.msra.mxu0 0.0
        %1868 = vmatprep.subr.mxu0 0.0
        %1869 = vmatpush2.xpose.msra.mxu0 0.0
        %1870 = vmatprep.subr.mxu0 0.0
        %1871 = vmatpush2.xpose.msra.mxu0 0.0
        %1872 = vmatprep.subr.mxu0 0.0
        %1873 = vmatpush2.xpose.msra.mxu0 0.0
        %1874 = vmatprep.mubr.f32.mxu0 0.0
        %1875 = vmatmul.mubr.f32.gmra.mxu0 %v1805
        %v1876 = vpop.f32.mrf.mxu0
        %v1877 = vadd.f32 %v1573, %v1876
        %v1878 = vpop.f32.mrf.mxu0
        %1879 = vdwg.mxu0
        %v1880 = vsel %vm1575, %v1649, -inf
        %1881 = vmax.xlane.f32.xlu0 %v1880
        %v1882 = vpop.xlane.xlu0 %1881
        %v1883 = vsel %vm1575, %v1725, -inf
        %1884 = vmax.xlane.f32.xlu0 %v1883
        %v1885 = vpop.xlane.xlu0 %1884
        %v1886 = vsel %vm1575, %v1801, -inf
        %1887 = vmax.xlane.f32.xlu0 %v1886
        %v1888 = vpop.xlane.xlu0 %1887
        %v1889 = vsel %vm1575, %v1877, -inf
        %1890 = vmax.xlane.f32.xlu0 %v1889
        %v1891 = vpop.xlane.xlu0 %1890
        %v1892 = vsub.f32 %v1649, %v1882
        %v1893 = vsub.f32 %v1725, %v1885
        %v1894 = vsub.f32 %v1801, %v1888
        %v1895 = vsub.f32 %v1877, %v1891
        %v1896 = vmul.f32 %v1892, 1.442695
        %v1897 = vpow.pop %v1896
        %v1898 = vmul.f32 %v1893, 1.442695
        %v1899 = vpow.pop %v1898
        %v1900 = vmul.f32 %v1894, 1.442695
        %v1901 = vpow.pop %v1900
        %v1902 = vmul.f32 %v1895, 1.442695
        %v1903 = vpow.pop %v1902
        %v1904 = vsel %vm1575, %v1897, 0.0
        %1905 = vadd.xlane.f32.xlu0 %v1904
        %v1906 = vpop.xlane.xlu0 %1905
        %v1907 = vsel %vm1575, %v1899, 0.0
        %1908 = vadd.xlane.f32.xlu0 %v1907
        %v1909 = vpop.xlane.xlu0 %1908
        %v1910 = vsel %vm1575, %v1901, 0.0
        %1911 = vadd.xlane.f32.xlu0 %v1910
        %v1912 = vpop.xlane.xlu0 %1911
        %v1913 = vsel %vm1575, %v1903, 0.0
        %1914 = vadd.xlane.f32.xlu0 %v1913
        %v1915 = vpop.xlane.xlu0 %1914
        %v1916 = vrcp.pop %v1906
        %v1917 = vrcp.pop %v1909
        %v1918 = vrcp.pop %v1912
        %v1919 = vrcp.pop %v1915
        %v1920 = vmul.f32 %v1897, %v1916
        %v1921 = vmul.f32 %v1899, %v1917
        %v1922 = vmul.f32 %v1901, %v1918
        %v1923 = vmul.f32 %v1903, %v1919
        %v1925 = vsel %vm1575, %v1920, 0
        %1927 = vmatprep.subr.mxu0 0.0
        %1928 = vmatpush1.msra.mxu0 0.0
        %1929 = vmatprep.subr.mxu0 0.0
        %1930 = vmatpush1.msra.mxu0 0.0
        %1931 = vmatprep.subr.mxu0 0.0
        %1932 = vmatpush1.msra.mxu0 0.0
        %1933 = vmatprep.subr.mxu0 0.0
        %1934 = vmatpush1.msra.mxu0 0.0
        %1935 = vmatprep.subr.mxu0 0.0
        %1936 = vmatpush1.msra.mxu0 0.0
        %1937 = vmatprep.subr.mxu0 0.0
        %1938 = vmatpush1.msra.mxu0 0.0
        %1939 = vmatprep.subr.mxu0 0.0
        %1940 = vmatpush1.msra.mxu0 0.0
        %1941 = vmatprep.subr.mxu0 0.0
        %1942 = vmatpush1.msra.mxu0 0.0
        %1943 = vmatprep.subr.mxu0 0.0
        %1944 = vmatpush1.msra.mxu0 0.0
        %1945 = vmatprep.subr.mxu0 0.0
        %1946 = vmatpush1.msra.mxu0 0.0
        %1947 = vmatprep.subr.mxu0 0.0
        %1948 = vmatpush1.msra.mxu0 0.0
        %1949 = vmatprep.subr.mxu0 0.0
        %1950 = vmatpush1.msra.mxu0 0.0
        %1951 = vmatprep.subr.mxu0 0.0
        %1952 = vmatpush1.msra.mxu0 0.0
        %1953 = vmatprep.subr.mxu0 0.0
        %1954 = vmatpush1.msra.mxu0 0.0
        %1955 = vmatprep.subr.mxu0 0.0
        %1956 = vmatpush1.msra.mxu0 0.0
        %1957 = vmatprep.subr.mxu0 0.0
        %1958 = vmatpush1.msra.mxu0 %v1353
        %1959 = vmatprep.subr.mxu0 0.0
        %1960 = vmatpush2.msra.mxu0 0.0
        %1961 = vmatprep.subr.mxu0 0.0
        %1962 = vmatpush2.msra.mxu0 0.0
        %1963 = vmatprep.subr.mxu0 0.0
        %1964 = vmatpush2.msra.mxu0 0.0
        %1965 = vmatprep.subr.mxu0 0.0
        %1966 = vmatpush2.msra.mxu0 0.0
        %1967 = vmatprep.subr.mxu0 0.0
        %1968 = vmatpush2.msra.mxu0 0.0
        %1969 = vmatprep.subr.mxu0 0.0
        %1970 = vmatpush2.msra.mxu0 0.0
        %1971 = vmatprep.subr.mxu0 0.0
        %1972 = vmatpush2.msra.mxu0 0.0
        %1973 = vmatprep.subr.mxu0 0.0
        %1974 = vmatpush2.msra.mxu0 0.0
        %1975 = vmatprep.subr.mxu0 0.0
        %1976 = vmatpush2.msra.mxu0 0.0
        %1977 = vmatprep.subr.mxu0 0.0
        %1978 = vmatpush2.msra.mxu0 0.0
        %1979 = vmatprep.subr.mxu0 0.0
        %1980 = vmatpush2.msra.mxu0 0.0
        %1981 = vmatprep.subr.mxu0 0.0
        %1982 = vmatpush2.msra.mxu0 0.0
        %1983 = vmatprep.subr.mxu0 0.0
        %1984 = vmatpush2.msra.mxu0 0.0
        %1985 = vmatprep.subr.mxu0 0.0
        %1986 = vmatpush2.msra.mxu0 0.0
        %1987 = vmatprep.subr.mxu0 0.0
        %1988 = vmatpush2.msra.mxu0 0.0
        %1989 = vmatprep.subr.mxu0 0.0
        %1990 = vmatpush2.msra.mxu0 0.0
        %1991 = vmatprep.mubr.f32.mxu0 0.0
        %1992 = vmatmul.mubr.f32.gmra.mxu0 %v1925
        %v1993 = vpop.f32.mrf.mxu0
        %v1994 = vadd.f32 0.0, %v1993
        %v1995 = vpop.f32.mrf.mxu0
        %1996 = vdwg.mxu0
        %v1998 = vsel %vm1575, %v1921, 0
        %2000 = vmatprep.subr.mxu0 0.0
        %2001 = vmatpush1.msra.mxu0 0.0
        %2002 = vmatprep.subr.mxu0 0.0
        %2003 = vmatpush1.msra.mxu0 0.0
        %2004 = vmatprep.subr.mxu0 0.0
        %2005 = vmatpush1.msra.mxu0 0.0
        %2006 = vmatprep.subr.mxu0 0.0
        %2007 = vmatpush1.msra.mxu0 0.0
        %2008 = vmatprep.subr.mxu0 0.0
        %2009 = vmatpush1.msra.mxu0 0.0
        %2010 = vmatprep.subr.mxu0 0.0
        %2011 = vmatpush1.msra.mxu0 0.0
        %2012 = vmatprep.subr.mxu0 0.0
        %2013 = vmatpush1.msra.mxu0 0.0
        %2014 = vmatprep.subr.mxu0 0.0
        %2015 = vmatpush1.msra.mxu0 0.0
        %2016 = vmatprep.subr.mxu0 0.0
        %2017 = vmatpush1.msra.mxu0 0.0
        %2018 = vmatprep.subr.mxu0 0.0
        %2019 = vmatpush1.msra.mxu0 0.0
        %2020 = vmatprep.subr.mxu0 0.0
        %2021 = vmatpush1.msra.mxu0 0.0
        %2022 = vmatprep.subr.mxu0 0.0
        %2023 = vmatpush1.msra.mxu0 0.0
        %2024 = vmatprep.subr.mxu0 0.0
        %2025 = vmatpush1.msra.mxu0 0.0
        %2026 = vmatprep.subr.mxu0 0.0
        %2027 = vmatpush1.msra.mxu0 0.0
        %2028 = vmatprep.subr.mxu0 0.0
        %2029 = vmatpush1.msra.mxu0 0.0
        %2030 = vmatprep.subr.mxu0 0.0
        %2031 = vmatpush1.msra.mxu0 %v1423
        %2032 = vmatprep.subr.mxu0 0.0
        %2033 = vmatpush2.msra.mxu0 0.0
        %2034 = vmatprep.subr.mxu0 0.0
        %2035 = vmatpush2.msra.mxu0 0.0
        %2036 = vmatprep.subr.mxu0 0.0
        %2037 = vmatpush2.msra.mxu0 0.0
        %2038 = vmatprep.subr.mxu0 0.0
        %2039 = vmatpush2.msra.mxu0 0.0
        %2040 = vmatprep.subr.mxu0 0.0
        %2041 = vmatpush2.msra.mxu0 0.0
        %2042 = vmatprep.subr.mxu0 0.0
        %2043 = vmatpush2.msra.mxu0 0.0
        %2044 = vmatprep.subr.mxu0 0.0
        %2045 = vmatpush2.msra.mxu0 0.0
        %2046 = vmatprep.subr.mxu0 0.0
        %2047 = vmatpush2.msra.mxu0 0.0
        %2048 = vmatprep.subr.mxu0 0.0
        %2049 = vmatpush2.msra.mxu0 0.0
        %2050 = vmatprep.subr.mxu0 0.0
        %2051 = vmatpush2.msra.mxu0 0.0
        %2052 = vmatprep.subr.mxu0 0.0
        %2053 = vmatpush2.msra.mxu0 0.0
        %2054 = vmatprep.subr.mxu0 0.0
        %2055 = vmatpush2.msra.mxu0 0.0
        %2056 = vmatprep.subr.mxu0 0.0
        %2057 = vmatpush2.msra.mxu0 0.0
        %2058 = vmatprep.subr.mxu0 0.0
        %2059 = vmatpush2.msra.mxu0 0.0
        %2060 = vmatprep.subr.mxu0 0.0
        %2061 = vmatpush2.msra.mxu0 0.0
        %2062 = vmatprep.subr.mxu0 0.0
        %2063 = vmatpush2.msra.mxu0 0.0
        %2064 = vmatprep.mubr.f32.mxu0 0.0
        %2065 = vmatmul.mubr.f32.gmra.mxu0 %v1998
        %v2066 = vpop.f32.mrf.mxu0
        %v2067 = vadd.f32 0.0, %v2066
        %v2068 = vpop.f32.mrf.mxu0
        %2069 = vdwg.mxu0
        %v2071 = vsel %vm1575, %v1922, 0
        %2073 = vmatprep.subr.mxu0 0.0
        %2074 = vmatpush1.msra.mxu0 0.0
        %2075 = vmatprep.subr.mxu0 0.0
        %2076 = vmatpush1.msra.mxu0 0.0
        %2077 = vmatprep.subr.mxu0 0.0
        %2078 = vmatpush1.msra.mxu0 0.0
        %2079 = vmatprep.subr.mxu0 0.0
        %2080 = vmatpush1.msra.mxu0 0.0
        %2081 = vmatprep.subr.mxu0 0.0
        %2082 = vmatpush1.msra.mxu0 0.0
        %2083 = vmatprep.subr.mxu0 0.0
        %2084 = vmatpush1.msra.mxu0 0.0
        %2085 = vmatprep.subr.mxu0 0.0
        %2086 = vmatpush1.msra.mxu0 0.0
        %2087 = vmatprep.subr.mxu0 0.0
        %2088 = vmatpush1.msra.mxu0 0.0
        %2089 = vmatprep.subr.mxu0 0.0
        %2090 = vmatpush1.msra.mxu0 0.0
        %2091 = vmatprep.subr.mxu0 0.0
        %2092 = vmatpush1.msra.mxu0 0.0
        %2093 = vmatprep.subr.mxu0 0.0
        %2094 = vmatpush1.msra.mxu0 0.0
        %2095 = vmatprep.subr.mxu0 0.0
        %2096 = vmatpush1.msra.mxu0 0.0
        %2097 = vmatprep.subr.mxu0 0.0
        %2098 = vmatpush1.msra.mxu0 0.0
        %2099 = vmatprep.subr.mxu0 0.0
        %2100 = vmatpush1.msra.mxu0 0.0
        %2101 = vmatprep.subr.mxu0 0.0
        %2102 = vmatpush1.msra.mxu0 0.0
        %2103 = vmatprep.subr.mxu0 0.0
        %2104 = vmatpush1.msra.mxu0 %v1493
        %2105 = vmatprep.subr.mxu0 0.0
        %2106 = vmatpush2.msra.mxu0 0.0
        %2107 = vmatprep.subr.mxu0 0.0
        %2108 = vmatpush2.msra.mxu0 0.0
        %2109 = vmatprep.subr.mxu0 0.0
        %2110 = vmatpush2.msra.mxu0 0.0
        %2111 = vmatprep.subr.mxu0 0.0
        %2112 = vmatpush2.msra.mxu0 0.0
        %2113 = vmatprep.subr.mxu0 0.0
        %2114 = vmatpush2.msra.mxu0 0.0
        %2115 = vmatprep.subr.mxu0 0.0
        %2116 = vmatpush2.msra.mxu0 0.0
        %2117 = vmatprep.subr.mxu0 0.0
        %2118 = vmatpush2.msra.mxu0 0.0
        %2119 = vmatprep.subr.mxu0 0.0
        %2120 = vmatpush2.msra.mxu0 0.0
        %2121 = vmatprep.subr.mxu0 0.0
        %2122 = vmatpush2.msra.mxu0 0.0
        %2123 = vmatprep.subr.mxu0 0.0
        %2124 = vmatpush2.msra.mxu0 0.0
        %2125 = vmatprep.subr.mxu0 0.0
        %2126 = vmatpush2.msra.mxu0 0.0
        %2127 = vmatprep.subr.mxu0 0.0
        %2128 = vmatpush2.msra.mxu0 0.0
        %2129 = vmatprep.subr.mxu0 0.0
        %2130 = vmatpush2.msra.mxu0 0.0
        %2131 = vmatprep.subr.mxu0 0.0
        %2132 = vmatpush2.msra.mxu0 0.0
        %2133 = vmatprep.subr.mxu0 0.0
        %2134 = vmatpush2.msra.mxu0 0.0
        %2135 = vmatprep.subr.mxu0 0.0
        %2136 = vmatpush2.msra.mxu0 0.0
        %2137 = vmatprep.mubr.f32.mxu0 0.0
        %2138 = vmatmul.mubr.f32.gmra.mxu0 %v2071
        %v2139 = vpop.f32.mrf.mxu0
        %v2140 = vadd.f32 0.0, %v2139
        %v2141 = vpop.f32.mrf.mxu0
        %2142 = vdwg.mxu0
        %v2144 = vsel %vm1575, %v1923, 0
        %2146 = vmatprep.subr.mxu0 0.0
        %2147 = vmatpush1.msra.mxu0 0.0
        %2148 = vmatprep.subr.mxu0 0.0
        %2149 = vmatpush1.msra.mxu0 0.0
        %2150 = vmatprep.subr.mxu0 0.0
        %2151 = vmatpush1.msra.mxu0 0.0
        %2152 = vmatprep.subr.mxu0 0.0
        %2153 = vmatpush1.msra.mxu0 0.0
        %2154 = vmatprep.subr.mxu0 0.0
        %2155 = vmatpush1.msra.mxu0 0.0
        %2156 = vmatprep.subr.mxu0 0.0
        %2157 = vmatpush1.msra.mxu0 0.0
        %2158 = vmatprep.subr.mxu0 0.0
        %2159 = vmatpush1.msra.mxu0 0.0
        %2160 = vmatprep.subr.mxu0 0.0
        %2161 = vmatpush1.msra.mxu0 0.0
        %2162 = vmatprep.subr.mxu0 0.0
        %2163 = vmatpush1.msra.mxu0 0.0
        %2164 = vmatprep.subr.mxu0 0.0
        %2165 = vmatpush1.msra.mxu0 0.0
        %2166 = vmatprep.subr.mxu0 0.0
        %2167 = vmatpush1.msra.mxu0 0.0
        %2168 = vmatprep.subr.mxu0 0.0
        %2169 = vmatpush1.msra.mxu0 0.0
        %2170 = vmatprep.subr.mxu0 0.0
        %2171 = vmatpush1.msra.mxu0 0.0
        %2172 = vmatprep.subr.mxu0 0.0
        %2173 = vmatpush1.msra.mxu0 0.0
        %2174 = vmatprep.subr.mxu0 0.0
        %2175 = vmatpush1.msra.mxu0 0.0
        %2176 = vmatprep.subr.mxu0 0.0
        %2177 = vmatpush1.msra.mxu0 %v1563
        %2178 = vmatprep.subr.mxu0 0.0
        %2179 = vmatpush2.msra.mxu0 0.0
        %2180 = vmatprep.subr.mxu0 0.0
        %2181 = vmatpush2.msra.mxu0 0.0
        %2182 = vmatprep.subr.mxu0 0.0
        %2183 = vmatpush2.msra.mxu0 0.0
        %2184 = vmatprep.subr.mxu0 0.0
        %2185 = vmatpush2.msra.mxu0 0.0
        %2186 = vmatprep.subr.mxu0 0.0
        %2187 = vmatpush2.msra.mxu0 0.0
        %2188 = vmatprep.subr.mxu0 0.0
        %2189 = vmatpush2.msra.mxu0 0.0
        %2190 = vmatprep.subr.mxu0 0.0
        %2191 = vmatpush2.msra.mxu0 0.0
        %2192 = vmatprep.subr.mxu0 0.0
        %2193 = vmatpush2.msra.mxu0 0.0
        %2194 = vmatprep.subr.mxu0 0.0
        %2195 = vmatpush2.msra.mxu0 0.0
        %2196 = vmatprep.subr.mxu0 0.0
        %2197 = vmatpush2.msra.mxu0 0.0
        %2198 = vmatprep.subr.mxu0 0.0
        %2199 = vmatpush2.msra.mxu0 0.0
        %2200 = vmatprep.subr.mxu0 0.0
        %2201 = vmatpush2.msra.mxu0 0.0
        %2202 = vmatprep.subr.mxu0 0.0
        %2203 = vmatpush2.msra.mxu0 0.0
        %2204 = vmatprep.subr.mxu0 0.0
        %2205 = vmatpush2.msra.mxu0 0.0
        %2206 = vmatprep.subr.mxu0 0.0
        %2207 = vmatpush2.msra.mxu0 0.0
        %2208 = vmatprep.subr.mxu0 0.0
        %2209 = vmatpush2.msra.mxu0 0.0
        %2210 = vmatprep.mubr.f32.mxu0 0.0
        %2211 = vmatmul.mubr.f32.gmra.mxu0 %v2144
        %v2212 = vpop.f32.mrf.mxu0
        %v2213 = vadd.f32 0.0, %v2212
        %v2214 = vpop.f32.mrf.mxu0
        %2215 = vdwg.mxu0
        %v2216 = vld [vmem:[%s8] sm:$0xff]
        %v2217 = vld [vmem:[%s8 + $0x8] sm:$0xff]
        %v2218 = vld [vmem:[%s8 + $0x10] sm:$0xff]
        %v2219 = vld [vmem:[%s8 + $0x18] sm:$0xff]
        %v2221 = vsel %vm1575, %v1994, 0
        %2223 = vmatprep.subr.mxu0 0.0
        %2224 = vmatpush1.msra.mxu0 0.0
        %2225 = vmatprep.subr.mxu0 0.0
        %2226 = vmatpush1.msra.mxu0 0.0
        %2227 = vmatprep.subr.mxu0 0.0
        %2228 = vmatpush1.msra.mxu0 0.0
        %2229 = vmatprep.subr.mxu0 0.0
        %2230 = vmatpush1.msra.mxu0 0.0
        %2231 = vmatprep.subr.mxu0 0.0
        %2232 = vmatpush1.msra.mxu0 0.0
        %2233 = vmatprep.subr.mxu0 0.0
        %2234 = vmatpush1.msra.mxu0 0.0
        %2235 = vmatprep.subr.mxu0 0.0
        %2236 = vmatpush1.msra.mxu0 0.0
        %2237 = vmatprep.subr.mxu0 0.0
        %2238 = vmatpush1.msra.mxu0 0.0
        %2239 = vmatprep.subr.mxu0 0.0
        %2240 = vmatpush1.msra.mxu0 0.0
        %2241 = vmatprep.subr.mxu0 0.0
        %2242 = vmatpush1.msra.mxu0 0.0
        %2243 = vmatprep.subr.mxu0 0.0
        %2244 = vmatpush1.msra.mxu0 0.0
        %2245 = vmatprep.subr.mxu0 0.0
        %2246 = vmatpush1.msra.mxu0 0.0
        %2247 = vmatprep.subr.mxu0 0.0
        %2248 = vmatpush1.msra.mxu0 0.0
        %2249 = vmatprep.subr.mxu0 0.0
        %2250 = vmatpush1.msra.mxu0 0.0
        %2251 = vmatprep.subr.mxu0 0.0
        %2252 = vmatpush1.msra.mxu0 0.0
        %2253 = vmatprep.subr.mxu0 0.0
        %2254 = vmatpush1.msra.mxu0 %v2216
        %2255 = vmatprep.subr.mxu0 0.0
        %2256 = vmatpush2.msra.mxu0 0.0
        %2257 = vmatprep.subr.mxu0 0.0
        %2258 = vmatpush2.msra.mxu0 0.0
        %2259 = vmatprep.subr.mxu0 0.0
        %2260 = vmatpush2.msra.mxu0 0.0
        %2261 = vmatprep.subr.mxu0 0.0
        %2262 = vmatpush2.msra.mxu0 0.0
        %2263 = vmatprep.subr.mxu0 0.0
        %2264 = vmatpush2.msra.mxu0 0.0
        %2265 = vmatprep.subr.mxu0 0.0
        %2266 = vmatpush2.msra.mxu0 0.0
        %2267 = vmatprep.subr.mxu0 0.0
        %2268 = vmatpush2.msra.mxu0 0.0
        %2269 = vmatprep.subr.mxu0 0.0
        %2270 = vmatpush2.msra.mxu0 0.0
        %2271 = vmatprep.subr.mxu0 0.0
        %2272 = vmatpush2.msra.mxu0 0.0
        %2273 = vmatprep.subr.mxu0 0.0
        %2274 = vmatpush2.msra.mxu0 0.0
        %2275 = vmatprep.subr.mxu0 0.0
        %2276 = vmatpush2.msra.mxu0 0.0
        %2277 = vmatprep.subr.mxu0 0.0
        %2278 = vmatpush2.msra.mxu0 0.0
        %2279 = vmatprep.subr.mxu0 0.0
        %2280 = vmatpush2.msra.mxu0 0.0
        %2281 = vmatprep.subr.mxu0 0.0
        %2282 = vmatpush2.msra.mxu0 0.0
        %2283 = vmatprep.subr.mxu0 0.0
        %2284 = vmatpush2.msra.mxu0 0.0
        %2285 = vmatprep.subr.mxu0 0.0
        %2286 = vmatpush2.msra.mxu0 0.0
        %2287 = vmatprep.mubr.f32.mxu0 0.0
        %2288 = vmatmul.mubr.f32.gmra.mxu0 %v2221
        %v2289 = vpop.f32.mrf.mxu0
        %v2290 = vadd.f32 0.0, %v2289
        %v2291 = vpop.f32.mrf.mxu0
        %2292 = vdwg.mxu0
        %v2294 = vsel %vm1575, %v2067, 0
        %2296 = vmatprep.subr.mxu0 0.0
        %2297 = vmatpush1.msra.mxu0 0.0
        %2298 = vmatprep.subr.mxu0 0.0
        %2299 = vmatpush1.msra.mxu0 0.0
        %2300 = vmatprep.subr.mxu0 0.0
        %2301 = vmatpush1.msra.mxu0 0.0
        %2302 = vmatprep.subr.mxu0 0.0
        %2303 = vmatpush1.msra.mxu0 0.0
        %2304 = vmatprep.subr.mxu0 0.0
        %2305 = vmatpush1.msra.mxu0 0.0
        %2306 = vmatprep.subr.mxu0 0.0
        %2307 = vmatpush1.msra.mxu0 0.0
        %2308 = vmatprep.subr.mxu0 0.0
        %2309 = vmatpush1.msra.mxu0 0.0
        %2310 = vmatprep.subr.mxu0 0.0
        %2311 = vmatpush1.msra.mxu0 0.0
        %2312 = vmatprep.subr.mxu0 0.0
        %2313 = vmatpush1.msra.mxu0 0.0
        %2314 = vmatprep.subr.mxu0 0.0
        %2315 = vmatpush1.msra.mxu0 0.0
        %2316 = vmatprep.subr.mxu0 0.0
        %2317 = vmatpush1.msra.mxu0 0.0
        %2318 = vmatprep.subr.mxu0 0.0
        %2319 = vmatpush1.msra.mxu0 0.0
        %2320 = vmatprep.subr.mxu0 0.0
        %2321 = vmatpush1.msra.mxu0 0.0
        %2322 = vmatprep.subr.mxu0 0.0
        %2323 = vmatpush1.msra.mxu0 0.0
        %2324 = vmatprep.subr.mxu0 0.0
        %2325 = vmatpush1.msra.mxu0 0.0
        %2326 = vmatprep.subr.mxu0 0.0
        %2327 = vmatpush1.msra.mxu0 %v2217
        %2328 = vmatprep.subr.mxu0 0.0
        %2329 = vmatpush2.msra.mxu0 0.0
        %2330 = vmatprep.subr.mxu0 0.0
        %2331 = vmatpush2.msra.mxu0 0.0
        %2332 = vmatprep.subr.mxu0 0.0
        %2333 = vmatpush2.msra.mxu0 0.0
        %2334 = vmatprep.subr.mxu0 0.0
        %2335 = vmatpush2.msra.mxu0 0.0
        %2336 = vmatprep.subr.mxu0 0.0
        %2337 = vmatpush2.msra.mxu0 0.0
        %2338 = vmatprep.subr.mxu0 0.0
        %2339 = vmatpush2.msra.mxu0 0.0
        %2340 = vmatprep.subr.mxu0 0.0
        %2341 = vmatpush2.msra.mxu0 0.0
        %2342 = vmatprep.subr.mxu0 0.0
        %2343 = vmatpush2.msra.mxu0 0.0
        %2344 = vmatprep.subr.mxu0 0.0
        %2345 = vmatpush2.msra.mxu0 0.0
        %2346 = vmatprep.subr.mxu0 0.0
        %2347 = vmatpush2.msra.mxu0 0.0
        %2348 = vmatprep.subr.mxu0 0.0
        %2349 = vmatpush2.msra.mxu0 0.0
        %2350 = vmatprep.subr.mxu0 0.0
        %2351 = vmatpush2.msra.mxu0 0.0
        %2352 = vmatprep.subr.mxu0 0.0
        %2353 = vmatpush2.msra.mxu0 0.0
        %2354 = vmatprep.subr.mxu0 0.0
        %2355 = vmatpush2.msra.mxu0 0.0
        %2356 = vmatprep.subr.mxu0 0.0
        %2357 = vmatpush2.msra.mxu0 0.0
        %2358 = vmatprep.subr.mxu0 0.0
        %2359 = vmatpush2.msra.mxu0 0.0
        %2360 = vmatprep.mubr.f32.mxu0 0.0
        %2361 = vmatmul.mubr.f32.gmra.mxu0 %v2294
        %v2362 = vpop.f32.mrf.mxu0
        %v2363 = vadd.f32 0.0, %v2362
        %v2364 = vpop.f32.mrf.mxu0
        %2365 = vdwg.mxu0
        %v2367 = vsel %vm1575, %v2140, 0
        %2369 = vmatprep.subr.mxu0 0.0
        %2370 = vmatpush1.msra.mxu0 0.0
        %2371 = vmatprep.subr.mxu0 0.0
        %2372 = vmatpush1.msra.mxu0 0.0
        %2373 = vmatprep.subr.mxu0 0.0
        %2374 = vmatpush1.msra.mxu0 0.0
        %2375 = vmatprep.subr.mxu0 0.0
        %2376 = vmatpush1.msra.mxu0 0.0
        %2377 = vmatprep.subr.mxu0 0.0
        %2378 = vmatpush1.msra.mxu0 0.0
        %2379 = vmatprep.subr.mxu0 0.0
        %2380 = vmatpush1.msra.mxu0 0.0
        %2381 = vmatprep.subr.mxu0 0.0
        %2382 = vmatpush1.msra.mxu0 0.0
        %2383 = vmatprep.subr.mxu0 0.0
        %2384 = vmatpush1.msra.mxu0 0.0
        %2385 = vmatprep.subr.mxu0 0.0
        %2386 = vmatpush1.msra.mxu0 0.0
        %2387 = vmatprep.subr.mxu0 0.0
        %2388 = vmatpush1.msra.mxu0 0.0
        %2389 = vmatprep.subr.mxu0 0.0
        %2390 = vmatpush1.msra.mxu0 0.0
        %2391 = vmatprep.subr.mxu0 0.0
        %2392 = vmatpush1.msra.mxu0 0.0
        %2393 = vmatprep.subr.mxu0 0.0
        %2394 = vmatpush1.msra.mxu0 0.0
        %2395 = vmatprep.subr.mxu0 0.0
        %2396 = vmatpush1.msra.mxu0 0.0
        %2397 = vmatprep.subr.mxu0 0.0
        %2398 = vmatpush1.msra.mxu0 0.0
        %2399 = vmatprep.subr.mxu0 0.0
        %2400 = vmatpush1.msra.mxu0 %v2218
        %2401 = vmatprep.subr.mxu0 0.0
        %2402 = vmatpush2.msra.mxu0 0.0
        %2403 = vmatprep.subr.mxu0 0.0
        %2404 = vmatpush2.msra.mxu0 0.0
        %2405 = vmatprep.subr.mxu0 0.0
        %2406 = vmatpush2.msra.mxu0 0.0
        %2407 = vmatprep.subr.mxu0 0.0
        %2408 = vmatpush2.msra.mxu0 0.0
        %2409 = vmatprep.subr.mxu0 0.0
        %2410 = vmatpush2.msra.mxu0 0.0
        %2411 = vmatprep.subr.mxu0 0.0
        %2412 = vmatpush2.msra.mxu0 0.0
        %2413 = vmatprep.subr.mxu0 0.0
        %2414 = vmatpush2.msra.mxu0 0.0
        %2415 = vmatprep.subr.mxu0 0.0
        %2416 = vmatpush2.msra.mxu0 0.0
        %2417 = vmatprep.subr.mxu0 0.0
        %2418 = vmatpush2.msra.mxu0 0.0
        %2419 = vmatprep.subr.mxu0 0.0
        %2420 = vmatpush2.msra.mxu0 0.0
        %2421 = vmatprep.subr.mxu0 0.0
        %2422 = vmatpush2.msra.mxu0 0.0
        %2423 = vmatprep.subr.mxu0 0.0
        %2424 = vmatpush2.msra.mxu0 0.0
        %2425 = vmatprep.subr.mxu0 0.0
        %2426 = vmatpush2.msra.mxu0 0.0
        %2427 = vmatprep.subr.mxu0 0.0
        %2428 = vmatpush2.msra.mxu0 0.0
        %2429 = vmatprep.subr.mxu0 0.0
        %2430 = vmatpush2.msra.mxu0 0.0
        %2431 = vmatprep.subr.mxu0 0.0
        %2432 = vmatpush2.msra.mxu0 0.0
        %2433 = vmatprep.mubr.f32.mxu0 0.0
        %2434 = vmatmul.mubr.f32.gmra.mxu0 %v2367
        %v2435 = vpop.f32.mrf.mxu0
        %v2436 = vadd.f32 0.0, %v2435
        %v2437 = vpop.f32.mrf.mxu0
        %2438 = vdwg.mxu0
        %v2440 = vsel %vm1575, %v2213, 0
        %2442 = vmatprep.subr.mxu0 0.0
        %2443 = vmatpush1.msra.mxu0 0.0
        %2444 = vmatprep.subr.mxu0 0.0
        %2445 = vmatpush1.msra.mxu0 0.0
        %2446 = vmatprep.subr.mxu0 0.0
        %2447 = vmatpush1.msra.mxu0 0.0
        %2448 = vmatprep.subr.mxu0 0.0
        %2449 = vmatpush1.msra.mxu0 0.0
        %2450 = vmatprep.subr.mxu0 0.0
        %2451 = vmatpush1.msra.mxu0 0.0
        %2452 = vmatprep.subr.mxu0 0.0
        %2453 = vmatpush1.msra.mxu0 0.0
        %2454 = vmatprep.subr.mxu0 0.0
        %2455 = vmatpush1.msra.mxu0 0.0
        %2456 = vmatprep.subr.mxu0 0.0
        %2457 = vmatpush1.msra.mxu0 0.0
        %2458 = vmatprep.subr.mxu0 0.0
        %2459 = vmatpush1.msra.mxu0 0.0
        %2460 = vmatprep.subr.mxu0 0.0
        %2461 = vmatpush1.msra.mxu0 0.0
        %2462 = vmatprep.subr.mxu0 0.0
        %2463 = vmatpush1.msra.mxu0 0.0
        %2464 = vmatprep.subr.mxu0 0.0
        %2465 = vmatpush1.msra.mxu0 0.0
        %2466 = vmatprep.subr.mxu0 0.0
        %2467 = vmatpush1.msra.mxu0 0.0
        %2468 = vmatprep.subr.mxu0 0.0
        %2469 = vmatpush1.msra.mxu0 0.0
        %2470 = vmatprep.subr.mxu0 0.0
        %2471 = vmatpush1.msra.mxu0 0.0
        %2472 = vmatprep.subr.mxu0 0.0
        %2473 = vmatpush1.msra.mxu0 %v2219
        %2474 = vmatprep.subr.mxu0 0.0
        %2475 = vmatpush2.msra.mxu0 0.0
        %2476 = vmatprep.subr.mxu0 0.0
        %2477 = vmatpush2.msra.mxu0 0.0
        %2478 = vmatprep.subr.mxu0 0.0
        %2479 = vmatpush2.msra.mxu0 0.0
        %2480 = vmatprep.subr.mxu0 0.0
        %2481 = vmatpush2.msra.mxu0 0.0
        %2482 = vmatprep.subr.mxu0 0.0
        %2483 = vmatpush2.msra.mxu0 0.0
        %2484 = vmatprep.subr.mxu0 0.0
        %2485 = vmatpush2.msra.mxu0 0.0
        %2486 = vmatprep.subr.mxu0 0.0
        %2487 = vmatpush2.msra.mxu0 0.0
        %2488 = vmatprep.subr.mxu0 0.0
        %2489 = vmatpush2.msra.mxu0 0.0
        %2490 = vmatprep.subr.mxu0 0.0
        %2491 = vmatpush2.msra.mxu0 0.0
        %2492 = vmatprep.subr.mxu0 0.0
        %2493 = vmatpush2.msra.mxu0 0.0
        %2494 = vmatprep.subr.mxu0 0.0
        %2495 = vmatpush2.msra.mxu0 0.0
        %2496 = vmatprep.subr.mxu0 0.0
        %2497 = vmatpush2.msra.mxu0 0.0
        %2498 = vmatprep.subr.mxu0 0.0
        %2499 = vmatpush2.msra.mxu0 0.0
        %2500 = vmatprep.subr.mxu0 0.0
        %2501 = vmatpush2.msra.mxu0 0.0
        %2502 = vmatprep.subr.mxu0 0.0
        %2503 = vmatpush2.msra.mxu0 0.0
        %2504 = vmatprep.subr.mxu0 0.0
        %2505 = vmatpush2.msra.mxu0 0.0
        %2506 = vmatprep.mubr.f32.mxu0 0.0
        %2507 = vmatmul.mubr.f32.gmra.mxu0 %v2440
        %v2508 = vpop.f32.mrf.mxu0
        %v2509 = vadd.f32 0.0, %v2508
        %v2510 = vpop.f32.mrf.mxu0
        %2511 = vdwg.mxu0
        %v2512 = vsel %vm630, %v2290, 0.0
        %v2513 = vsel %vm630, %v2363, 0.0
        %v2514 = vadd.f32 %v2512, %v2513
        %v2515 = vsel %vm630, %v2436, 0.0
        %v2516 = vadd.f32 %v2514, %v2515
        %v2517 = vsel %vm630, %v2509, 0.0
        %v2518 = vadd.f32 %v2516, %v2517
        %v2519 = vld [vmem:[%s9] sm:$0x1]
        %v2521 = vlaneseq
        %v2522 = vshrl.u32 %v2521, 7
        %v2523 = vsub.s32 0, %v2522
        %v2524 = vrot.slane %v2519, %v2523
        %v2526 = vadd.f32 %v2518, %v2524
        %v2527 = vadd.f32 %v585, %v2526
        %v2528 = vld [vmem:[%s10] sm:$0x1]
        %v2529 = vld [vmem:[%s11] sm:$0x1]
        %v2530 = vsel %vm630, %v2527, 0.0
        %2531 = vadd.xlane.f32.xlu0 %v2530
        %v2532 = vpop.xlane.xlu0 %2531
        %v2533 = vrcp.pop 32.0
        %v2534 = vmul.f32 %v2532, %v2533
        %v2535 = vsub.f32 %v2527, %v2534
        %v2536 = vmul.f32 %v2535, %v2535
        %v2537 = vsel %vm630, %v2536, 0.0
        %2538 = vadd.xlane.f32.xlu0 %v2537
        %v2539 = vpop.xlane.xlu0 %2538
        %v2540 = vmul.f32 %v2539, %v2533
        %v2541 = vadd.f32 %v2540, 1e-05
        %v2542 = vrsqrt.pop %v2541
        %v2543 = vmul.f32 %v2535, %v2542
        %v2545 = vlaneseq
        %v2546 = vshrl.u32 %v2545, 7
        %v2547 = vsub.s32 0, %v2546
        %v2548 = vrot.slane %v2528, %v2547
        %v2550 = vmul.f32 %v2543, %v2548
        %v2552 = vlaneseq
        %v2553 = vshrl.u32 %v2552, 7
        %v2554 = vsub.s32 0, %v2553
        %v2555 = vrot.slane %v2529, %v2554
        %v2557 = vadd.f32 %v2550, %v2555
        %v2558 = vld [vmem:[%s12] sm:$0xff]
        %v2559 = vld [vmem:[%s12 + $0x8] sm:$0xff]
        %v2560 = vld [vmem:[%s12 + $0x10] sm:$0xff]
        %v2561 = vld [vmem:[%s12 + $0x18] sm:$0xff]
        %v2562 = vld [vmem:[%s13] sm:$0x1]
        %v2564 = vlaneseq
        %v2565 = vshrl.u32 %v2564, 7
        %v2566 = vsub.s32 0, %v2565
        %v2567 = vrot.slane %v2562, %v2566
        %v2570 = vsel %vm630, %v2557, 0
        %2572 = vmatprep.subr.mxu0 0.0
        %2573 = vmatpush1.msra.mxu0 0.0
        %2574 = vmatprep.subr.mxu0 0.0
        %2575 = vmatpush1.msra.mxu0 0.0
        %2576 = vmatprep.subr.mxu0 0.0
        %2577 = vmatpush1.msra.mxu0 0.0
        %2578 = vmatprep.subr.mxu0 0.0
        %2579 = vmatpush1.msra.mxu0 0.0
        %2580 = vmatprep.subr.mxu0 0.0
        %2581 = vmatpush1.msra.mxu0 0.0
        %2582 = vmatprep.subr.mxu0 0.0
        %2583 = vmatpush1.msra.mxu0 0.0
        %2584 = vmatprep.subr.mxu0 0.0
        %2585 = vmatpush1.msra.mxu0 0.0
        %2586 = vmatprep.subr.mxu0 0.0
        %2587 = vmatpush1.msra.mxu0 0.0
        %2588 = vmatprep.subr.mxu0 0.0
        %2589 = vmatpush1.msra.mxu0 0.0
        %2590 = vmatprep.subr.mxu0 0.0
        %2591 = vmatpush1.msra.mxu0 0.0
        %2592 = vmatprep.subr.mxu0 0.0
        %2593 = vmatpush1.msra.mxu0 0.0
        %2594 = vmatprep.subr.mxu0 0.0
        %2595 = vmatpush1.msra.mxu0 0.0
        %2596 = vmatprep.subr.mxu0 0.0
        %2597 = vmatpush1.msra.mxu0 %v2561
        %2598 = vmatprep.subr.mxu0 0.0
        %2599 = vmatpush1.msra.mxu0 %v2560
        %2600 = vmatprep.subr.mxu0 0.0
        %2601 = vmatpush1.msra.mxu0 %v2559
        %2602 = vmatprep.subr.mxu0 0.0
        %2603 = vmatpush1.msra.mxu0 %v2558
        %2604 = vmatprep.subr.mxu0 0.0
        %2605 = vmatpush2.msra.mxu0 0.0
        %2606 = vmatprep.subr.mxu0 0.0
        %2607 = vmatpush2.msra.mxu0 0.0
        %2608 = vmatprep.subr.mxu0 0.0
        %2609 = vmatpush2.msra.mxu0 0.0
        %2610 = vmatprep.subr.mxu0 0.0
        %2611 = vmatpush2.msra.mxu0 0.0
        %2612 = vmatprep.subr.mxu0 0.0
        %2613 = vmatpush2.msra.mxu0 0.0
        %2614 = vmatprep.subr.mxu0 0.0
        %2615 = vmatpush2.msra.mxu0 0.0
        %2616 = vmatprep.subr.mxu0 0.0
        %2617 = vmatpush2.msra.mxu0 0.0
        %2618 = vmatprep.subr.mxu0 0.0
        %2619 = vmatpush2.msra.mxu0 0.0
        %2620 = vmatprep.subr.mxu0 0.0
        %2621 = vmatpush2.msra.mxu0 0.0
        %2622 = vmatprep.subr.mxu0 0.0
        %2623 = vmatpush2.msra.mxu0 0.0
        %2624 = vmatprep.subr.mxu0 0.0
        %2625 = vmatpush2.msra.mxu0 0.0
        %2626 = vmatprep.subr.mxu0 0.0
        %2627 = vmatpush2.msra.mxu0 0.0
        %2628 = vmatprep.subr.mxu0 0.0
        %2629 = vmatpush2.msra.mxu0 0.0
        %2630 = vmatprep.subr.mxu0 0.0
        %2631 = vmatpush2.msra.mxu0 0.0
        %2632 = vmatprep.subr.mxu0 0.0
        %2633 = vmatpush2.msra.mxu0 0.0
        %2634 = vmatprep.subr.mxu0 0.0
        %2635 = vmatpush2.msra.mxu0 0.0
        %2636 = vmatprep.mubr.f32.mxu0 0.0
        %2637 = vmatmul.mubr.f32.gmra.mxu0 %v2570
        %v2638 = vpop.f32.mrf.mxu0
        %v2639 = vadd.f32 %v2567, %v2638
        %v2640 = vpop.f32.mrf.mxu0
        %2641 = vdwg.mxu0
        %v2642 = vmax.f32 %v2639, 0.0
        %v2643 = vld [vmem:[%s14] sm:$0xff]
        %v2644 = vld [vmem:[%s14 + $0x8] sm:$0xff]
        %v2645 = vld [vmem:[%s14 + $0x10] sm:$0xff]
        %v2646 = vld [vmem:[%s14 + $0x18] sm:$0xff]
        %v2647 = vld [vmem:[%s14 + $0x20] sm:$0xff]
        %v2648 = vld [vmem:[%s14 + $0x28] sm:$0xff]
        %v2649 = vld [vmem:[%s14 + $0x30] sm:$0xff]
        %v2650 = vld [vmem:[%s14 + $0x38] sm:$0xff]
        %v2651 = vld [vmem:[%s15] sm:$0x1]
        %v2653 = vlaneseq
        %v2654 = vshrl.u32 %v2653, 7
        %v2655 = vsub.s32 0, %v2654
        %v2656 = vrot.slane %v2651, %v2655
        %vm2658 = vcmask 523264
        %v2660 = vsel %vm2658, %v2642, 0
        %2662 = vmatprep.subr.mxu0 0.0
        %2663 = vmatpush1.msra.mxu0 0.0
        %2664 = vmatprep.subr.mxu0 0.0
        %2665 = vmatpush1.msra.mxu0 0.0
        %2666 = vmatprep.subr.mxu0 0.0
        %2667 = vmatpush1.msra.mxu0 0.0
        %2668 = vmatprep.subr.mxu0 0.0
        %2669 = vmatpush1.msra.mxu0 0.0
        %2670 = vmatprep.subr.mxu0 0.0
        %2671 = vmatpush1.msra.mxu0 0.0
        %2672 = vmatprep.subr.mxu0 0.0
        %2673 = vmatpush1.msra.mxu0 0.0
        %2674 = vmatprep.subr.mxu0 0.0
        %2675 = vmatpush1.msra.mxu0 0.0
        %2676 = vmatprep.subr.mxu0 0.0
        %2677 = vmatpush1.msra.mxu0 0.0
        %2678 = vmatprep.subr.mxu0 0.0
        %2679 = vmatpush1.msra.mxu0 %v2650
        %2680 = vmatprep.subr.mxu0 0.0
        %2681 = vmatpush1.msra.mxu0 %v2649
        %2682 = vmatprep.subr.mxu0 0.0
        %2683 = vmatpush1.msra.mxu0 %v2648
        %2684 = vmatprep.subr.mxu0 0.0
        %2685 = vmatpush1.msra.mxu0 %v2647
        %2686 = vmatprep.subr.mxu0 0.0
        %2687 = vmatpush1.msra.mxu0 %v2646
        %2688 = vmatprep.subr.mxu0 0.0
        %2689 = vmatpush1.msra.mxu0 %v2645
        %2690 = vmatprep.subr.mxu0 0.0
        %2691 = vmatpush1.msra.mxu0 %v2644
        %2692 = vmatprep.subr.mxu0 0.0
        %2693 = vmatpush1.msra.mxu0 %v2643
        %2694 = vmatprep.subr.mxu0 0.0
        %2695 = vmatpush2.msra.mxu0 0.0
        %2696 = vmatprep.subr.mxu0 0.0
        %2697 = vmatpush2.msra.mxu0 0.0
        %2698 = vmatprep.subr.mxu0 0.0
        %2699 = vmatpush2.msra.mxu0 0.0
        %2700 = vmatprep.subr.mxu0 0.0
        %2701 = vmatpush2.msra.mxu0 0.0
        %2702 = vmatprep.subr.mxu0 0.0
        %2703 = vmatpush2.msra.mxu0 0.0
        %2704 = vmatprep.subr.mxu0 0.0
        %2705 = vmatpush2.msra.mxu0 0.0
        %2706 = vmatprep.subr.mxu0 0.0
        %2707 = vmatpush2.msra.mxu0 0.0
        %2708 = vmatprep.subr.mxu0 0.0
        %2709 = vmatpush2.msra.mxu0 0.0
        %2710 = vmatprep.subr.mxu0 0.0
        %2711 = vmatpush2.msra.mxu0 0.0
        %2712 = vmatprep.subr.mxu0 0.0
        %2713 = vmatpush2.msra.mxu0 0.0
        %2714 = vmatprep.subr.mxu0 0.0
        %2715 = vmatpush2.msra.mxu0 0.0
        %2716 = vmatprep.subr.mxu0 0.0
        %2717 = vmatpush2.msra.mxu0 0.0
        %2718 = vmatprep.subr.mxu0 0.0
        %2719 = vmatpush2.msra.mxu0 0.0
        %2720 = vmatprep.subr.mxu0 0.0
        %2721 = vmatpush2.msra.mxu0 0.0
        %2722 = vmatprep.subr.mxu0 0.0
        %2723 = vmatpush2.msra.mxu0 0.0
        %2724 = vmatprep.subr.mxu0 0.0
        %2725 = vmatpush2.msra.mxu0 0.0
        %2726 = vmatprep.mubr.f32.mxu0 0.0
        %2727 = vmatmul.mubr.f32.gmra.mxu0 %v2660
        %v2728 = vpop.f32.mrf.mxu0
        %v2729 = vadd.f32 %v2656, %v2728
        %v2730 = vpop.f32.mrf.mxu0
        %2731 = vdwg.mxu0
        %v2732 = vadd.f32 %v2557, %v2729
        %v2733 = vld [vmem:[%s16] sm:$0x1]
        %v2734 = vld [vmem:[%s17] sm:$0x1]
        %v2735 = vsel %vm630, %v2732, 0.0
        %2736 = vadd.xlane.f32.xlu0 %v2735
        %v2737 = vpop.xlane.xlu0 %2736
        %v2738 = vmul.f32 %v2737, %v2533
        %v2739 = vsub.f32 %v2732, %v2738
        %v2740 = vmul.f32 %v2739, %v2739
        %v2741 = vsel %vm630, %v2740, 0.0
        %2742 = vadd.xlane.f32.xlu0 %v2741
        %v2743 = vpop.xlane.xlu0 %2742
        %v2744 = vmul.f32 %v2743, %v2533
        %v2745 = vadd.f32 %v2744, 1e-05
        %v2746 = vrsqrt.pop %v2745
        %v2747 = vmul.f32 %v2739, %v2746
        %v2749 = vlaneseq
        %v2750 = vshrl.u32 %v2749, 7
        %v2751 = vsub.s32 0, %v2750
        %v2752 = vrot.slane %v2733, %v2751
        %v2754 = vmul.f32 %v2747, %v2752
        %v2756 = vlaneseq
        %v2757 = vshrl.u32 %v2756, 7
        %v2758 = vsub.s32 0, %v2757
        %v2759 = vrot.slane %v2734, %v2758
        %v2761 = vadd.f32 %v2754, %v2759
        %2762 = vst.msk [vmem:[%s577] sm:$0xff] %vm630, %v2761
        %s2763 = sand.u32 %s428, 1
        %s2764 = scalar_lea.sflag [#allocation3], %s2763
        %s2765 = sand.u32 %s428, 1
        %s2766 = smul.addr %s2765, 8
        %s2767 = scalar_lea.vmem [#allocation2], %s2766
        // Predicated region
        $region93: #{tpu_custom_call.1} parent=91 // pred_check
          %p2768 = pneg %p438
        $region94: #{tpu_custom_call.1} parent=91 // pred_check_branch
          %2770 = sbr.rel (%p2768) target = $region96
        $region95: #{tpu_custom_call.1} parent=91 // pred_region
          %s2772 = ssub.s32 128, 128
          %2773 = vsyncadd %s2764, %s2772
          %s2774 = smul.addr %s32, 128
          %s2775 = scalar_lea.hbm %s18, %s2774
          %s2777 = sshll.u32 %s2767, 4
          %s2778 = int_to_ptr.vmem [resolvable:$true] %s2777
          %2780 = dma.vmem_to_hbm [thread:$0]  %s2778, 128, %s2775, %s2764
        $region96: #{tpu_custom_call.1} parent=91 // pred_fallthru
          _
      $region92: #{tpu_custom_call.1} parent=5 // pred_fallthru
        _
      %p2781 = scmp.le.s32.totalorder 2, %s27
      // Predicated region
      $region97: #{tpu_custom_call.1} parent=5 // pred_check
        %p2782 = pneg %p2781
      $region98: #{tpu_custom_call.1} parent=5 // pred_check_branch
        %2784 = sbr.rel (%p2782) target = $region100
      $region99: #{tpu_custom_call.1} parent=5 // pred_region
        %s2785 = ssub.s32 %s27, 2
        // Predicated region
        $region101: #{tpu_custom_call.1} parent=99 // pred_check
          %p2786 = pneg %p444
        $region102: #{tpu_custom_call.1} parent=99 // pred_check_branch
          %2788 = sbr.rel (%p2786) target = $region104
        $region103: #{tpu_custom_call.1} parent=99 // pred_region
          %s2789 = sand.u32 %s429, 1
          %s2790 = scalar_lea.sflag [#allocation3], %s2789
          %s2791 = sand.u32 %s429, 1
          %s2792 = smul.addr %s2791, 8
          %s2793 = scalar_lea.vmem [#allocation2], %s2792
          %2794 = dma.done %s2790, 128
        $region104: #{tpu_custom_call.1} parent=99 // pred_fallthru
          _
      $region100: #{tpu_custom_call.1} parent=5 // pred_fallthru
        _
    $region6: #{tpu_custom_call.1} parent=1 // loop_footer
      %s31 = sadd.s32 1, %s27
    $region7: #{tpu_custom_call.1} parent=1 // loop_footer_branch
      %26 = sbr.rel target = $region3
    $region8: #{tpu_custom_call.1} parent=1 // loop_exit
      _
    %2795 = vsyncpa [#allocation3], 1
    %s2796 = scalar_lea.sflag [#allocation3], 1
    %2797 = vsyncpa %s2796, 1

</llo_original>
